<compile_context>
chip_gen: v5e
topology: v5e:2x2
jax: 0.10.0
libtpu: 0.0.40
codegen_flags: <defaults>
</compile_context>

<pallas_src>
import jax
import jax.numpy as jnp
from jax import lax
from jax.experimental import pallas as pl
from jax.experimental.pallas import tpu as pltpu

EPS = 1e-5  # nn.BatchNorm2d default eps


def _vmem_limit_bytes():
    """Per-generation VMEM budget: ~85% of physical capacity, capped at 112 MiB."""
    cap = 64 * 1024 * 1024  # conservative fallback (v7x per-TensorCore VMEM)
    try:
        info = pltpu.get_tpu_info()
        cap = int(getattr(info, "vmem_capacity_bytes", cap) or cap)
    except Exception:
        pass
    return int(min(112 * 1024 * 1024, int(0.85 * cap)))


def _pick_tile_h(N, H, W, Cin, Cpad, Cout, in_itemsize, out_itemsize, budget):
    """Largest divisor of H whose per-block VMEM footprint fits the budget."""
    Wp = W + 2

    def block_bytes(th):
        rows = th * Wp
        acc = rows * Cpad * 4                        # fp32 accumulator (value)
        xin = 2 * (th + 3) * Wp * Cin * in_itemsize  # double-buffered input tile
        wgt = 2 * 9 * Cin * Cpad * in_itemsize       # tap weights
        out = 2 * rows * Cout * out_itemsize         # apply-pass output tile
        return acc + xin + wgt + out

    tile_h = 1
    for th in range(H, 0, -1):
        if H % th == 0:
            tile_h = th
            if block_bytes(th) <= budget:
                break
    # Keep both v7x TensorCores busy when the batch alone cannot (N == 1).
    if N == 1 and tile_h == H and H % 2 == 0:
        tile_h = H // 2
    # TODO(synk): tile W (and K = Cin) as well if even tile_h == 1 overflows.
    return tile_h


def _make_kernels(W, tile_h, Cout, KH=3, KW=3):
    Wp = W + 2
    rows = tile_h * Wp  # conv rows per block (incl. Wp - W junk cols per row)

    def conv_tile(x_ref, w_ref):
        # x_ref: (1, 1, (tile_h + 3) * Wp, Cin)  flattened, spatially padded rows
        # w_ref: (KH*KW, Cin, Cpad)              per-tap weights, lane-padded Cout
        acc = None
        for kh in range(KH):
            for kw in range(KW):
                start = kh * Wp + kw
                xs = x_ref[0, 0, start:start + rows, :]           # (rows, Cin)
                p = jnp.dot(xs, w_ref[kh * KW + kw],
                            preferred_element_type=jnp.float32)   # (rows, Cpad)
                acc = p if acc is None else acc + p               # value accum
        return acc

    def stats_kernel(x_ref, w_ref, sum_ref, ssq_ref):
        acc = conv_tile(x_ref, w_ref)
        # Mask the Wp - W junk columns of every image row before reducing.
        col = lax.broadcasted_iota(jnp.int32, (rows, 1), 0) % Wp
        valid = (col < W).astype(jnp.float32)
        av = acc * valid
        sum_ref[0, 0] = jnp.sum(av, axis=0, keepdims=True)
        ssq_ref[0, 0] = jnp.sum(av * acc, axis=0, keepdims=True)

    def apply_kernel(x_ref, w_ref, scale_ref, shift_ref, o_ref):
        acc = conv_tile(x_ref, w_ref)
        y = jnp.maximum(acc * scale_ref[...] + shift_ref[...], 0.0)
        # Drop the channel padding at the store; junk columns are dropped by the
        # (cheap, exact-Cout) wrapper-side slice + NCHW transpose.
        o_ref[0, 0] = y[:, :Cout].astype(o_ref.dtype)

    return stats_kernel, apply_kernel


def conv_block_forward(x_nchw, weight, bias, gamma, beta,
                       compute_dtype=jnp.bfloat16):
    """relu(batchnorm(conv2d(x))) with PyTorch NCHW / OIHW conventions."""
    del bias  # exactly cancelled by BN's batch-mean subtraction (training mode)

    N, Cin, H, W = map(int, x_nchw.shape)
    Cout, _, KH, KW = map(int, weight.shape)
    assert KH == 3 and KW == 3, "kernel specialised for kernel_size=3, padding=1"
    out_dtype = x_nchw.dtype

    Wp = W + 2
    # Lane padding is used only inside the kernels (MXU / reductions); nothing
    # Cpad-wide ever touches HBM.  TODO(synk): round to 256 on v6e/v7x when
    # Cout >= 128 to fill the 2x256x256 MXU.
    Cpad = ((Cout + 127) // 128) * 128

    in_itemsize = jnp.dtype(compute_dtype).itemsize
    out_itemsize = jnp.dtype(out_dtype).itemsize
    vmem_limit = _vmem_limit_bytes()
    tile_h = _pick_tile_h(N, H, W, Cin, Cpad, Cout,
                          in_itemsize, out_itemsize, budget=vmem_limit // 4)
    HT = H // tile_h
    rows = tile_h * Wp
    in_rows = (tile_h + 3) * Wp

    # --- glue: NCHW -> NHWC, spatial pad (1 top, 2 bottom, 1/1 sides), slice
    # into overlapping H-tiles (3-row halo) and flatten (h, w) so every tap is
    # one contiguous 2-D slice -> one 2-D MXU matmul.
    x = jnp.transpose(x_nchw, (0, 2, 3, 1))
    xp = jnp.pad(x, ((0, 0), (1, 2), (1, 1), (0, 0))).astype(compute_dtype)
    x_tiles = jnp.stack(
        [xp[:, t * tile_h: t * tile_h + tile_h + 3] for t in range(HT)], axis=1
    ).reshape(N, HT, in_rows, Cin)

    # weight (Cout, Cin, KH, KW) -> (KH*KW, Cin, Cpad), zero-padded lanes.
    w = jnp.transpose(weight, (2, 3, 1, 0)).reshape(KH * KW, Cin, Cout)
    w = jnp.pad(w, ((0, 0), (0, 0), (0, Cpad - Cout))).astype(compute_dtype)

    stats_kernel, apply_kernel = _make_kernels(W, tile_h, Cout, KH, KW)

    grid = (N, HT)
    cparams = pltpu.CompilerParams(
        dimension_semantics=("parallel", "parallel"),
        vmem_limit_bytes=vmem_limit)
    x_spec = pl.BlockSpec((1, 1, in_rows, Cin), lambda n, t: (n, t, 0, 0))
    w_spec = pl.BlockSpec((KH * KW, Cin, Cpad), lambda n, t: (0, 0, 0))

    # --- pass 1: per-(image, H-tile) BN partial statistics (tiny outputs) ----
    psum, pssq = pl.pallas_call(
        stats_kernel,
        out_shape=(jax.ShapeDtypeStruct((N, HT, 1, Cpad), jnp.float32),
                   jax.ShapeDtypeStruct((N, HT, 1, Cpad), jnp.float32)),
        grid_spec=pltpu.PrefetchScalarGridSpec(
            num_scalar_prefetch=0,
            grid=grid,
            in_specs=[x_spec, w_spec],
            out_specs=[pl.BlockSpec((1, 1, 1, Cpad), lambda n, t: (n, t, 0, 0)),
                       pl.BlockSpec((1, 1, 1, Cpad), lambda n, t: (n, t, 0, 0))],
        ),
        compiler_params=cparams,
    )(x_tiles, w)

    # --- tiny fold: batch stats -> per-channel scale / shift (fp32) ----------
    cnt = float(N * H * W)
    s = jnp.sum(psum, axis=(0, 1, 2))
    ss = jnp.sum(pssq, axis=(0, 1, 2))
    mean = s / cnt
    # E[x^2] - mean^2 from fp32 sums; clamp guards round-off.
    # TODO(synk): centered / Welford combine if very large N*H*W needs tighter
    # BN-statistic precision.
    var = jnp.maximum(ss / cnt - mean * mean, 0.0)
    g = jnp.pad(gamma.astype(jnp.float32), (0, Cpad - Cout))
    b = jnp.pad(beta.astype(jnp.float32), (0, Cpad - Cout))
    scale = g * lax.rsqrt(var + EPS)
    shift = b - mean * scale

    # --- pass 2: recompute conv, fused normalize + affine + ReLU -------------
    out_flat = pl.pallas_call(
        apply_kernel,
        out_shape=jax.ShapeDtypeStruct((N, HT, rows, Cout), out_dtype),
        grid_spec=pltpu.PrefetchScalarGridSpec(
            num_scalar_prefetch=0,
            grid=grid,
            in_specs=[x_spec, w_spec,
                      pl.BlockSpec((1, Cpad), lambda n, t: (0, 0)),
                      pl.BlockSpec((1, Cpad), lambda n, t: (0, 0))],
            out_specs=pl.BlockSpec((1, 1, rows, Cout), lambda n, t: (n, t, 0, 0)),
        ),
        compiler_params=cparams,
    )(x_tiles, w, scale.reshape(1, Cpad), shift.reshape(1, Cpad))

    # --- glue: drop 2 junk columns per row, back to NCHW (single XLA pass) ---
    y = out_flat.reshape(N, H, Wp, Cout)[:, :, :W, :]
    return jnp.transpose(y, (0, 3, 1, 2))


def reference_forward(x, weight, bias, gamma, beta):
    conv = lax.conv_general_dilated(
        x, weight, window_strides=(1, 1), padding=((1, 1), (1, 1)),
        dimension_numbers=("NCHW", "OIHW", "NCHW"),
        precision=lax.Precision.HIGHEST,
    ) + bias.reshape(1, -1, 1, 1)
    mean = conv.mean(axis=(0, 2, 3), keepdims=True)
    var = ((conv - mean) ** 2).mean(axis=(0, 2, 3), keepdims=True)
    xhat = (conv - mean) / jnp.sqrt(var + EPS)
    return jnp.maximum(xhat * gamma.reshape(1, -1, 1, 1) + beta.reshape(1, -1, 1, 1), 0.0)


if __name__ == "__main__":
    # Small shapes consistent with ConvBlock(in_channels=4, out_channels=8).
    N, Cin, H, W = 2, 4, 16, 16
    Cout, KH, KW = 8, 3, 3

    key = jax.random.PRNGKey(0)
    kx, kw, kb, kg, kbeta = jax.random.split(key, 5)

    x = jax.random.normal(kx, (N, Cin, H, W), dtype=jnp.float32)
    weight = 0.1 * jax.random.normal(kw, (Cout, Cin, KH, KW), dtype=jnp.float32)
    bias = 0.05 * jax.random.normal(kb, (Cout,), dtype=jnp.float32)
    gamma = 1.0 + 0.1 * jax.random.normal(kg, (Cout,), dtype=jnp.float32)
    beta = 0.05 * jax.random.normal(kbeta, (Cout,), dtype=jnp.float32)

    ref = jax.block_until_ready(reference_forward(x, weight, bias, gamma, beta))

    # fp32 compute path: tight check against the fp32 reference.
    out32 = jax.block_until_ready(
        conv_block_forward(x, weight, bias, gamma, beta, compute_dtype=jnp.float32))
    assert out32.shape == (N, Cout, H, W)
    err32 = float(jnp.max(jnp.abs(out32 - ref)))
    assert err32 < 2e-3, f"fp32 path mismatch vs reference: {err32}"

    # bf16 matmul operands (default, per perf guidance): looser tolerance.
    out_bf = jax.block_until_ready(conv_block_forward(x, weight, bias, gamma, beta))
    assert out_bf.shape == (N, Cout, H, W)
    err_bf = float(jnp.max(jnp.abs(out_bf - ref)))
    assert err_bf < 5e-2, f"bf16 path mismatch vs reference: {err_bf}"

    print("KERNEL_OK")
</pallas_src>

<mosaic_0001>
module attributes {stable_mosaic.version = 11 : i64} {
  func.func @stats_kernel(%arg0: i32, %arg1: i32, %arg2: memref<1x1x342x4xf32, #tpu.memory_space<vmem>>, %arg3: memref<9x4x128xf32, #tpu.memory_space<vmem>>, %arg4: memref<1x1x1x128xf32, #tpu.memory_space<vmem>>, %arg5: memref<1x1x1x128xf32, #tpu.memory_space<vmem>>) attributes {dimension_semantics = [#tpu.dimension_semantics<parallel>, #tpu.dimension_semantics<parallel>], iteration_bounds = array<i64: 2, 1>, scalar_prefetch = 0 : i64, scratch_operands = 0 : i64, tpu.core_type = #tpu.core_type<tc>, window_params = [{transform_indices = @transform_0, window_bounds = array<i64: 1, 1, 342, 4>}, {pipeline_mode = #tpu.pipeline_mode<synchronous>, transform_indices = @transform_1, window_bounds = array<i64: 9, 4, 128>}, {transform_indices = @transform_2, window_bounds = array<i64: 1, 1, 1, 128>}, {transform_indices = @transform_3, window_bounds = array<i64: 1, 1, 1, 128>}]} {
    %c0 = arith.constant 0 : index
    %c0_0 = arith.constant 0 : index
    %c0_1 = arith.constant 0 : index
    %c0_2 = arith.constant 0 : index
    %0 = vector.load %arg2[%c0, %c0_0, %c0_1, %c0_2] : memref<1x1x342x4xf32, #tpu.memory_space<vmem>>, vector<1x1x288x4xf32>
    %1 = vector.shape_cast %0 : vector<1x1x288x4xf32> to vector<288x4xf32>
    %c0_3 = arith.constant 0 : index
    %c0_4 = arith.constant 0 : index
    %c0_5 = arith.constant 0 : index
    %2 = vector.load %arg3[%c0_3, %c0_4, %c0_5] : memref<9x4x128xf32, #tpu.memory_space<vmem>>, vector<1x4x128xf32>
    %3 = vector.shape_cast %2 : vector<1x4x128xf32> to vector<4x128xf32>
    %cst = arith.constant dense<0.000000e+00> : vector<288x128xf32>
    %4 = tpu.matmul %1, %3, %cst {dimension_numbers = #tpu.dot_dimension_numbers<[1], [0], [0], [1], [0, 0, 1, 1], [], []>} : vector<288x4xf32>, vector<4x128xf32>, vector<288x128xf32> -> vector<288x128xf32>
    %c0_6 = arith.constant 0 : index
    %c0_7 = arith.constant 0 : index
    %c1 = arith.constant 1 : index
    %c0_8 = arith.constant 0 : index
    %5 = vector.load %arg2[%c0_6, %c0_7, %c1, %c0_8] : memref<1x1x342x4xf32, #tpu.memory_space<vmem>>, vector<1x1x288x4xf32>
    %6 = vector.shape_cast %5 : vector<1x1x288x4xf32> to vector<288x4xf32>
    %c1_9 = arith.constant 1 : index
    %c0_10 = arith.constant 0 : index
    %c0_11 = arith.constant 0 : index
    %7 = vector.load %arg3[%c1_9, %c0_10, %c0_11] : memref<9x4x128xf32, #tpu.memory_space<vmem>>, vector<1x4x128xf32>
    %8 = vector.shape_cast %7 : vector<1x4x128xf32> to vector<4x128xf32>
    %cst_12 = arith.constant dense<0.000000e+00> : vector<288x128xf32>
    %9 = tpu.matmul %6, %8, %cst_12 {dimension_numbers = #tpu.dot_dimension_numbers<[1], [0], [0], [1], [0, 0, 1, 1], [], []>} : vector<288x4xf32>, vector<4x128xf32>, vector<288x128xf32> -> vector<288x128xf32>
    %10 = arith.addf %4, %9 : vector<288x128xf32>
    %c0_13 = arith.constant 0 : index
    %c0_14 = arith.constant 0 : index
    %c2 = arith.constant 2 : index
    %c0_15 = arith.constant 0 : index
    %11 = vector.load %arg2[%c0_13, %c0_14, %c2, %c0_15] : memref<1x1x342x4xf32, #tpu.memory_space<vmem>>, vector<1x1x288x4xf32>
    %12 = vector.shape_cast %11 : vector<1x1x288x4xf32> to vector<288x4xf32>
    %c2_16 = arith.constant 2 : index
    %c0_17 = arith.constant 0 : index
    %c0_18 = arith.constant 0 : index
    %13 = vector.load %arg3[%c2_16, %c0_17, %c0_18] : memref<9x4x128xf32, #tpu.memory_space<vmem>>, vector<1x4x128xf32>
    %14 = vector.shape_cast %13 : vector<1x4x128xf32> to vector<4x128xf32>
    %cst_19 = arith.constant dense<0.000000e+00> : vector<288x128xf32>
    %15 = tpu.matmul %12, %14, %cst_19 {dimension_numbers = #tpu.dot_dimension_numbers<[1], [0], [0], [1], [0, 0, 1, 1], [], []>} : vector<288x4xf32>, vector<4x128xf32>, vector<288x128xf32> -> vector<288x128xf32>
    %16 = arith.addf %10, %15 : vector<288x128xf32>
    %c0_20 = arith.constant 0 : index
    %c0_21 = arith.constant 0 : index
    %c18 = arith.constant 18 : index
    %c0_22 = arith.constant 0 : index
    %17 = vector.load %arg2[%c0_20, %c0_21, %c18, %c0_22] : memref<1x1x342x4xf32, #tpu.memory_space<vmem>>, vector<1x1x288x4xf32>
    %18 = vector.shape_cast %17 : vector<1x1x288x4xf32> to vector<288x4xf32>
    %c3 = arith.constant 3 : index
    %c0_23 = arith.constant 0 : index
    %c0_24 = arith.constant 0 : index
    %19 = vector.load %arg3[%c3, %c0_23, %c0_24] : memref<9x4x128xf32, #tpu.memory_space<vmem>>, vector<1x4x128xf32>
    %20 = vector.shape_cast %19 : vector<1x4x128xf32> to vector<4x128xf32>
    %cst_25 = arith.constant dense<0.000000e+00> : vector<288x128xf32>
    %21 = tpu.matmul %18, %20, %cst_25 {dimension_numbers = #tpu.dot_dimension_numbers<[1], [0], [0], [1], [0, 0, 1, 1], [], []>} : vector<288x4xf32>, vector<4x128xf32>, vector<288x128xf32> -> vector<288x128xf32>
    %22 = arith.addf %16, %21 : vector<288x128xf32>
    %c0_26 = arith.constant 0 : index
    %c0_27 = arith.constant 0 : index
    %c19 = arith.constant 19 : index
    %c0_28 = arith.constant 0 : index
    %23 = vector.load %arg2[%c0_26, %c0_27, %c19, %c0_28] : memref<1x1x342x4xf32, #tpu.memory_space<vmem>>, vector<1x1x288x4xf32>
    %24 = vector.shape_cast %23 : vector<1x1x288x4xf32> to vector<288x4xf32>
    %c4 = arith.constant 4 : index
    %c0_29 = arith.constant 0 : index
    %c0_30 = arith.constant 0 : index
    %25 = vector.load %arg3[%c4, %c0_29, %c0_30] : memref<9x4x128xf32, #tpu.memory_space<vmem>>, vector<1x4x128xf32>
    %26 = vector.shape_cast %25 : vector<1x4x128xf32> to vector<4x128xf32>
    %cst_31 = arith.constant dense<0.000000e+00> : vector<288x128xf32>
    %27 = tpu.matmul %24, %26, %cst_31 {dimension_numbers = #tpu.dot_dimension_numbers<[1], [0], [0], [1], [0, 0, 1, 1], [], []>} : vector<288x4xf32>, vector<4x128xf32>, vector<288x128xf32> -> vector<288x128xf32>
    %28 = arith.addf %22, %27 : vector<288x128xf32>
    %c0_32 = arith.constant 0 : index
    %c0_33 = arith.constant 0 : index
    %c20 = arith.constant 20 : index
    %c0_34 = arith.constant 0 : index
    %29 = vector.load %arg2[%c0_32, %c0_33, %c20, %c0_34] : memref<1x1x342x4xf32, #tpu.memory_space<vmem>>, vector<1x1x288x4xf32>
    %30 = vector.shape_cast %29 : vector<1x1x288x4xf32> to vector<288x4xf32>
    %c5 = arith.constant 5 : index
    %c0_35 = arith.constant 0 : index
    %c0_36 = arith.constant 0 : index
    %31 = vector.load %arg3[%c5, %c0_35, %c0_36] : memref<9x4x128xf32, #tpu.memory_space<vmem>>, vector<1x4x128xf32>
    %32 = vector.shape_cast %31 : vector<1x4x128xf32> to vector<4x128xf32>
    %cst_37 = arith.constant dense<0.000000e+00> : vector<288x128xf32>
    %33 = tpu.matmul %30, %32, %cst_37 {dimension_numbers = #tpu.dot_dimension_numbers<[1], [0], [0], [1], [0, 0, 1, 1], [], []>} : vector<288x4xf32>, vector<4x128xf32>, vector<288x128xf32> -> vector<288x128xf32>
    %34 = arith.addf %28, %33 : vector<288x128xf32>
    %c0_38 = arith.constant 0 : index
    %c0_39 = arith.constant 0 : index
    %c36 = arith.constant 36 : index
    %c0_40 = arith.constant 0 : index
    %35 = vector.load %arg2[%c0_38, %c0_39, %c36, %c0_40] : memref<1x1x342x4xf32, #tpu.memory_space<vmem>>, vector<1x1x288x4xf32>
    %36 = vector.shape_cast %35 : vector<1x1x288x4xf32> to vector<288x4xf32>
    %c6 = arith.constant 6 : index
    %c0_41 = arith.constant 0 : index
    %c0_42 = arith.constant 0 : index
    %37 = vector.load %arg3[%c6, %c0_41, %c0_42] : memref<9x4x128xf32, #tpu.memory_space<vmem>>, vector<1x4x128xf32>
    %38 = vector.shape_cast %37 : vector<1x4x128xf32> to vector<4x128xf32>
    %cst_43 = arith.constant dense<0.000000e+00> : vector<288x128xf32>
    %39 = tpu.matmul %36, %38, %cst_43 {dimension_numbers = #tpu.dot_dimension_numbers<[1], [0], [0], [1], [0, 0, 1, 1], [], []>} : vector<288x4xf32>, vector<4x128xf32>, vector<288x128xf32> -> vector<288x128xf32>
    %40 = arith.addf %34, %39 : vector<288x128xf32>
    %c0_44 = arith.constant 0 : index
    %c0_45 = arith.constant 0 : index
    %c37 = arith.constant 37 : index
    %c0_46 = arith.constant 0 : index
    %41 = vector.load %arg2[%c0_44, %c0_45, %c37, %c0_46] : memref<1x1x342x4xf32, #tpu.memory_space<vmem>>, vector<1x1x288x4xf32>
    %42 = vector.shape_cast %41 : vector<1x1x288x4xf32> to vector<288x4xf32>
    %c7 = arith.constant 7 : index
    %c0_47 = arith.constant 0 : index
    %c0_48 = arith.constant 0 : index
    %43 = vector.load %arg3[%c7, %c0_47, %c0_48] : memref<9x4x128xf32, #tpu.memory_space<vmem>>, vector<1x4x128xf32>
    %44 = vector.shape_cast %43 : vector<1x4x128xf32> to vector<4x128xf32>
    %cst_49 = arith.constant dense<0.000000e+00> : vector<288x128xf32>
    %45 = tpu.matmul %42, %44, %cst_49 {dimension_numbers = #tpu.dot_dimension_numbers<[1], [0], [0], [1], [0, 0, 1, 1], [], []>} : vector<288x4xf32>, vector<4x128xf32>, vector<288x128xf32> -> vector<288x128xf32>
    %46 = arith.addf %40, %45 : vector<288x128xf32>
    %c0_50 = arith.constant 0 : index
    %c0_51 = arith.constant 0 : index
    %c38 = arith.constant 38 : index
    %c0_52 = arith.constant 0 : index
    %47 = vector.load %arg2[%c0_50, %c0_51, %c38, %c0_52] : memref<1x1x342x4xf32, #tpu.memory_space<vmem>>, vector<1x1x288x4xf32>
    %48 = vector.shape_cast %47 : vector<1x1x288x4xf32> to vector<288x4xf32>
    %c8 = arith.constant 8 : index
    %c0_53 = arith.constant 0 : index
    %c0_54 = arith.constant 0 : index
    %49 = vector.load %arg3[%c8, %c0_53, %c0_54] : memref<9x4x128xf32, #tpu.memory_space<vmem>>, vector<1x4x128xf32>
    %50 = vector.shape_cast %49 : vector<1x4x128xf32> to vector<4x128xf32>
    %cst_55 = arith.constant dense<0.000000e+00> : vector<288x128xf32>
    %51 = tpu.matmul %48, %50, %cst_55 {dimension_numbers = #tpu.dot_dimension_numbers<[1], [0], [0], [1], [0, 0, 1, 1], [], []>} : vector<288x4xf32>, vector<4x128xf32>, vector<288x128xf32> -> vector<288x128xf32>
    %52 = arith.addf %46, %51 : vector<288x128xf32>
    %53 = tpu.iota {dimensions = array<i32: 0>} : vector<288x1xi32>
    %c18_i32 = arith.constant 18 : i32
    %c0_i32 = arith.constant 0 : i32
    %54 = arith.cmpi eq, %c18_i32, %c0_i32 : i32
    %c1_i32 = arith.constant 1 : i32
    %55 = arith.select %54, %c1_i32, %c18_i32 : i32
    %56 = vector.broadcast %55 : i32 to vector<288x1xi32>
    %57 = arith.remsi %53, %56 : vector<288x1xi32>
    %c0_i32_56 = arith.constant 0 : i32
    %58 = vector.broadcast %c0_i32_56 : i32 to vector<288x1xi32>
    %59 = arith.cmpi ne, %57, %58 : vector<288x1xi32>
    %c0_i32_57 = arith.constant 0 : i32
    %60 = vector.broadcast %c0_i32_57 : i32 to vector<288x1xi32>
    %61 = arith.cmpi slt, %57, %60 : vector<288x1xi32>
    %c0_i32_58 = arith.constant 0 : i32
    %62 = arith.cmpi slt, %55, %c0_i32_58 : i32
    %63 = vector.broadcast %62 : i1 to vector<288x1xi1>
    %64 = vector.broadcast %63 : vector<288x1xi1> to vector<288x1xi1>
    %65 = arith.xori %61, %64 : vector<288x1xi1>
    %66 = arith.andi %65, %59 : vector<288x1xi1>
    %67 = vector.broadcast %55 : i32 to vector<288x1xi32>
    %68 = arith.addi %57, %67 : vector<288x1xi32>
    %69 = arith.select %66, %68, %57 : vector<288x1xi1>, vector<288x1xi32>
    %c16_i32 = arith.constant 16 : i32
    %70 = vector.broadcast %c16_i32 : i32 to vector<288x1xi32>
    %71 = arith.cmpi slt, %69, %70 : vector<288x1xi32>
    %72 = arith.extui %71 : vector<288x1xi1> to vector<288x1xi32>
    %73 = arith.sitofp %72 : vector<288x1xi32> to vector<288x1xf32>
    %74 = vector.broadcast %73 : vector<288x1xf32> to vector<288x128xf32>
    %75 = arith.mulf %52, %74 : vector<288x128xf32>
    %cst_59 = arith.constant dense<0.000000e+00> : vector<128xf32>
    %76 = vector.multi_reduction <add>, %75, %cst_59 [0] : vector<288x128xf32> to vector<128xf32>
    %77 = vector.shape_cast %76 : vector<128xf32> to vector<1x128xf32>
    %c0_60 = arith.constant 0 : index
    %c0_61 = arith.constant 0 : index
    %c0_62 = arith.constant 0 : index
    %c0_63 = arith.constant 0 : index
    %78 = vector.load %arg4[%c0_60, %c0_61, %c0_62, %c0_63] : memref<1x1x1x128xf32, #tpu.memory_space<vmem>>, vector<1x1x1x128xf32>
    %79 = vector.shape_cast %78 : vector<1x1x1x128xf32> to vector<1x128xf32>
    %80 = vector.shape_cast %77 : vector<1x128xf32> to vector<1x1x1x128xf32>
    tpu.vector_store %arg4[%c0_60, %c0_61, %c0_62, %c0_63], %80 {strides = array<i32>} : memref<1x1x1x128xf32, #tpu.memory_space<vmem>>, vector<1x1x1x128xf32>,
    %81 = arith.mulf %75, %52 : vector<288x128xf32>
    %cst_64 = arith.constant dense<0.000000e+00> : vector<128xf32>
    %82 = vector.multi_reduction <add>, %81, %cst_64 [0] : vector<288x128xf32> to vector<128xf32>
    %83 = vector.shape_cast %82 : vector<128xf32> to vector<1x128xf32>
    %c0_65 = arith.constant 0 : index
    %c0_66 = arith.constant 0 : index
    %c0_67 = arith.constant 0 : index
    %c0_68 = arith.constant 0 : index
    %84 = vector.load %arg5[%c0_65, %c0_66, %c0_67, %c0_68] : memref<1x1x1x128xf32, #tpu.memory_space<vmem>>, vector<1x1x1x128xf32>
    %85 = vector.shape_cast %84 : vector<1x1x1x128xf32> to vector<1x128xf32>
    %86 = vector.shape_cast %83 : vector<1x128xf32> to vector<1x1x1x128xf32>
    tpu.vector_store %arg5[%c0_65, %c0_66, %c0_67, %c0_68], %86 {strides = array<i32>} : memref<1x1x1x128xf32, #tpu.memory_space<vmem>>, vector<1x1x1x128xf32>,
    return
  }
  func.func @transform_0(%arg0: i32, %arg1: i32) -> (i32, i32, i32, i32) {
    %c0_i32 = arith.constant 0 : i32
    %c0_i32_0 = arith.constant 0 : i32
    %c0_i32_1 = arith.constant 0 : i32
    return %arg0, %arg1, %c0_i32, %c0_i32_0 : i32, i32, i32, i32
  }
  func.func @transform_1(%arg0: i32, %arg1: i32) -> (i32, i32, i32) {
    %c0_i32 = arith.constant 0 : i32
    %c0_i32_0 = arith.constant 0 : i32
    %c0_i32_1 = arith.constant 0 : i32
    %c0_i32_2 = arith.constant 0 : i32
    return %c0_i32, %c0_i32_0, %c0_i32_1 : i32, i32, i32
  }
  func.func @transform_2(%arg0: i32, %arg1: i32) -> (i32, i32, i32, i32) {
    %c0_i32 = arith.constant 0 : i32
    %c0_i32_0 = arith.constant 0 : i32
    %c0_i32_1 = arith.constant 0 : i32
    return %arg0, %arg1, %c0_i32, %c0_i32_0 : i32, i32, i32, i32
  }
  func.func @transform_3(%arg0: i32, %arg1: i32) -> (i32, i32, i32, i32) {
    %c0_i32 = arith.constant 0 : i32
    %c0_i32_0 = arith.constant 0 : i32
    %c0_i32_1 = arith.constant 0 : i32
    return %arg0, %arg1, %c0_i32, %c0_i32_0 : i32, i32, i32, i32
  }
}

</mosaic_0001>

<llo_original>
// kernel: tpu_custom_call.1
$region0: #{tpu_custom_call.1}
  #allocation0 [shape = 'u32[]', space=smem, size = 0x4, offset = 0x4, fixed_abs, tag = 'smem constant byte address 0x4 - core index']
  #allocation1 [shape = 'u32[72,128]{1,0:T(1,128)}', space=vmem, size = 0x9000, scoped, tag = 'internal scratch']
  %s0 = inlined_call_operand.vmem [shape: f32[2,1,342,4], index: 0, kind: input, shape index: {}]
  %s1 = inlined_call_operand.vmem [shape: f32[9,4,128], index: 1, kind: input, shape index: {}]
  %s2 = inlined_call_operand.hbm [shape: f32[2,1,1,128], index: 2, kind: output, shape index: {0}]
  %s3 = inlined_call_operand.hbm [shape: f32[2,1,1,128], index: 3, kind: output, shape index: {1}]
  %4 = xla_tuple %s2, %s3
  %s5 = sld [smem:[#allocation0]]
  $region49: #{tpu_custom_call.1} parent=0
    _
  %s7 = ssub.s32 1, %s5
  %s8 = scalar_select 0, %s7, %s5
  $region1: #{tpu_custom_call.1} parent=0
    #allocation2 [shape = 'u8[1024]{0}', space=vmem, size = 0x400, scoped, tag = 'output window, operand 0']
    #allocation3 [shape = 's32[2]{0}', space=sflag, size = 0x8, scoped, tag = 'scoped memory for tpu_custom_call.1']
    #allocation4 [shape = 'u8[1024]{0}', space=vmem, size = 0x400, scoped, tag = 'output window, operand 1']
    #allocation5 [shape = 's32[2]{0}', space=sflag, size = 0x8, scoped, tag = 'scoped memory for tpu_custom_call.1']
    %9 = vsyncpa [#allocation3], 0
    %s10 = scalar_lea.sflag [#allocation3], 1
    %11 = vsyncpa %s10, 0
    %12 = vsyncpa [#allocation5], 0
    %s13 = scalar_lea.sflag [#allocation5], 1
    %14 = vsyncpa %s13, 0
    loop: start=0, step=1, limit=4
    $region2: #{tpu_custom_call.1} parent=1 // loop_pre_header
      _
    $region3: #{tpu_custom_call.1} parent=1 // loop_header
      %s16 = sphi 0, %s20
      %p17 = scmp.ge.s32.totalorder %s16, 4
      %s23 = sphi 0, %s35
      %s24 = sphi 0, %s31
      %s25 = sphi 0, %s23
      %s26 = sphi 0, %s24
      %s27 = sphi 0, %s25
      %s28 = sphi 0, %s26
      %s40 = sphi 0, %s42
      %s43 = sphi 0, %s40
      %s44 = sphi 0, %s43
      %s60 = sphi 0, %s44
      %s64 = sphi 0, %s64
      %s66 = sphi 0, %s64
      %s67 = sphi 0, %s66
      %s81 = sphi 0, %s67
      %s89 = sphi 0, %s91
      %s92 = sphi 0, %s89
      %s93 = sphi 0, %s92
      %s109 = sphi 0, %s93
      %s117 = sphi 0, %s119
      %s120 = sphi 0, %s117
      %s121 = sphi 0, %s120
      %s137 = sphi 0, %s121
    $region4: #{tpu_custom_call.1} parent=1 // loop_header_branch
      %19 = sbr.rel (%p17) target = $region8
    $region5: #{tpu_custom_call.1} parent=1 // loop_body
      %s21 = ssub.s32 %s16, 1
      %s22 = ssub.s32 %s16, 2
      %s29 = sadd.s32 1, %s24
      %p30 = scmp.ge.s32.totalorder %s29, 1
      %s31 = scalar_select %p30, 0, %s29
      %s32 = sadd.s32 1, %s23
      %s33 = scalar_select %p30, %s32, %s23
      %p34 = scmp.ge.s32.totalorder %s33, 2
      %s35 = scalar_select %p34, 0, %s33
      %s36 = ssub.s32 %s23, %s35
      %s37 = ssub.s32 %s24, %s31
      %s38 = sor.u32 %s36, %s37
      %p39 = scmp.eq.s32.totalorder %s38, 0
      %s41 = sadd.s32 %s40, 1
      %s42 = scalar_select %p39, %s40, %s41
      %p45 = pneg %p39
      %p46 = scmp.eq.s32.totalorder %s16, 1
      %p47 = por %p45, %p46
      %p48 = scmp.ne.s32.totalorder %s40, %s43
      %p49 = scmp.eq.s32.totalorder %s16, 0
      %p50 = por %p48, %p49
      %p51 = scmp.ne.s32.totalorder %s40, %s43
      %p52 = scmp.eq.s32.totalorder %s21, 1
      %p53 = por %p51, %p52
      %p54 = scmp.ne.s32.totalorder %s43, %s44
      %p55 = scmp.eq.s32.totalorder %s21, 0
      %p56 = por %p54, %p55
      %p57 = scmp.ne.s32.totalorder %s43, %s44
      %p58 = scmp.eq.s32.totalorder %s22, 1
      %p59 = por %p57, %p58
      %p61 = scmp.ne.s32.totalorder %s44, %s60
      %p62 = scmp.eq.s32.totalorder %s22, 0
      %p63 = por %p61, %p62
      %s65 = sadd.s32 %s64, 1
      %p68 = scmp.eq.s32.totalorder %s16, 1
      %p69 = scmp.ne.s32.totalorder %s64, %s66
      %p70 = scmp.eq.s32.totalorder %s16, 0
      %p71 = por %p69, %p70
      %p72 = scmp.ne.s32.totalorder %s64, %s66
      %p73 = scmp.eq.s32.totalorder %s21, 1
      %p74 = por %p72, %p73
      %p75 = scmp.ne.s32.totalorder %s66, %s67
      %p76 = scmp.eq.s32.totalorder %s21, 0
      %p77 = por %p75, %p76
      %p78 = scmp.ne.s32.totalorder %s66, %s67
      %p79 = scmp.eq.s32.totalorder %s22, 1
      %p80 = por %p78, %p79
      %p82 = scmp.ne.s32.totalorder %s67, %s81
      %p83 = scmp.eq.s32.totalorder %s22, 0
      %p84 = por %p82, %p83
      %s85 = ssub.s32 %s23, %s35
      %s86 = ssub.s32 %s24, %s31
      %s87 = sor.u32 %s85, %s86
      %p88 = scmp.eq.s32.totalorder %s87, 0
      %s90 = sadd.s32 %s89, 1
      %s91 = scalar_select %p88, %s89, %s90
      %p94 = pneg %p88
      %p95 = scmp.eq.s32.totalorder %s16, 1
      %p96 = por %p94, %p95
      %p97 = scmp.ne.s32.totalorder %s89, %s92
      %p98 = scmp.eq.s32.totalorder %s16, 0
      %p99 = por %p97, %p98
      %p100 = scmp.ne.s32.totalorder %s89, %s92
      %p101 = scmp.eq.s32.totalorder %s21, 1
      %p102 = por %p100, %p101
      %p103 = scmp.ne.s32.totalorder %s92, %s93
      %p104 = scmp.eq.s32.totalorder %s21, 0
      %p105 = por %p103, %p104
      %p106 = scmp.ne.s32.totalorder %s92, %s93
      %p107 = scmp.eq.s32.totalorder %s22, 1
      %p108 = por %p106, %p107
      %p110 = scmp.ne.s32.totalorder %s93, %s109
      %p111 = scmp.eq.s32.totalorder %s22, 0
      %p112 = por %p110, %p111
      %s113 = ssub.s32 %s23, %s35
      %s114 = ssub.s32 %s24, %s31
      %s115 = sor.u32 %s113, %s114
      %p116 = scmp.eq.s32.totalorder %s115, 0
      %s118 = sadd.s32 %s117, 1
      %s119 = scalar_select %p116, %s117, %s118
      %p122 = pneg %p116
      %p123 = scmp.eq.s32.totalorder %s16, 1
      %p124 = por %p122, %p123
      %p125 = scmp.ne.s32.totalorder %s117, %s120
      %p126 = scmp.eq.s32.totalorder %s16, 0
      %p127 = por %p125, %p126
      %p128 = scmp.ne.s32.totalorder %s117, %s120
      %p129 = scmp.eq.s32.totalorder %s21, 1
      %p130 = por %p128, %p129
      %p131 = scmp.ne.s32.totalorder %s120, %s121
      %p132 = scmp.eq.s32.totalorder %s21, 0
      %p133 = por %p131, %p132
      %p134 = scmp.ne.s32.totalorder %s120, %s121
      %p135 = scmp.eq.s32.totalorder %s22, 1
      %p136 = por %p134, %p135
      %p138 = scmp.ne.s32.totalorder %s121, %s137
      %p139 = scmp.eq.s32.totalorder %s22, 0
      %p140 = por %p138, %p139
      %p141 = scmp.le.s32.totalorder 1, %s16
      %p142 = scmp.lt.s32.totalorder %s16, 3
      %p143 = pnand %p141, %p142
      %p144 = pneg %p143
      // Predicated region
      $region9: #{tpu_custom_call.1} parent=5 // pred_check
        _
      $region10: #{tpu_custom_call.1} parent=5 // pred_check_branch
        %146 = sbr.rel (%p143) target = $region12
      $region11: #{tpu_custom_call.1} parent=5 // pred_region
        %s147 = ssub.s32 %s16, 1
        // Predicated region
        $region13: #{tpu_custom_call.1} parent=11 // pred_check
          %p148 = pneg %p77
        $region14: #{tpu_custom_call.1} parent=11 // pred_check_branch
          %150 = sbr.rel (%p148) target = $region16
        $region15: #{tpu_custom_call.1} parent=11 // pred_region
          _
        $region16: #{tpu_custom_call.1} parent=11 // pred_fallthru
          _
      $region12: #{tpu_custom_call.1} parent=5 // pred_fallthru
        _
      %p151 = scmp.lt.s32.totalorder %s16, 2
      // Predicated region
      $region17: #{tpu_custom_call.1} parent=5 // pred_check
        %p152 = pneg %p151
      $region18: #{tpu_custom_call.1} parent=5 // pred_check_branch
        %154 = sbr.rel (%p152) target = $region20
      $region19: #{tpu_custom_call.1} parent=5 // pred_region
        // Predicated region
        $region21: #{tpu_custom_call.1} parent=19 // pred_check
          %p155 = pneg %p50
        $region22: #{tpu_custom_call.1} parent=19 // pred_check_branch
          %157 = sbr.rel (%p155) target = $region24
        $region23: #{tpu_custom_call.1} parent=19 // pred_region
          %p158 = scmp.lt.s32.totalorder %s23, 1
          %s159 = scalar_select %p158, %s23, 1
          %p160 = scmp.lt.s32.totalorder %s24, 0
          %s161 = scalar_select %p160, %s24, 0
          %s162 = smul.addr %s161, 43
          %s163 = smul.addr %s159, 43
          %s164 = sadd.s32 %s162, %s163
          %s165 = smul.addr %s164, 8
          %s166 = scalar_lea.vmem %s0, %s165
        $region24: #{tpu_custom_call.1} parent=19 // pred_fallthru
          _
      $region20: #{tpu_custom_call.1} parent=5 // pred_fallthru
        _
      %p167 = scmp.le.s32.totalorder 1, %s16
      %p168 = scmp.lt.s32.totalorder %s16, 3
      %p169 = pnand %p167, %p168
      %p170 = pneg %p169
      // Predicated region
      $region25: #{tpu_custom_call.1} parent=5 // pred_check
        _
      $region26: #{tpu_custom_call.1} parent=5 // pred_check_branch
        %172 = sbr.rel (%p169) target = $region28
      $region27: #{tpu_custom_call.1} parent=5 // pred_region
        %s173 = ssub.s32 %s16, 1
        %p174 = scmp.lt.s32.totalorder %s25, 1
        %s175 = scalar_select %p174, %s25, 1
        %p176 = scmp.lt.s32.totalorder %s26, 0
        %s177 = scalar_select %p176, %s26, 0
        %s178 = smul.addr %s177, 43
        %s179 = smul.addr %s175, 43
        %s180 = sadd.s32 %s178, %s179
        %s181 = smul.addr %s180, 8
        %s182 = scalar_lea.vmem %s0, %s181
        %p183 = pneg %p56
        %p184 = pneg %p53
        %p185 = pneg %p77
        %p186 = pneg %p74
        %p187 = pneg %p105
        %p188 = pneg %p102
        %s189 = sand.u32 %s92, 1
        %s190 = scalar_lea.sflag [#allocation3], %s189
        %s191 = sand.u32 %s92, 1
        %s192 = scalar_lea.vmem [#allocation2], %s191
        %p193 = pneg %p133
        %p194 = pneg %p130
        %s195 = sand.u32 %s120, 1
        %s196 = scalar_lea.sflag [#allocation5], %s195
        %s197 = sand.u32 %s120, 1
        %s198 = scalar_lea.vmem [#allocation4], %s197
        %p199 = scmp.lt.s32.totalorder %s25, 1
        %s200 = scalar_select %p199, %s25, 1
        %p201 = scmp.lt.s32.totalorder %s26, 0
        %s202 = scalar_select %p201, %s26, 0
        %s203 = smul.addr %s202, 43
        %s204 = smul.addr %s200, 43
        %s205 = sadd.s32 %s203, %s204
        %s206 = smul.addr %s205, 8
        %s207 = scalar_lea.vmem %s0, %s206
        %v208 = vld [vmem:[%s207] sm:$0xff]
        %v209 = vld [vmem:[%s207 + $0x8] sm:$0xff]
        %v210 = vld [vmem:[%s207 + $0x10] sm:$0xff]
        %v211 = vld [vmem:[%s207 + $0x18] sm:$0xff]
        %v212 = vld [vmem:[%s207 + $0x20] sm:$0xff]
        %v213 = vld [vmem:[%s207 + $0x28] sm:$0xff]
        %v214 = vld [vmem:[%s207 + $0x30] sm:$0xff]
        %v215 = vld [vmem:[%s207 + $0x38] sm:$0xff]
        %v216 = vld [vmem:[%s207 + $0x40] sm:$0xff]
        %v217 = vld [vmem:[%s207 + $0x48] sm:$0xff]
        %v218 = vld [vmem:[%s207 + $0x50] sm:$0xff]
        %v219 = vld [vmem:[%s207 + $0x58] sm:$0xff]
        %v220 = vld [vmem:[%s207 + $0x60] sm:$0xff]
        %v221 = vld [vmem:[%s207 + $0x68] sm:$0xff]
        %v222 = vld [vmem:[%s207 + $0x70] sm:$0xff]
        %v223 = vld [vmem:[%s207 + $0x78] sm:$0xff]
        %v224 = vld [vmem:[%s207 + $0x80] sm:$0xff]
        %v225 = vld [vmem:[%s207 + $0x88] sm:$0xff]
        %v226 = vld [vmem:[%s207 + $0x90] sm:$0xff]
        %v227 = vld [vmem:[%s207 + $0x98] sm:$0xff]
        %v228 = vld [vmem:[%s207 + $0xa0] sm:$0xff]
        %v229 = vld [vmem:[%s207 + $0xa8] sm:$0xff]
        %v230 = vld [vmem:[%s207 + $0xb0] sm:$0xff]
        %v231 = vld [vmem:[%s207 + $0xb8] sm:$0xff]
        %v232 = vld [vmem:[%s207 + $0xc0] sm:$0xff]
        %v233 = vld [vmem:[%s207 + $0xc8] sm:$0xff]
        %v234 = vld [vmem:[%s207 + $0xd0] sm:$0xff]
        %v235 = vld [vmem:[%s207 + $0xd8] sm:$0xff]
        %v236 = vld [vmem:[%s207 + $0xe0] sm:$0xff]
        %v237 = vld [vmem:[%s207 + $0xe8] sm:$0xff]
        %v238 = vld [vmem:[%s207 + $0xf0] sm:$0xff]
        %v239 = vld [vmem:[%s207 + $0xf8] sm:$0xff]
        %v240 = vld [vmem:[%s207 + $0x100] sm:$0xff]
        %v241 = vld [vmem:[%s207 + $0x108] sm:$0xff]
        %v242 = vld [vmem:[%s207 + $0x110] sm:$0xff]
        %v243 = vld [vmem:[%s207 + $0x118] sm:$0xff]
        %v244 = vld [vmem:[%s1] sm:$0xf]
        %v245 = vld [vmem:[%s207 + $0x1] sm:$0xff]
        %v246 = vld [vmem:[%s207 + $0x9] sm:$0xff]
        %v247 = vld [vmem:[%s207 + $0x11] sm:$0xff]
        %v248 = vld [vmem:[%s207 + $0x19] sm:$0xff]
        %v249 = vld [vmem:[%s207 + $0x21] sm:$0xff]
        %v250 = vld [vmem:[%s207 + $0x29] sm:$0xff]
        %v251 = vld [vmem:[%s207 + $0x31] sm:$0xff]
        %v252 = vld [vmem:[%s207 + $0x39] sm:$0xff]
        %v253 = vld [vmem:[%s207 + $0x41] sm:$0xff]
        %v254 = vld [vmem:[%s207 + $0x49] sm:$0xff]
        %v255 = vld [vmem:[%s207 + $0x51] sm:$0xff]
        %v256 = vld [vmem:[%s207 + $0x59] sm:$0xff]
        %v257 = vld [vmem:[%s207 + $0x61] sm:$0xff]
        %v258 = vld [vmem:[%s207 + $0x69] sm:$0xff]
        %v259 = vld [vmem:[%s207 + $0x71] sm:$0xff]
        %v260 = vld [vmem:[%s207 + $0x79] sm:$0xff]
        %v261 = vld [vmem:[%s207 + $0x81] sm:$0xff]
        %v262 = vld [vmem:[%s207 + $0x89] sm:$0xff]
        %v263 = vld [vmem:[%s207 + $0x91] sm:$0xff]
        %v264 = vld [vmem:[%s207 + $0x99] sm:$0xff]
        %v265 = vld [vmem:[%s207 + $0xa1] sm:$0xff]
        %v266 = vld [vmem:[%s207 + $0xa9] sm:$0xff]
        %v267 = vld [vmem:[%s207 + $0xb1] sm:$0xff]
        %v268 = vld [vmem:[%s207 + $0xb9] sm:$0xff]
        %v269 = vld [vmem:[%s207 + $0xc1] sm:$0xff]
        %v270 = vld [vmem:[%s207 + $0xc9] sm:$0xff]
        %v271 = vld [vmem:[%s207 + $0xd1] sm:$0xff]
        %v272 = vld [vmem:[%s207 + $0xd9] sm:$0xff]
        %v273 = vld [vmem:[%s207 + $0xe1] sm:$0xff]
        %v274 = vld [vmem:[%s207 + $0xe9] sm:$0xff]
        %v275 = vld [vmem:[%s207 + $0xf1] sm:$0xff]
        %v276 = vld [vmem:[%s207 + $0xf9] sm:$0xff]
        %v277 = vld [vmem:[%s207 + $0x101] sm:$0xff]
        %v278 = vld [vmem:[%s207 + $0x109] sm:$0xff]
        %v279 = vld [vmem:[%s207 + $0x111] sm:$0xff]
        %v280 = vld [vmem:[%s207 + $0x119] sm:$0xff]
        %s281 = scalar_lea.vmem %s1, 4
        %v282 = vld [vmem:[%s281] sm:$0xf]
        %vm283 = vcmask 31744
        %v285 = vsel %vm283, %v245, 0
        %v288 = vsel %vm283, %v246, 0
        %v291 = vsel %vm283, %v247, 0
        %v294 = vsel %vm283, %v248, 0
        %v297 = vsel %vm283, %v249, 0
        %v300 = vsel %vm283, %v250, 0
        %v303 = vsel %vm283, %v251, 0
        %v306 = vsel %vm283, %v252, 0
        %v309 = vsel %vm283, %v253, 0
        %v312 = vsel %vm283, %v254, 0
        %v315 = vsel %vm283, %v255, 0
        %v318 = vsel %vm283, %v256, 0
        %v321 = vsel %vm283, %v257, 0
        %v324 = vsel %vm283, %v258, 0
        %v327 = vsel %vm283, %v259, 0
        %v330 = vsel %vm283, %v260, 0
        %v333 = vsel %vm283, %v261, 0
        %v336 = vsel %vm283, %v262, 0
        %v339 = vsel %vm283, %v263, 0
        %v342 = vsel %vm283, %v264, 0
        %v345 = vsel %vm283, %v265, 0
        %v348 = vsel %vm283, %v266, 0
        %v351 = vsel %vm283, %v267, 0
        %v354 = vsel %vm283, %v268, 0
        %v357 = vsel %vm283, %v269, 0
        %v360 = vsel %vm283, %v270, 0
        %v363 = vsel %vm283, %v271, 0
        %v366 = vsel %vm283, %v272, 0
        %v369 = vsel %vm283, %v273, 0
        %v372 = vsel %vm283, %v274, 0
        %v375 = vsel %vm283, %v275, 0
        %v378 = vsel %vm283, %v276, 0
        %v381 = vsel %vm283, %v277, 0
        %v384 = vsel %vm283, %v278, 0
        %v387 = vsel %vm283, %v279, 0
        %v390 = vsel %vm283, %v280, 0
        %vm392 = vcmask 1043456
        %v394 = vsel %vm392, %v282, 0
        %396 = vmatpush.msra.mxu0 0.0
        %397 = vmatpush.msra.mxu0 0.0
        %398 = vmatpush.msra.mxu0 0.0
        %399 = vmatpush.msra.mxu0 0.0
        %400 = vmatpush.msra.mxu0 0.0
        %401 = vmatpush.msra.mxu0 0.0
        %402 = vmatpush.msra.mxu0 0.0
        %403 = vmatpush.msra.mxu0 0.0
        %404 = vmatpush.msra.mxu0 0.0
        %405 = vmatpush.msra.mxu0 0.0
        %406 = vmatpush.msra.mxu0 0.0
        %407 = vmatpush.msra.mxu0 0.0
        %408 = vmatpush.msra.mxu0 0.0
        %409 = vmatpush.msra.mxu0 0.0
        %410 = vmatpush.msra.mxu0 0.0
        %411 = vmatpush.msra.mxu0 %v394
        %412 = vmatmul.f32.gmra.mxu0 %v285
        %v413 = vpop.f32.mrf.mxu0
        %v414 = vadd.f32 0.0, %v413
        %415 = vmatmul.f32.gmra.mxu0 %v288
        %v416 = vpop.f32.mrf.mxu0
        %v417 = vadd.f32 0.0, %v416
        %418 = vmatmul.f32.gmra.mxu0 %v291
        %v419 = vpop.f32.mrf.mxu0
        %v420 = vadd.f32 0.0, %v419
        %421 = vmatmul.f32.gmra.mxu0 %v294
        %v422 = vpop.f32.mrf.mxu0
        %v423 = vadd.f32 0.0, %v422
        %424 = vmatmul.f32.gmra.mxu0 %v297
        %v425 = vpop.f32.mrf.mxu0
        %v426 = vadd.f32 0.0, %v425
        %427 = vmatmul.f32.gmra.mxu0 %v300
        %v428 = vpop.f32.mrf.mxu0
        %v429 = vadd.f32 0.0, %v428
        %430 = vmatmul.f32.gmra.mxu0 %v303
        %v431 = vpop.f32.mrf.mxu0
        %v432 = vadd.f32 0.0, %v431
        %433 = vmatmul.f32.gmra.mxu0 %v306
        %v434 = vpop.f32.mrf.mxu0
        %v435 = vadd.f32 0.0, %v434
        %436 = vmatmul.f32.gmra.mxu0 %v309
        %v437 = vpop.f32.mrf.mxu0
        %v438 = vadd.f32 0.0, %v437
        %439 = vmatmul.f32.gmra.mxu0 %v312
        %v440 = vpop.f32.mrf.mxu0
        %v441 = vadd.f32 0.0, %v440
        %442 = vmatmul.f32.gmra.mxu0 %v315
        %v443 = vpop.f32.mrf.mxu0
        %v444 = vadd.f32 0.0, %v443
        %445 = vmatmul.f32.gmra.mxu0 %v318
        %v446 = vpop.f32.mrf.mxu0
        %v447 = vadd.f32 0.0, %v446
        %448 = vmatmul.f32.gmra.mxu0 %v321
        %v449 = vpop.f32.mrf.mxu0
        %v450 = vadd.f32 0.0, %v449
        %451 = vmatmul.f32.gmra.mxu0 %v324
        %v452 = vpop.f32.mrf.mxu0
        %v453 = vadd.f32 0.0, %v452
        %454 = vmatmul.f32.gmra.mxu0 %v327
        %v455 = vpop.f32.mrf.mxu0
        %v456 = vadd.f32 0.0, %v455
        %457 = vmatmul.f32.gmra.mxu0 %v330
        %v458 = vpop.f32.mrf.mxu0
        %v459 = vadd.f32 0.0, %v458
        %460 = vmatmul.f32.gmra.mxu0 %v333
        %v461 = vpop.f32.mrf.mxu0
        %v462 = vadd.f32 0.0, %v461
        %463 = vmatmul.f32.gmra.mxu0 %v336
        %v464 = vpop.f32.mrf.mxu0
        %v465 = vadd.f32 0.0, %v464
        %466 = vmatmul.f32.gmra.mxu0 %v339
        %v467 = vpop.f32.mrf.mxu0
        %v468 = vadd.f32 0.0, %v467
        %469 = vmatmul.f32.gmra.mxu0 %v342
        %v470 = vpop.f32.mrf.mxu0
        %v471 = vadd.f32 0.0, %v470
        %472 = vmatmul.f32.gmra.mxu0 %v345
        %v473 = vpop.f32.mrf.mxu0
        %v474 = vadd.f32 0.0, %v473
        %475 = vmatmul.f32.gmra.mxu0 %v348
        %v476 = vpop.f32.mrf.mxu0
        %v477 = vadd.f32 0.0, %v476
        %478 = vmatmul.f32.gmra.mxu0 %v351
        %v479 = vpop.f32.mrf.mxu0
        %v480 = vadd.f32 0.0, %v479
        %481 = vmatmul.f32.gmra.mxu0 %v354
        %v482 = vpop.f32.mrf.mxu0
        %v483 = vadd.f32 0.0, %v482
        %484 = vmatmul.f32.gmra.mxu0 %v357
        %v485 = vpop.f32.mrf.mxu0
        %v486 = vadd.f32 0.0, %v485
        %487 = vmatmul.f32.gmra.mxu0 %v360
        %v488 = vpop.f32.mrf.mxu0
        %v489 = vadd.f32 0.0, %v488
        %490 = vmatmul.f32.gmra.mxu0 %v363
        %v491 = vpop.f32.mrf.mxu0
        %v492 = vadd.f32 0.0, %v491
        %493 = vmatmul.f32.gmra.mxu0 %v366
        %v494 = vpop.f32.mrf.mxu0
        %v495 = vadd.f32 0.0, %v494
        %496 = vmatmul.f32.gmra.mxu0 %v369
        %v497 = vpop.f32.mrf.mxu0
        %v498 = vadd.f32 0.0, %v497
        %499 = vmatmul.f32.gmra.mxu0 %v372
        %v500 = vpop.f32.mrf.mxu0
        %v501 = vadd.f32 0.0, %v500
        %502 = vmatmul.f32.gmra.mxu0 %v375
        %v503 = vpop.f32.mrf.mxu0
        %v504 = vadd.f32 0.0, %v503
        %505 = vmatmul.f32.gmra.mxu0 %v378
        %v506 = vpop.f32.mrf.mxu0
        %v507 = vadd.f32 0.0, %v506
        %508 = vmatmul.f32.gmra.mxu0 %v381
        %v509 = vpop.f32.mrf.mxu0
        %v510 = vadd.f32 0.0, %v509
        %511 = vmatmul.f32.gmra.mxu0 %v384
        %v512 = vpop.f32.mrf.mxu0
        %v513 = vadd.f32 0.0, %v512
        %514 = vmatmul.f32.gmra.mxu0 %v387
        %v515 = vpop.f32.mrf.mxu0
        %v516 = vadd.f32 0.0, %v515
        %517 = vmatmul.f32.gmra.mxu0 %v390
        %v518 = vpop.f32.mrf.mxu0
        %v519 = vadd.f32 0.0, %v518
        %520 = vdwg.mxu0
        %v522 = vsel %vm283, %v208, 0
        %v525 = vsel %vm283, %v209, 0
        %v528 = vsel %vm283, %v210, 0
        %v531 = vsel %vm283, %v211, 0
        %v534 = vsel %vm283, %v212, 0
        %v537 = vsel %vm283, %v213, 0
        %v540 = vsel %vm283, %v214, 0
        %v543 = vsel %vm283, %v215, 0
        %v546 = vsel %vm283, %v216, 0
        %v549 = vsel %vm283, %v217, 0
        %v552 = vsel %vm283, %v218, 0
        %v555 = vsel %vm283, %v219, 0
        %v558 = vsel %vm283, %v220, 0
        %v561 = vsel %vm283, %v221, 0
        %v564 = vsel %vm283, %v222, 0
        %v567 = vsel %vm283, %v223, 0
        %v570 = vsel %vm283, %v224, 0
        %v573 = vsel %vm283, %v225, 0
        %v576 = vsel %vm283, %v226, 0
        %v579 = vsel %vm283, %v227, 0
        %v582 = vsel %vm283, %v228, 0
        %v585 = vsel %vm283, %v229, 0
        %v588 = vsel %vm283, %v230, 0
        %v591 = vsel %vm283, %v231, 0
        %v594 = vsel %vm283, %v232, 0
        %v597 = vsel %vm283, %v233, 0
        %v600 = vsel %vm283, %v234, 0
        %v603 = vsel %vm283, %v235, 0
        %v606 = vsel %vm283, %v236, 0
        %v609 = vsel %vm283, %v237, 0
        %v612 = vsel %vm283, %v238, 0
        %v615 = vsel %vm283, %v239, 0
        %v618 = vsel %vm283, %v240, 0
        %v621 = vsel %vm283, %v241, 0
        %v624 = vsel %vm283, %v242, 0
        %v627 = vsel %vm283, %v243, 0
        %v630 = vsel %vm392, %v244, 0
        %632 = vmatpush.msra.mxu0 0.0
        %633 = vmatpush.msra.mxu0 0.0
        %634 = vmatpush.msra.mxu0 0.0
        %635 = vmatpush.msra.mxu0 0.0
        %636 = vmatpush.msra.mxu0 0.0
        %637 = vmatpush.msra.mxu0 0.0
        %638 = vmatpush.msra.mxu0 0.0
        %639 = vmatpush.msra.mxu0 0.0
        %640 = vmatpush.msra.mxu0 0.0
        %641 = vmatpush.msra.mxu0 0.0
        %642 = vmatpush.msra.mxu0 0.0
        %643 = vmatpush.msra.mxu0 0.0
        %644 = vmatpush.msra.mxu0 0.0
        %645 = vmatpush.msra.mxu0 0.0
        %646 = vmatpush.msra.mxu0 0.0
        %647 = vmatpush.msra.mxu0 %v630
        %648 = vmatmul.f32.gmra.mxu0 %v522
        %v649 = vpop.f32.mrf.mxu0
        %v650 = vadd.f32 %v414, %v649
        %651 = vmatmul.f32.gmra.mxu0 %v525
        %v652 = vpop.f32.mrf.mxu0
        %v653 = vadd.f32 %v417, %v652
        %654 = vmatmul.f32.gmra.mxu0 %v528
        %v655 = vpop.f32.mrf.mxu0
        %v656 = vadd.f32 %v420, %v655
        %657 = vmatmul.f32.gmra.mxu0 %v531
        %v658 = vpop.f32.mrf.mxu0
        %v659 = vadd.f32 %v423, %v658
        %660 = vmatmul.f32.gmra.mxu0 %v534
        %v661 = vpop.f32.mrf.mxu0
        %v662 = vadd.f32 %v426, %v661
        %663 = vmatmul.f32.gmra.mxu0 %v537
        %v664 = vpop.f32.mrf.mxu0
        %v665 = vadd.f32 %v429, %v664
        %666 = vmatmul.f32.gmra.mxu0 %v540
        %v667 = vpop.f32.mrf.mxu0
        %v668 = vadd.f32 %v432, %v667
        %669 = vmatmul.f32.gmra.mxu0 %v543
        %v670 = vpop.f32.mrf.mxu0
        %v671 = vadd.f32 %v435, %v670
        %672 = vmatmul.f32.gmra.mxu0 %v546
        %v673 = vpop.f32.mrf.mxu0
        %v674 = vadd.f32 %v438, %v673
        %675 = vmatmul.f32.gmra.mxu0 %v549
        %v676 = vpop.f32.mrf.mxu0
        %v677 = vadd.f32 %v441, %v676
        %678 = vmatmul.f32.gmra.mxu0 %v552
        %v679 = vpop.f32.mrf.mxu0
        %v680 = vadd.f32 %v444, %v679
        %681 = vmatmul.f32.gmra.mxu0 %v555
        %v682 = vpop.f32.mrf.mxu0
        %v683 = vadd.f32 %v447, %v682
        %684 = vmatmul.f32.gmra.mxu0 %v558
        %v685 = vpop.f32.mrf.mxu0
        %v686 = vadd.f32 %v450, %v685
        %687 = vmatmul.f32.gmra.mxu0 %v561
        %v688 = vpop.f32.mrf.mxu0
        %v689 = vadd.f32 %v453, %v688
        %690 = vmatmul.f32.gmra.mxu0 %v564
        %v691 = vpop.f32.mrf.mxu0
        %v692 = vadd.f32 %v456, %v691
        %693 = vmatmul.f32.gmra.mxu0 %v567
        %v694 = vpop.f32.mrf.mxu0
        %v695 = vadd.f32 %v459, %v694
        %696 = vmatmul.f32.gmra.mxu0 %v570
        %v697 = vpop.f32.mrf.mxu0
        %v698 = vadd.f32 %v462, %v697
        %699 = vmatmul.f32.gmra.mxu0 %v573
        %v700 = vpop.f32.mrf.mxu0
        %v701 = vadd.f32 %v465, %v700
        %702 = vmatmul.f32.gmra.mxu0 %v576
        %v703 = vpop.f32.mrf.mxu0
        %v704 = vadd.f32 %v468, %v703
        %705 = vmatmul.f32.gmra.mxu0 %v579
        %v706 = vpop.f32.mrf.mxu0
        %v707 = vadd.f32 %v471, %v706
        %708 = vmatmul.f32.gmra.mxu0 %v582
        %v709 = vpop.f32.mrf.mxu0
        %v710 = vadd.f32 %v474, %v709
        %711 = vmatmul.f32.gmra.mxu0 %v585
        %v712 = vpop.f32.mrf.mxu0
        %v713 = vadd.f32 %v477, %v712
        %714 = vmatmul.f32.gmra.mxu0 %v588
        %v715 = vpop.f32.mrf.mxu0
        %v716 = vadd.f32 %v480, %v715
        %717 = vmatmul.f32.gmra.mxu0 %v591
        %v718 = vpop.f32.mrf.mxu0
        %v719 = vadd.f32 %v483, %v718
        %720 = vmatmul.f32.gmra.mxu0 %v594
        %v721 = vpop.f32.mrf.mxu0
        %v722 = vadd.f32 %v486, %v721
        %723 = vmatmul.f32.gmra.mxu0 %v597
        %v724 = vpop.f32.mrf.mxu0
        %v725 = vadd.f32 %v489, %v724
        %726 = vmatmul.f32.gmra.mxu0 %v600
        %v727 = vpop.f32.mrf.mxu0
        %v728 = vadd.f32 %v492, %v727
        %729 = vmatmul.f32.gmra.mxu0 %v603
        %v730 = vpop.f32.mrf.mxu0
        %v731 = vadd.f32 %v495, %v730
        %732 = vmatmul.f32.gmra.mxu0 %v606
        %v733 = vpop.f32.mrf.mxu0
        %v734 = vadd.f32 %v498, %v733
        %735 = vmatmul.f32.gmra.mxu0 %v609
        %v736 = vpop.f32.mrf.mxu0
        %v737 = vadd.f32 %v501, %v736
        %738 = vmatmul.f32.gmra.mxu0 %v612
        %v739 = vpop.f32.mrf.mxu0
        %v740 = vadd.f32 %v504, %v739
        %741 = vmatmul.f32.gmra.mxu0 %v615
        %v742 = vpop.f32.mrf.mxu0
        %v743 = vadd.f32 %v507, %v742
        %744 = vmatmul.f32.gmra.mxu0 %v618
        %v745 = vpop.f32.mrf.mxu0
        %v746 = vadd.f32 %v510, %v745
        %747 = vmatmul.f32.gmra.mxu0 %v621
        %v748 = vpop.f32.mrf.mxu0
        %v749 = vadd.f32 %v513, %v748
        %750 = vmatmul.f32.gmra.mxu0 %v624
        %v751 = vpop.f32.mrf.mxu0
        %v752 = vadd.f32 %v516, %v751
        %753 = vmatmul.f32.gmra.mxu0 %v627
        %v754 = vpop.f32.mrf.mxu0
        %v755 = vadd.f32 %v519, %v754
        %756 = vdwg.mxu0
        %v757 = vld [vmem:[%s207 + $0x2] sm:$0xff]
        %v758 = vld [vmem:[%s207 + $0xa] sm:$0xff]
        %v759 = vld [vmem:[%s207 + $0x12] sm:$0xff]
        %v760 = vld [vmem:[%s207 + $0x1a] sm:$0xff]
        %v761 = vld [vmem:[%s207 + $0x22] sm:$0xff]
        %v762 = vld [vmem:[%s207 + $0x2a] sm:$0xff]
        %v763 = vld [vmem:[%s207 + $0x32] sm:$0xff]
        %v764 = vld [vmem:[%s207 + $0x3a] sm:$0xff]
        %v765 = vld [vmem:[%s207 + $0x42] sm:$0xff]
        %v766 = vld [vmem:[%s207 + $0x4a] sm:$0xff]
        %v767 = vld [vmem:[%s207 + $0x52] sm:$0xff]
        %v768 = vld [vmem:[%s207 + $0x5a] sm:$0xff]
        %v769 = vld [vmem:[%s207 + $0x62] sm:$0xff]
        %v770 = vld [vmem:[%s207 + $0x6a] sm:$0xff]
        %v771 = vld [vmem:[%s207 + $0x72] sm:$0xff]
        %v772 = vld [vmem:[%s207 + $0x7a] sm:$0xff]
        %v773 = vld [vmem:[%s207 + $0x82] sm:$0xff]
        %v774 = vld [vmem:[%s207 + $0x8a] sm:$0xff]
        %v775 = vld [vmem:[%s207 + $0x92] sm:$0xff]
        %v776 = vld [vmem:[%s207 + $0x9a] sm:$0xff]
        %v777 = vld [vmem:[%s207 + $0xa2] sm:$0xff]
        %v778 = vld [vmem:[%s207 + $0xaa] sm:$0xff]
        %v779 = vld [vmem:[%s207 + $0xb2] sm:$0xff]
        %v780 = vld [vmem:[%s207 + $0xba] sm:$0xff]
        %v781 = vld [vmem:[%s207 + $0xc2] sm:$0xff]
        %v782 = vld [vmem:[%s207 + $0xca] sm:$0xff]
        %v783 = vld [vmem:[%s207 + $0xd2] sm:$0xff]
        %v784 = vld [vmem:[%s207 + $0xda] sm:$0xff]
        %v785 = vld [vmem:[%s207 + $0xe2] sm:$0xff]
        %v786 = vld [vmem:[%s207 + $0xea] sm:$0xff]
        %v787 = vld [vmem:[%s207 + $0xf2] sm:$0xff]
        %v788 = vld [vmem:[%s207 + $0xfa] sm:$0xff]
        %v789 = vld [vmem:[%s207 + $0x102] sm:$0xff]
        %v790 = vld [vmem:[%s207 + $0x10a] sm:$0xff]
        %v791 = vld [vmem:[%s207 + $0x112] sm:$0xff]
        %v792 = vld [vmem:[%s207 + $0x11a] sm:$0xff]
        %s793 = scalar_lea.vmem %s1, 8
        %v794 = vld [vmem:[%s793] sm:$0xf]
        %v796 = vsel %vm283, %v757, 0
        %v799 = vsel %vm283, %v758, 0
        %v802 = vsel %vm283, %v759, 0
        %v805 = vsel %vm283, %v760, 0
        %v808 = vsel %vm283, %v761, 0
        %v811 = vsel %vm283, %v762, 0
        %v814 = vsel %vm283, %v763, 0
        %v817 = vsel %vm283, %v764, 0
        %v820 = vsel %vm283, %v765, 0
        %v823 = vsel %vm283, %v766, 0
        %v826 = vsel %vm283, %v767, 0
        %v829 = vsel %vm283, %v768, 0
        %v832 = vsel %vm283, %v769, 0
        %v835 = vsel %vm283, %v770, 0
        %v838 = vsel %vm283, %v771, 0
        %v841 = vsel %vm283, %v772, 0
        %v844 = vsel %vm283, %v773, 0
        %v847 = vsel %vm283, %v774, 0
        %v850 = vsel %vm283, %v775, 0
        %v853 = vsel %vm283, %v776, 0
        %v856 = vsel %vm283, %v777, 0
        %v859 = vsel %vm283, %v778, 0
        %v862 = vsel %vm283, %v779, 0
        %v865 = vsel %vm283, %v780, 0
        %v868 = vsel %vm283, %v781, 0
        %v871 = vsel %vm283, %v782, 0
        %v874 = vsel %vm283, %v783, 0
        %v877 = vsel %vm283, %v784, 0
        %v880 = vsel %vm283, %v785, 0
        %v883 = vsel %vm283, %v786, 0
        %v886 = vsel %vm283, %v787, 0
        %v889 = vsel %vm283, %v788, 0
        %v892 = vsel %vm283, %v789, 0
        %v895 = vsel %vm283, %v790, 0
        %v898 = vsel %vm283, %v791, 0
        %v901 = vsel %vm283, %v792, 0
        %v904 = vsel %vm392, %v794, 0
        %906 = vmatpush.msra.mxu0 0.0
        %907 = vmatpush.msra.mxu0 0.0
        %908 = vmatpush.msra.mxu0 0.0
        %909 = vmatpush.msra.mxu0 0.0
        %910 = vmatpush.msra.mxu0 0.0
        %911 = vmatpush.msra.mxu0 0.0
        %912 = vmatpush.msra.mxu0 0.0
        %913 = vmatpush.msra.mxu0 0.0
        %914 = vmatpush.msra.mxu0 0.0
        %915 = vmatpush.msra.mxu0 0.0
        %916 = vmatpush.msra.mxu0 0.0
        %917 = vmatpush.msra.mxu0 0.0
        %918 = vmatpush.msra.mxu0 0.0
        %919 = vmatpush.msra.mxu0 0.0
        %920 = vmatpush.msra.mxu0 0.0
        %921 = vmatpush.msra.mxu0 %v904
        %922 = vmatmul.f32.gmra.mxu0 %v796
        %v923 = vpop.f32.mrf.mxu0
        %v924 = vadd.f32 0.0, %v923
        %925 = vmatmul.f32.gmra.mxu0 %v799
        %v926 = vpop.f32.mrf.mxu0
        %v927 = vadd.f32 0.0, %v926
        %928 = vmatmul.f32.gmra.mxu0 %v802
        %v929 = vpop.f32.mrf.mxu0
        %v930 = vadd.f32 0.0, %v929
        %931 = vmatmul.f32.gmra.mxu0 %v805
        %v932 = vpop.f32.mrf.mxu0
        %v933 = vadd.f32 0.0, %v932
        %934 = vmatmul.f32.gmra.mxu0 %v808
        %v935 = vpop.f32.mrf.mxu0
        %v936 = vadd.f32 0.0, %v935
        %937 = vmatmul.f32.gmra.mxu0 %v811
        %v938 = vpop.f32.mrf.mxu0
        %v939 = vadd.f32 0.0, %v938
        %940 = vmatmul.f32.gmra.mxu0 %v814
        %v941 = vpop.f32.mrf.mxu0
        %v942 = vadd.f32 0.0, %v941
        %943 = vmatmul.f32.gmra.mxu0 %v817
        %v944 = vpop.f32.mrf.mxu0
        %v945 = vadd.f32 0.0, %v944
        %946 = vmatmul.f32.gmra.mxu0 %v820
        %v947 = vpop.f32.mrf.mxu0
        %v948 = vadd.f32 0.0, %v947
        %949 = vmatmul.f32.gmra.mxu0 %v823
        %v950 = vpop.f32.mrf.mxu0
        %v951 = vadd.f32 0.0, %v950
        %952 = vmatmul.f32.gmra.mxu0 %v826
        %v953 = vpop.f32.mrf.mxu0
        %v954 = vadd.f32 0.0, %v953
        %955 = vmatmul.f32.gmra.mxu0 %v829
        %v956 = vpop.f32.mrf.mxu0
        %v957 = vadd.f32 0.0, %v956
        %958 = vmatmul.f32.gmra.mxu0 %v832
        %v959 = vpop.f32.mrf.mxu0
        %v960 = vadd.f32 0.0, %v959
        %961 = vmatmul.f32.gmra.mxu0 %v835
        %v962 = vpop.f32.mrf.mxu0
        %v963 = vadd.f32 0.0, %v962
        %964 = vmatmul.f32.gmra.mxu0 %v838
        %v965 = vpop.f32.mrf.mxu0
        %v966 = vadd.f32 0.0, %v965
        %967 = vmatmul.f32.gmra.mxu0 %v841
        %v968 = vpop.f32.mrf.mxu0
        %v969 = vadd.f32 0.0, %v968
        %970 = vmatmul.f32.gmra.mxu0 %v844
        %v971 = vpop.f32.mrf.mxu0
        %v972 = vadd.f32 0.0, %v971
        %973 = vmatmul.f32.gmra.mxu0 %v847
        %v974 = vpop.f32.mrf.mxu0
        %v975 = vadd.f32 0.0, %v974
        %976 = vmatmul.f32.gmra.mxu0 %v850
        %v977 = vpop.f32.mrf.mxu0
        %v978 = vadd.f32 0.0, %v977
        %979 = vmatmul.f32.gmra.mxu0 %v853
        %v980 = vpop.f32.mrf.mxu0
        %v981 = vadd.f32 0.0, %v980
        %982 = vmatmul.f32.gmra.mxu0 %v856
        %v983 = vpop.f32.mrf.mxu0
        %v984 = vadd.f32 0.0, %v983
        %985 = vmatmul.f32.gmra.mxu0 %v859
        %v986 = vpop.f32.mrf.mxu0
        %v987 = vadd.f32 0.0, %v986
        %988 = vmatmul.f32.gmra.mxu0 %v862
        %v989 = vpop.f32.mrf.mxu0
        %v990 = vadd.f32 0.0, %v989
        %991 = vmatmul.f32.gmra.mxu0 %v865
        %v992 = vpop.f32.mrf.mxu0
        %v993 = vadd.f32 0.0, %v992
        %994 = vmatmul.f32.gmra.mxu0 %v868
        %v995 = vpop.f32.mrf.mxu0
        %v996 = vadd.f32 0.0, %v995
        %997 = vmatmul.f32.gmra.mxu0 %v871
        %v998 = vpop.f32.mrf.mxu0
        %v999 = vadd.f32 0.0, %v998
        %1000 = vmatmul.f32.gmra.mxu0 %v874
        %v1001 = vpop.f32.mrf.mxu0
        %v1002 = vadd.f32 0.0, %v1001
        %1003 = vmatmul.f32.gmra.mxu0 %v877
        %v1004 = vpop.f32.mrf.mxu0
        %v1005 = vadd.f32 0.0, %v1004
        %1006 = vmatmul.f32.gmra.mxu0 %v880
        %v1007 = vpop.f32.mrf.mxu0
        %v1008 = vadd.f32 0.0, %v1007
        %1009 = vmatmul.f32.gmra.mxu0 %v883
        %v1010 = vpop.f32.mrf.mxu0
        %v1011 = vadd.f32 0.0, %v1010
        %1012 = vmatmul.f32.gmra.mxu0 %v886
        %v1013 = vpop.f32.mrf.mxu0
        %v1014 = vadd.f32 0.0, %v1013
        %1015 = vmatmul.f32.gmra.mxu0 %v889
        %v1016 = vpop.f32.mrf.mxu0
        %v1017 = vadd.f32 0.0, %v1016
        %1018 = vmatmul.f32.gmra.mxu0 %v892
        %v1019 = vpop.f32.mrf.mxu0
        %v1020 = vadd.f32 0.0, %v1019
        %1021 = vmatmul.f32.gmra.mxu0 %v895
        %v1022 = vpop.f32.mrf.mxu0
        %v1023 = vadd.f32 0.0, %v1022
        %1024 = vmatmul.f32.gmra.mxu0 %v898
        %v1025 = vpop.f32.mrf.mxu0
        %v1026 = vadd.f32 0.0, %v1025
        %1027 = vmatmul.f32.gmra.mxu0 %v901
        %v1028 = vpop.f32.mrf.mxu0
        %v1029 = vadd.f32 0.0, %v1028
        %1030 = vdwg.mxu0
        %v1031 = vadd.f32 %v650, %v924
        %v1032 = vadd.f32 %v653, %v927
        %v1033 = vadd.f32 %v656, %v930
        %v1034 = vadd.f32 %v659, %v933
        %v1035 = vadd.f32 %v662, %v936
        %v1036 = vadd.f32 %v665, %v939
        %v1037 = vadd.f32 %v668, %v942
        %v1038 = vadd.f32 %v671, %v945
        %v1039 = vadd.f32 %v674, %v948
        %v1040 = vadd.f32 %v677, %v951
        %v1041 = vadd.f32 %v680, %v954
        %v1042 = vadd.f32 %v683, %v957
        %v1043 = vadd.f32 %v686, %v960
        %v1044 = vadd.f32 %v689, %v963
        %v1045 = vadd.f32 %v692, %v966
        %v1046 = vadd.f32 %v695, %v969
        %v1047 = vadd.f32 %v698, %v972
        %v1048 = vadd.f32 %v701, %v975
        %v1049 = vadd.f32 %v704, %v978
        %v1050 = vadd.f32 %v707, %v981
        %v1051 = vadd.f32 %v710, %v984
        %v1052 = vadd.f32 %v713, %v987
        %v1053 = vadd.f32 %v716, %v990
        %v1054 = vadd.f32 %v719, %v993
        %v1055 = vadd.f32 %v722, %v996
        %v1056 = vadd.f32 %v725, %v999
        %v1057 = vadd.f32 %v728, %v1002
        %v1058 = vadd.f32 %v731, %v1005
        %v1059 = vadd.f32 %v734, %v1008
        %v1060 = vadd.f32 %v737, %v1011
        %v1061 = vadd.f32 %v740, %v1014
        %v1062 = vadd.f32 %v743, %v1017
        %v1063 = vadd.f32 %v746, %v1020
        %v1064 = vadd.f32 %v749, %v1023
        %v1065 = vadd.f32 %v752, %v1026
        %v1066 = vadd.f32 %v755, %v1029
        %v1067 = vld [vmem:[%s207 + $0x12] sm:$0xff]
        %v1068 = vld [vmem:[%s207 + $0x1a] sm:$0xff]
        %v1069 = vld [vmem:[%s207 + $0x22] sm:$0xff]
        %v1070 = vld [vmem:[%s207 + $0x2a] sm:$0xff]
        %v1071 = vld [vmem:[%s207 + $0x32] sm:$0xff]
        %v1072 = vld [vmem:[%s207 + $0x3a] sm:$0xff]
        %v1073 = vld [vmem:[%s207 + $0x42] sm:$0xff]
        %v1074 = vld [vmem:[%s207 + $0x4a] sm:$0xff]
        %v1075 = vld [vmem:[%s207 + $0x52] sm:$0xff]
        %v1076 = vld [vmem:[%s207 + $0x5a] sm:$0xff]
        %v1077 = vld [vmem:[%s207 + $0x62] sm:$0xff]
        %v1078 = vld [vmem:[%s207 + $0x6a] sm:$0xff]
        %v1079 = vld [vmem:[%s207 + $0x72] sm:$0xff]
        %v1080 = vld [vmem:[%s207 + $0x7a] sm:$0xff]
        %v1081 = vld [vmem:[%s207 + $0x82] sm:$0xff]
        %v1082 = vld [vmem:[%s207 + $0x8a] sm:$0xff]
        %v1083 = vld [vmem:[%s207 + $0x92] sm:$0xff]
        %v1084 = vld [vmem:[%s207 + $0x9a] sm:$0xff]
        %v1085 = vld [vmem:[%s207 + $0xa2] sm:$0xff]
        %v1086 = vld [vmem:[%s207 + $0xaa] sm:$0xff]
        %v1087 = vld [vmem:[%s207 + $0xb2] sm:$0xff]
        %v1088 = vld [vmem:[%s207 + $0xba] sm:$0xff]
        %v1089 = vld [vmem:[%s207 + $0xc2] sm:$0xff]
        %v1090 = vld [vmem:[%s207 + $0xca] sm:$0xff]
        %v1091 = vld [vmem:[%s207 + $0xd2] sm:$0xff]
        %v1092 = vld [vmem:[%s207 + $0xda] sm:$0xff]
        %v1093 = vld [vmem:[%s207 + $0xe2] sm:$0xff]
        %v1094 = vld [vmem:[%s207 + $0xea] sm:$0xff]
        %v1095 = vld [vmem:[%s207 + $0xf2] sm:$0xff]
        %v1096 = vld [vmem:[%s207 + $0xfa] sm:$0xff]
        %v1097 = vld [vmem:[%s207 + $0x102] sm:$0xff]
        %v1098 = vld [vmem:[%s207 + $0x10a] sm:$0xff]
        %v1099 = vld [vmem:[%s207 + $0x112] sm:$0xff]
        %v1100 = vld [vmem:[%s207 + $0x11a] sm:$0xff]
        %v1101 = vld [vmem:[%s207 + $0x122] sm:$0xff]
        %v1102 = vld [vmem:[%s207 + $0x12a] sm:$0xff]
        %s1103 = scalar_lea.vmem %s1, 12
        %v1104 = vld [vmem:[%s1103] sm:$0xf]
        %v1106 = vsel %vm283, %v1067, 0
        %v1109 = vsel %vm283, %v1068, 0
        %v1112 = vsel %vm283, %v1069, 0
        %v1115 = vsel %vm283, %v1070, 0
        %v1118 = vsel %vm283, %v1071, 0
        %v1121 = vsel %vm283, %v1072, 0
        %v1124 = vsel %vm283, %v1073, 0
        %v1127 = vsel %vm283, %v1074, 0
        %v1130 = vsel %vm283, %v1075, 0
        %v1133 = vsel %vm283, %v1076, 0
        %v1136 = vsel %vm283, %v1077, 0
        %v1139 = vsel %vm283, %v1078, 0
        %v1142 = vsel %vm283, %v1079, 0
        %v1145 = vsel %vm283, %v1080, 0
        %v1148 = vsel %vm283, %v1081, 0
        %v1151 = vsel %vm283, %v1082, 0
        %v1154 = vsel %vm283, %v1083, 0
        %v1157 = vsel %vm283, %v1084, 0
        %v1160 = vsel %vm283, %v1085, 0
        %v1163 = vsel %vm283, %v1086, 0
        %v1166 = vsel %vm283, %v1087, 0
        %v1169 = vsel %vm283, %v1088, 0
        %v1172 = vsel %vm283, %v1089, 0
        %v1175 = vsel %vm283, %v1090, 0
        %v1178 = vsel %vm283, %v1091, 0
        %v1181 = vsel %vm283, %v1092, 0
        %v1184 = vsel %vm283, %v1093, 0
        %v1187 = vsel %vm283, %v1094, 0
        %v1190 = vsel %vm283, %v1095, 0
        %v1193 = vsel %vm283, %v1096, 0
        %v1196 = vsel %vm283, %v1097, 0
        %v1199 = vsel %vm283, %v1098, 0
        %v1202 = vsel %vm283, %v1099, 0
        %v1205 = vsel %vm283, %v1100, 0
        %v1208 = vsel %vm283, %v1101, 0
        %v1211 = vsel %vm283, %v1102, 0
        %v1214 = vsel %vm392, %v1104, 0
        %1216 = vmatpush.msra.mxu0 0.0
        %1217 = vmatpush.msra.mxu0 0.0
        %1218 = vmatpush.msra.mxu0 0.0
        %1219 = vmatpush.msra.mxu0 0.0
        %1220 = vmatpush.msra.mxu0 0.0
        %1221 = vmatpush.msra.mxu0 0.0
        %1222 = vmatpush.msra.mxu0 0.0
        %1223 = vmatpush.msra.mxu0 0.0
        %1224 = vmatpush.msra.mxu0 0.0
        %1225 = vmatpush.msra.mxu0 0.0
        %1226 = vmatpush.msra.mxu0 0.0
        %1227 = vmatpush.msra.mxu0 0.0
        %1228 = vmatpush.msra.mxu0 0.0
        %1229 = vmatpush.msra.mxu0 0.0
        %1230 = vmatpush.msra.mxu0 0.0
        %1231 = vmatpush.msra.mxu0 %v1214
        %1232 = vmatmul.f32.gmra.mxu0 %v1106
        %v1233 = vpop.f32.mrf.mxu0
        %v1234 = vadd.f32 0.0, %v1233
        %1235 = vmatmul.f32.gmra.mxu0 %v1109
        %v1236 = vpop.f32.mrf.mxu0
        %v1237 = vadd.f32 0.0, %v1236
        %1238 = vmatmul.f32.gmra.mxu0 %v1112
        %v1239 = vpop.f32.mrf.mxu0
        %v1240 = vadd.f32 0.0, %v1239
        %1241 = vmatmul.f32.gmra.mxu0 %v1115
        %v1242 = vpop.f32.mrf.mxu0
        %v1243 = vadd.f32 0.0, %v1242
        %1244 = vmatmul.f32.gmra.mxu0 %v1118
        %v1245 = vpop.f32.mrf.mxu0
        %v1246 = vadd.f32 0.0, %v1245
        %1247 = vmatmul.f32.gmra.mxu0 %v1121
        %v1248 = vpop.f32.mrf.mxu0
        %v1249 = vadd.f32 0.0, %v1248
        %1250 = vmatmul.f32.gmra.mxu0 %v1124
        %v1251 = vpop.f32.mrf.mxu0
        %v1252 = vadd.f32 0.0, %v1251
        %1253 = vmatmul.f32.gmra.mxu0 %v1127
        %v1254 = vpop.f32.mrf.mxu0
        %v1255 = vadd.f32 0.0, %v1254
        %1256 = vmatmul.f32.gmra.mxu0 %v1130
        %v1257 = vpop.f32.mrf.mxu0
        %v1258 = vadd.f32 0.0, %v1257
        %1259 = vmatmul.f32.gmra.mxu0 %v1133
        %v1260 = vpop.f32.mrf.mxu0
        %v1261 = vadd.f32 0.0, %v1260
        %1262 = vmatmul.f32.gmra.mxu0 %v1136
        %v1263 = vpop.f32.mrf.mxu0
        %v1264 = vadd.f32 0.0, %v1263
        %1265 = vmatmul.f32.gmra.mxu0 %v1139
        %v1266 = vpop.f32.mrf.mxu0
        %v1267 = vadd.f32 0.0, %v1266
        %1268 = vmatmul.f32.gmra.mxu0 %v1142
        %v1269 = vpop.f32.mrf.mxu0
        %v1270 = vadd.f32 0.0, %v1269
        %1271 = vmatmul.f32.gmra.mxu0 %v1145
        %v1272 = vpop.f32.mrf.mxu0
        %v1273 = vadd.f32 0.0, %v1272
        %1274 = vmatmul.f32.gmra.mxu0 %v1148
        %v1275 = vpop.f32.mrf.mxu0
        %v1276 = vadd.f32 0.0, %v1275
        %1277 = vmatmul.f32.gmra.mxu0 %v1151
        %v1278 = vpop.f32.mrf.mxu0
        %v1279 = vadd.f32 0.0, %v1278
        %1280 = vmatmul.f32.gmra.mxu0 %v1154
        %v1281 = vpop.f32.mrf.mxu0
        %v1282 = vadd.f32 0.0, %v1281
        %1283 = vmatmul.f32.gmra.mxu0 %v1157
        %v1284 = vpop.f32.mrf.mxu0
        %v1285 = vadd.f32 0.0, %v1284
        %1286 = vmatmul.f32.gmra.mxu0 %v1160
        %v1287 = vpop.f32.mrf.mxu0
        %v1288 = vadd.f32 0.0, %v1287
        %1289 = vmatmul.f32.gmra.mxu0 %v1163
        %v1290 = vpop.f32.mrf.mxu0
        %v1291 = vadd.f32 0.0, %v1290
        %1292 = vmatmul.f32.gmra.mxu0 %v1166
        %v1293 = vpop.f32.mrf.mxu0
        %v1294 = vadd.f32 0.0, %v1293
        %1295 = vmatmul.f32.gmra.mxu0 %v1169
        %v1296 = vpop.f32.mrf.mxu0
        %v1297 = vadd.f32 0.0, %v1296
        %1298 = vmatmul.f32.gmra.mxu0 %v1172
        %v1299 = vpop.f32.mrf.mxu0
        %v1300 = vadd.f32 0.0, %v1299
        %1301 = vmatmul.f32.gmra.mxu0 %v1175
        %v1302 = vpop.f32.mrf.mxu0
        %v1303 = vadd.f32 0.0, %v1302
        %1304 = vmatmul.f32.gmra.mxu0 %v1178
        %v1305 = vpop.f32.mrf.mxu0
        %v1306 = vadd.f32 0.0, %v1305
        %1307 = vmatmul.f32.gmra.mxu0 %v1181
        %v1308 = vpop.f32.mrf.mxu0
        %v1309 = vadd.f32 0.0, %v1308
        %1310 = vmatmul.f32.gmra.mxu0 %v1184
        %v1311 = vpop.f32.mrf.mxu0
        %v1312 = vadd.f32 0.0, %v1311
        %1313 = vmatmul.f32.gmra.mxu0 %v1187
        %v1314 = vpop.f32.mrf.mxu0
        %v1315 = vadd.f32 0.0, %v1314
        %1316 = vmatmul.f32.gmra.mxu0 %v1190
        %v1317 = vpop.f32.mrf.mxu0
        %v1318 = vadd.f32 0.0, %v1317
        %1319 = vmatmul.f32.gmra.mxu0 %v1193
        %v1320 = vpop.f32.mrf.mxu0
        %v1321 = vadd.f32 0.0, %v1320
        %1322 = vmatmul.f32.gmra.mxu0 %v1196
        %v1323 = vpop.f32.mrf.mxu0
        %v1324 = vadd.f32 0.0, %v1323
        %1325 = vmatmul.f32.gmra.mxu0 %v1199
        %v1326 = vpop.f32.mrf.mxu0
        %v1327 = vadd.f32 0.0, %v1326
        %1328 = vmatmul.f32.gmra.mxu0 %v1202
        %v1329 = vpop.f32.mrf.mxu0
        %v1330 = vadd.f32 0.0, %v1329
        %1331 = vmatmul.f32.gmra.mxu0 %v1205
        %v1332 = vpop.f32.mrf.mxu0
        %v1333 = vadd.f32 0.0, %v1332
        %1334 = vmatmul.f32.gmra.mxu0 %v1208
        %v1335 = vpop.f32.mrf.mxu0
        %v1336 = vadd.f32 0.0, %v1335
        %1337 = vmatmul.f32.gmra.mxu0 %v1211
        %v1338 = vpop.f32.mrf.mxu0
        %v1339 = vadd.f32 0.0, %v1338
        %1340 = vdwg.mxu0
        %v1341 = vadd.f32 %v1031, %v1234
        %v1342 = vadd.f32 %v1032, %v1237
        %v1343 = vadd.f32 %v1033, %v1240
        %v1344 = vadd.f32 %v1034, %v1243
        %v1345 = vadd.f32 %v1035, %v1246
        %v1346 = vadd.f32 %v1036, %v1249
        %v1347 = vadd.f32 %v1037, %v1252
        %v1348 = vadd.f32 %v1038, %v1255
        %v1349 = vadd.f32 %v1039, %v1258
        %v1350 = vadd.f32 %v1040, %v1261
        %v1351 = vadd.f32 %v1041, %v1264
        %v1352 = vadd.f32 %v1042, %v1267
        %v1353 = vadd.f32 %v1043, %v1270
        %v1354 = vadd.f32 %v1044, %v1273
        %v1355 = vadd.f32 %v1045, %v1276
        %v1356 = vadd.f32 %v1046, %v1279
        %v1357 = vadd.f32 %v1047, %v1282
        %v1358 = vadd.f32 %v1048, %v1285
        %v1359 = vadd.f32 %v1049, %v1288
        %v1360 = vadd.f32 %v1050, %v1291
        %v1361 = vadd.f32 %v1051, %v1294
        %v1362 = vadd.f32 %v1052, %v1297
        %v1363 = vadd.f32 %v1053, %v1300
        %v1364 = vadd.f32 %v1054, %v1303
        %v1365 = vadd.f32 %v1055, %v1306
        %v1366 = vadd.f32 %v1056, %v1309
        %v1367 = vadd.f32 %v1057, %v1312
        %v1368 = vadd.f32 %v1058, %v1315
        %v1369 = vadd.f32 %v1059, %v1318
        %v1370 = vadd.f32 %v1060, %v1321
        %v1371 = vadd.f32 %v1061, %v1324
        %v1372 = vadd.f32 %v1062, %v1327
        %v1373 = vadd.f32 %v1063, %v1330
        %v1374 = vadd.f32 %v1064, %v1333
        %v1375 = vadd.f32 %v1065, %v1336
        %v1376 = vadd.f32 %v1066, %v1339
        %v1377 = vld [vmem:[%s207 + $0x13] sm:$0xff]
        %v1378 = vld [vmem:[%s207 + $0x1b] sm:$0xff]
        %v1379 = vld [vmem:[%s207 + $0x23] sm:$0xff]
        %v1380 = vld [vmem:[%s207 + $0x2b] sm:$0xff]
        %v1381 = vld [vmem:[%s207 + $0x33] sm:$0xff]
        %v1382 = vld [vmem:[%s207 + $0x3b] sm:$0xff]
        %v1383 = vld [vmem:[%s207 + $0x43] sm:$0xff]
        %v1384 = vld [vmem:[%s207 + $0x4b] sm:$0xff]
        %v1385 = vld [vmem:[%s207 + $0x53] sm:$0xff]
        %v1386 = vld [vmem:[%s207 + $0x5b] sm:$0xff]
        %v1387 = vld [vmem:[%s207 + $0x63] sm:$0xff]
        %v1388 = vld [vmem:[%s207 + $0x6b] sm:$0xff]
        %v1389 = vld [vmem:[%s207 + $0x73] sm:$0xff]
        %v1390 = vld [vmem:[%s207 + $0x7b] sm:$0xff]
        %v1391 = vld [vmem:[%s207 + $0x83] sm:$0xff]
        %v1392 = vld [vmem:[%s207 + $0x8b] sm:$0xff]
        %v1393 = vld [vmem:[%s207 + $0x93] sm:$0xff]
        %v1394 = vld [vmem:[%s207 + $0x9b] sm:$0xff]
        %v1395 = vld [vmem:[%s207 + $0xa3] sm:$0xff]
        %v1396 = vld [vmem:[%s207 + $0xab] sm:$0xff]
        %v1397 = vld [vmem:[%s207 + $0xb3] sm:$0xff]
        %v1398 = vld [vmem:[%s207 + $0xbb] sm:$0xff]
        %v1399 = vld [vmem:[%s207 + $0xc3] sm:$0xff]
        %v1400 = vld [vmem:[%s207 + $0xcb] sm:$0xff]
        %v1401 = vld [vmem:[%s207 + $0xd3] sm:$0xff]
        %v1402 = vld [vmem:[%s207 + $0xdb] sm:$0xff]
        %v1403 = vld [vmem:[%s207 + $0xe3] sm:$0xff]
        %v1404 = vld [vmem:[%s207 + $0xeb] sm:$0xff]
        %v1405 = vld [vmem:[%s207 + $0xf3] sm:$0xff]
        %v1406 = vld [vmem:[%s207 + $0xfb] sm:$0xff]
        %v1407 = vld [vmem:[%s207 + $0x103] sm:$0xff]
        %v1408 = vld [vmem:[%s207 + $0x10b] sm:$0xff]
        %v1409 = vld [vmem:[%s207 + $0x113] sm:$0xff]
        %v1410 = vld [vmem:[%s207 + $0x11b] sm:$0xff]
        %v1411 = vld [vmem:[%s207 + $0x123] sm:$0xff]
        %v1412 = vld [vmem:[%s207 + $0x12b] sm:$0xff]
        %s1413 = scalar_lea.vmem %s1, 16
        %v1414 = vld [vmem:[%s1413] sm:$0xf]
        %v1416 = vsel %vm283, %v1377, 0
        %v1419 = vsel %vm283, %v1378, 0
        %v1422 = vsel %vm283, %v1379, 0
        %v1425 = vsel %vm283, %v1380, 0
        %v1428 = vsel %vm283, %v1381, 0
        %v1431 = vsel %vm283, %v1382, 0
        %v1434 = vsel %vm283, %v1383, 0
        %v1437 = vsel %vm283, %v1384, 0
        %v1440 = vsel %vm283, %v1385, 0
        %v1443 = vsel %vm283, %v1386, 0
        %v1446 = vsel %vm283, %v1387, 0
        %v1449 = vsel %vm283, %v1388, 0
        %v1452 = vsel %vm283, %v1389, 0
        %v1455 = vsel %vm283, %v1390, 0
        %v1458 = vsel %vm283, %v1391, 0
        %v1461 = vsel %vm283, %v1392, 0
        %v1464 = vsel %vm283, %v1393, 0
        %v1467 = vsel %vm283, %v1394, 0
        %v1470 = vsel %vm283, %v1395, 0
        %v1473 = vsel %vm283, %v1396, 0
        %v1476 = vsel %vm283, %v1397, 0
        %v1479 = vsel %vm283, %v1398, 0
        %v1482 = vsel %vm283, %v1399, 0
        %v1485 = vsel %vm283, %v1400, 0
        %v1488 = vsel %vm283, %v1401, 0
        %v1491 = vsel %vm283, %v1402, 0
        %v1494 = vsel %vm283, %v1403, 0
        %v1497 = vsel %vm283, %v1404, 0
        %v1500 = vsel %vm283, %v1405, 0
        %v1503 = vsel %vm283, %v1406, 0
        %v1506 = vsel %vm283, %v1407, 0
        %v1509 = vsel %vm283, %v1408, 0
        %v1512 = vsel %vm283, %v1409, 0
        %v1515 = vsel %vm283, %v1410, 0
        %v1518 = vsel %vm283, %v1411, 0
        %v1521 = vsel %vm283, %v1412, 0
        %v1524 = vsel %vm392, %v1414, 0
        %1526 = vmatpush.msra.mxu0 0.0
        %1527 = vmatpush.msra.mxu0 0.0
        %1528 = vmatpush.msra.mxu0 0.0
        %1529 = vmatpush.msra.mxu0 0.0
        %1530 = vmatpush.msra.mxu0 0.0
        %1531 = vmatpush.msra.mxu0 0.0
        %1532 = vmatpush.msra.mxu0 0.0
        %1533 = vmatpush.msra.mxu0 0.0
        %1534 = vmatpush.msra.mxu0 0.0
        %1535 = vmatpush.msra.mxu0 0.0
        %1536 = vmatpush.msra.mxu0 0.0
        %1537 = vmatpush.msra.mxu0 0.0
        %1538 = vmatpush.msra.mxu0 0.0
        %1539 = vmatpush.msra.mxu0 0.0
        %1540 = vmatpush.msra.mxu0 0.0
        %1541 = vmatpush.msra.mxu0 %v1524
        %1542 = vmatmul.f32.gmra.mxu0 %v1416
        %v1543 = vpop.f32.mrf.mxu0
        %v1544 = vadd.f32 0.0, %v1543
        %1545 = vmatmul.f32.gmra.mxu0 %v1419
        %v1546 = vpop.f32.mrf.mxu0
        %v1547 = vadd.f32 0.0, %v1546
        %1548 = vmatmul.f32.gmra.mxu0 %v1422
        %v1549 = vpop.f32.mrf.mxu0
        %v1550 = vadd.f32 0.0, %v1549
        %1551 = vmatmul.f32.gmra.mxu0 %v1425
        %v1552 = vpop.f32.mrf.mxu0
        %v1553 = vadd.f32 0.0, %v1552
        %1554 = vmatmul.f32.gmra.mxu0 %v1428
        %v1555 = vpop.f32.mrf.mxu0
        %v1556 = vadd.f32 0.0, %v1555
        %1557 = vmatmul.f32.gmra.mxu0 %v1431
        %v1558 = vpop.f32.mrf.mxu0
        %v1559 = vadd.f32 0.0, %v1558
        %1560 = vmatmul.f32.gmra.mxu0 %v1434
        %v1561 = vpop.f32.mrf.mxu0
        %v1562 = vadd.f32 0.0, %v1561
        %1563 = vmatmul.f32.gmra.mxu0 %v1437
        %v1564 = vpop.f32.mrf.mxu0
        %v1565 = vadd.f32 0.0, %v1564
        %1566 = vmatmul.f32.gmra.mxu0 %v1440
        %v1567 = vpop.f32.mrf.mxu0
        %v1568 = vadd.f32 0.0, %v1567
        %1569 = vmatmul.f32.gmra.mxu0 %v1443
        %v1570 = vpop.f32.mrf.mxu0
        %v1571 = vadd.f32 0.0, %v1570
        %1572 = vmatmul.f32.gmra.mxu0 %v1446
        %v1573 = vpop.f32.mrf.mxu0
        %v1574 = vadd.f32 0.0, %v1573
        %1575 = vmatmul.f32.gmra.mxu0 %v1449
        %v1576 = vpop.f32.mrf.mxu0
        %v1577 = vadd.f32 0.0, %v1576
        %1578 = vmatmul.f32.gmra.mxu0 %v1452
        %v1579 = vpop.f32.mrf.mxu0
        %v1580 = vadd.f32 0.0, %v1579
        %1581 = vmatmul.f32.gmra.mxu0 %v1455
        %v1582 = vpop.f32.mrf.mxu0
        %v1583 = vadd.f32 0.0, %v1582
        %1584 = vmatmul.f32.gmra.mxu0 %v1458
        %v1585 = vpop.f32.mrf.mxu0
        %v1586 = vadd.f32 0.0, %v1585
        %1587 = vmatmul.f32.gmra.mxu0 %v1461
        %v1588 = vpop.f32.mrf.mxu0
        %v1589 = vadd.f32 0.0, %v1588
        %1590 = vmatmul.f32.gmra.mxu0 %v1464
        %v1591 = vpop.f32.mrf.mxu0
        %v1592 = vadd.f32 0.0, %v1591
        %1593 = vmatmul.f32.gmra.mxu0 %v1467
        %v1594 = vpop.f32.mrf.mxu0
        %v1595 = vadd.f32 0.0, %v1594
        %1596 = vmatmul.f32.gmra.mxu0 %v1470
        %v1597 = vpop.f32.mrf.mxu0
        %v1598 = vadd.f32 0.0, %v1597
        %1599 = vmatmul.f32.gmra.mxu0 %v1473
        %v1600 = vpop.f32.mrf.mxu0
        %v1601 = vadd.f32 0.0, %v1600
        %1602 = vmatmul.f32.gmra.mxu0 %v1476
        %v1603 = vpop.f32.mrf.mxu0
        %v1604 = vadd.f32 0.0, %v1603
        %1605 = vmatmul.f32.gmra.mxu0 %v1479
        %v1606 = vpop.f32.mrf.mxu0
        %v1607 = vadd.f32 0.0, %v1606
        %1608 = vmatmul.f32.gmra.mxu0 %v1482
        %v1609 = vpop.f32.mrf.mxu0
        %v1610 = vadd.f32 0.0, %v1609
        %1611 = vmatmul.f32.gmra.mxu0 %v1485
        %v1612 = vpop.f32.mrf.mxu0
        %v1613 = vadd.f32 0.0, %v1612
        %1614 = vmatmul.f32.gmra.mxu0 %v1488
        %v1615 = vpop.f32.mrf.mxu0
        %v1616 = vadd.f32 0.0, %v1615
        %1617 = vmatmul.f32.gmra.mxu0 %v1491
        %v1618 = vpop.f32.mrf.mxu0
        %v1619 = vadd.f32 0.0, %v1618
        %1620 = vmatmul.f32.gmra.mxu0 %v1494
        %v1621 = vpop.f32.mrf.mxu0
        %v1622 = vadd.f32 0.0, %v1621
        %1623 = vmatmul.f32.gmra.mxu0 %v1497
        %v1624 = vpop.f32.mrf.mxu0
        %v1625 = vadd.f32 0.0, %v1624
        %1626 = vmatmul.f32.gmra.mxu0 %v1500
        %v1627 = vpop.f32.mrf.mxu0
        %v1628 = vadd.f32 0.0, %v1627
        %1629 = vmatmul.f32.gmra.mxu0 %v1503
        %v1630 = vpop.f32.mrf.mxu0
        %v1631 = vadd.f32 0.0, %v1630
        %1632 = vmatmul.f32.gmra.mxu0 %v1506
        %v1633 = vpop.f32.mrf.mxu0
        %v1634 = vadd.f32 0.0, %v1633
        %1635 = vmatmul.f32.gmra.mxu0 %v1509
        %v1636 = vpop.f32.mrf.mxu0
        %v1637 = vadd.f32 0.0, %v1636
        %1638 = vmatmul.f32.gmra.mxu0 %v1512
        %v1639 = vpop.f32.mrf.mxu0
        %v1640 = vadd.f32 0.0, %v1639
        %1641 = vmatmul.f32.gmra.mxu0 %v1515
        %v1642 = vpop.f32.mrf.mxu0
        %v1643 = vadd.f32 0.0, %v1642
        %1644 = vmatmul.f32.gmra.mxu0 %v1518
        %v1645 = vpop.f32.mrf.mxu0
        %v1646 = vadd.f32 0.0, %v1645
        %1647 = vmatmul.f32.gmra.mxu0 %v1521
        %v1648 = vpop.f32.mrf.mxu0
        %v1649 = vadd.f32 0.0, %v1648
        %1650 = vdwg.mxu0
        %v1651 = vadd.f32 %v1341, %v1544
        %v1652 = vadd.f32 %v1342, %v1547
        %v1653 = vadd.f32 %v1343, %v1550
        %v1654 = vadd.f32 %v1344, %v1553
        %v1655 = vadd.f32 %v1345, %v1556
        %v1656 = vadd.f32 %v1346, %v1559
        %v1657 = vadd.f32 %v1347, %v1562
        %v1658 = vadd.f32 %v1348, %v1565
        %v1659 = vadd.f32 %v1349, %v1568
        %v1660 = vadd.f32 %v1350, %v1571
        %v1661 = vadd.f32 %v1351, %v1574
        %v1662 = vadd.f32 %v1352, %v1577
        %v1663 = vadd.f32 %v1353, %v1580
        %v1664 = vadd.f32 %v1354, %v1583
        %v1665 = vadd.f32 %v1355, %v1586
        %v1666 = vadd.f32 %v1356, %v1589
        %v1667 = vadd.f32 %v1357, %v1592
        %v1668 = vadd.f32 %v1358, %v1595
        %v1669 = vadd.f32 %v1359, %v1598
        %v1670 = vadd.f32 %v1360, %v1601
        %v1671 = vadd.f32 %v1361, %v1604
        %v1672 = vadd.f32 %v1362, %v1607
        %v1673 = vadd.f32 %v1363, %v1610
        %v1674 = vadd.f32 %v1364, %v1613
        %v1675 = vadd.f32 %v1365, %v1616
        %v1676 = vadd.f32 %v1366, %v1619
        %v1677 = vadd.f32 %v1367, %v1622
        %v1678 = vadd.f32 %v1368, %v1625
        %v1679 = vadd.f32 %v1369, %v1628
        %v1680 = vadd.f32 %v1370, %v1631
        %v1681 = vadd.f32 %v1371, %v1634
        %v1682 = vadd.f32 %v1372, %v1637
        %v1683 = vadd.f32 %v1373, %v1640
        %v1684 = vadd.f32 %v1374, %v1643
        %v1685 = vadd.f32 %v1375, %v1646
        %v1686 = vadd.f32 %v1376, %v1649
        %v1687 = vld [vmem:[%s207 + $0x14] sm:$0xff]
        %v1688 = vld [vmem:[%s207 + $0x1c] sm:$0xff]
        %v1689 = vld [vmem:[%s207 + $0x24] sm:$0xff]
        %v1690 = vld [vmem:[%s207 + $0x2c] sm:$0xff]
        %v1691 = vld [vmem:[%s207 + $0x34] sm:$0xff]
        %v1692 = vld [vmem:[%s207 + $0x3c] sm:$0xff]
        %v1693 = vld [vmem:[%s207 + $0x44] sm:$0xff]
        %v1694 = vld [vmem:[%s207 + $0x4c] sm:$0xff]
        %v1695 = vld [vmem:[%s207 + $0x54] sm:$0xff]
        %v1696 = vld [vmem:[%s207 + $0x5c] sm:$0xff]
        %v1697 = vld [vmem:[%s207 + $0x64] sm:$0xff]
        %v1698 = vld [vmem:[%s207 + $0x6c] sm:$0xff]
        %v1699 = vld [vmem:[%s207 + $0x74] sm:$0xff]
        %v1700 = vld [vmem:[%s207 + $0x7c] sm:$0xff]
        %v1701 = vld [vmem:[%s207 + $0x84] sm:$0xff]
        %v1702 = vld [vmem:[%s207 + $0x8c] sm:$0xff]
        %v1703 = vld [vmem:[%s207 + $0x94] sm:$0xff]
        %v1704 = vld [vmem:[%s207 + $0x9c] sm:$0xff]
        %v1705 = vld [vmem:[%s207 + $0xa4] sm:$0xff]
        %v1706 = vld [vmem:[%s207 + $0xac] sm:$0xff]
        %v1707 = vld [vmem:[%s207 + $0xb4] sm:$0xff]
        %v1708 = vld [vmem:[%s207 + $0xbc] sm:$0xff]
        %v1709 = vld [vmem:[%s207 + $0xc4] sm:$0xff]
        %v1710 = vld [vmem:[%s207 + $0xcc] sm:$0xff]
        %v1711 = vld [vmem:[%s207 + $0xd4] sm:$0xff]
        %v1712 = vld [vmem:[%s207 + $0xdc] sm:$0xff]
        %v1713 = vld [vmem:[%s207 + $0xe4] sm:$0xff]
        %v1714 = vld [vmem:[%s207 + $0xec] sm:$0xff]
        %v1715 = vld [vmem:[%s207 + $0xf4] sm:$0xff]
        %v1716 = vld [vmem:[%s207 + $0xfc] sm:$0xff]
        %v1717 = vld [vmem:[%s207 + $0x104] sm:$0xff]
        %v1718 = vld [vmem:[%s207 + $0x10c] sm:$0xff]
        %v1719 = vld [vmem:[%s207 + $0x114] sm:$0xff]
        %v1720 = vld [vmem:[%s207 + $0x11c] sm:$0xff]
        %v1721 = vld [vmem:[%s207 + $0x124] sm:$0xff]
        %v1722 = vld [vmem:[%s207 + $0x12c] sm:$0xff]
        %s1723 = scalar_lea.vmem %s1, 20
        %v1724 = vld [vmem:[%s1723] sm:$0xf]
        %v1726 = vsel %vm283, %v1687, 0
        %v1729 = vsel %vm283, %v1688, 0
        %v1732 = vsel %vm283, %v1689, 0
        %v1735 = vsel %vm283, %v1690, 0
        %v1738 = vsel %vm283, %v1691, 0
        %v1741 = vsel %vm283, %v1692, 0
        %v1744 = vsel %vm283, %v1693, 0
        %v1747 = vsel %vm283, %v1694, 0
        %v1750 = vsel %vm283, %v1695, 0
        %v1753 = vsel %vm283, %v1696, 0
        %v1756 = vsel %vm283, %v1697, 0
        %v1759 = vsel %vm283, %v1698, 0
        %v1762 = vsel %vm283, %v1699, 0
        %v1765 = vsel %vm283, %v1700, 0
        %v1768 = vsel %vm283, %v1701, 0
        %v1771 = vsel %vm283, %v1702, 0
        %v1774 = vsel %vm283, %v1703, 0
        %v1777 = vsel %vm283, %v1704, 0
        %v1780 = vsel %vm283, %v1705, 0
        %v1783 = vsel %vm283, %v1706, 0
        %v1786 = vsel %vm283, %v1707, 0
        %v1789 = vsel %vm283, %v1708, 0
        %v1792 = vsel %vm283, %v1709, 0
        %v1795 = vsel %vm283, %v1710, 0
        %v1798 = vsel %vm283, %v1711, 0
        %v1801 = vsel %vm283, %v1712, 0
        %v1804 = vsel %vm283, %v1713, 0
        %v1807 = vsel %vm283, %v1714, 0
        %v1810 = vsel %vm283, %v1715, 0
        %v1813 = vsel %vm283, %v1716, 0
        %v1816 = vsel %vm283, %v1717, 0
        %v1819 = vsel %vm283, %v1718, 0
        %v1822 = vsel %vm283, %v1719, 0
        %v1825 = vsel %vm283, %v1720, 0
        %v1828 = vsel %vm283, %v1721, 0
        %v1831 = vsel %vm283, %v1722, 0
        %v1834 = vsel %vm392, %v1724, 0
        %1836 = vmatpush.msra.mxu0 0.0
        %1837 = vmatpush.msra.mxu0 0.0
        %1838 = vmatpush.msra.mxu0 0.0
        %1839 = vmatpush.msra.mxu0 0.0
        %1840 = vmatpush.msra.mxu0 0.0
        %1841 = vmatpush.msra.mxu0 0.0
        %1842 = vmatpush.msra.mxu0 0.0
        %1843 = vmatpush.msra.mxu0 0.0
        %1844 = vmatpush.msra.mxu0 0.0
        %1845 = vmatpush.msra.mxu0 0.0
        %1846 = vmatpush.msra.mxu0 0.0
        %1847 = vmatpush.msra.mxu0 0.0
        %1848 = vmatpush.msra.mxu0 0.0
        %1849 = vmatpush.msra.mxu0 0.0
        %1850 = vmatpush.msra.mxu0 0.0
        %1851 = vmatpush.msra.mxu0 %v1834
        %1852 = vmatmul.f32.gmra.mxu0 %v1726
        %v1853 = vpop.f32.mrf.mxu0
        %v1854 = vadd.f32 0.0, %v1853
        %1855 = vmatmul.f32.gmra.mxu0 %v1729
        %v1856 = vpop.f32.mrf.mxu0
        %v1857 = vadd.f32 0.0, %v1856
        %1858 = vmatmul.f32.gmra.mxu0 %v1732
        %v1859 = vpop.f32.mrf.mxu0
        %v1860 = vadd.f32 0.0, %v1859
        %1861 = vmatmul.f32.gmra.mxu0 %v1735
        %v1862 = vpop.f32.mrf.mxu0
        %v1863 = vadd.f32 0.0, %v1862
        %1864 = vmatmul.f32.gmra.mxu0 %v1738
        %v1865 = vpop.f32.mrf.mxu0
        %v1866 = vadd.f32 0.0, %v1865
        %1867 = vmatmul.f32.gmra.mxu0 %v1741
        %v1868 = vpop.f32.mrf.mxu0
        %v1869 = vadd.f32 0.0, %v1868
        %1870 = vmatmul.f32.gmra.mxu0 %v1744
        %v1871 = vpop.f32.mrf.mxu0
        %v1872 = vadd.f32 0.0, %v1871
        %1873 = vmatmul.f32.gmra.mxu0 %v1747
        %v1874 = vpop.f32.mrf.mxu0
        %v1875 = vadd.f32 0.0, %v1874
        %1876 = vmatmul.f32.gmra.mxu0 %v1750
        %v1877 = vpop.f32.mrf.mxu0
        %v1878 = vadd.f32 0.0, %v1877
        %1879 = vmatmul.f32.gmra.mxu0 %v1753
        %v1880 = vpop.f32.mrf.mxu0
        %v1881 = vadd.f32 0.0, %v1880
        %1882 = vmatmul.f32.gmra.mxu0 %v1756
        %v1883 = vpop.f32.mrf.mxu0
        %v1884 = vadd.f32 0.0, %v1883
        %1885 = vmatmul.f32.gmra.mxu0 %v1759
        %v1886 = vpop.f32.mrf.mxu0
        %v1887 = vadd.f32 0.0, %v1886
        %1888 = vmatmul.f32.gmra.mxu0 %v1762
        %v1889 = vpop.f32.mrf.mxu0
        %v1890 = vadd.f32 0.0, %v1889
        %1891 = vmatmul.f32.gmra.mxu0 %v1765
        %v1892 = vpop.f32.mrf.mxu0
        %v1893 = vadd.f32 0.0, %v1892
        %1894 = vmatmul.f32.gmra.mxu0 %v1768
        %v1895 = vpop.f32.mrf.mxu0
        %v1896 = vadd.f32 0.0, %v1895
        %1897 = vmatmul.f32.gmra.mxu0 %v1771
        %v1898 = vpop.f32.mrf.mxu0
        %v1899 = vadd.f32 0.0, %v1898
        %1900 = vmatmul.f32.gmra.mxu0 %v1774
        %v1901 = vpop.f32.mrf.mxu0
        %v1902 = vadd.f32 0.0, %v1901
        %1903 = vmatmul.f32.gmra.mxu0 %v1777
        %v1904 = vpop.f32.mrf.mxu0
        %v1905 = vadd.f32 0.0, %v1904
        %1906 = vmatmul.f32.gmra.mxu0 %v1780
        %v1907 = vpop.f32.mrf.mxu0
        %v1908 = vadd.f32 0.0, %v1907
        %1909 = vmatmul.f32.gmra.mxu0 %v1783
        %v1910 = vpop.f32.mrf.mxu0
        %v1911 = vadd.f32 0.0, %v1910
        %1912 = vmatmul.f32.gmra.mxu0 %v1786
        %v1913 = vpop.f32.mrf.mxu0
        %v1914 = vadd.f32 0.0, %v1913
        %1915 = vmatmul.f32.gmra.mxu0 %v1789
        %v1916 = vpop.f32.mrf.mxu0
        %v1917 = vadd.f32 0.0, %v1916
        %1918 = vmatmul.f32.gmra.mxu0 %v1792
        %v1919 = vpop.f32.mrf.mxu0
        %v1920 = vadd.f32 0.0, %v1919
        %1921 = vmatmul.f32.gmra.mxu0 %v1795
        %v1922 = vpop.f32.mrf.mxu0
        %v1923 = vadd.f32 0.0, %v1922
        %1924 = vmatmul.f32.gmra.mxu0 %v1798
        %v1925 = vpop.f32.mrf.mxu0
        %v1926 = vadd.f32 0.0, %v1925
        %1927 = vmatmul.f32.gmra.mxu0 %v1801
        %v1928 = vpop.f32.mrf.mxu0
        %v1929 = vadd.f32 0.0, %v1928
        %1930 = vmatmul.f32.gmra.mxu0 %v1804
        %v1931 = vpop.f32.mrf.mxu0
        %v1932 = vadd.f32 0.0, %v1931
        %1933 = vmatmul.f32.gmra.mxu0 %v1807
        %v1934 = vpop.f32.mrf.mxu0
        %v1935 = vadd.f32 0.0, %v1934
        %1936 = vmatmul.f32.gmra.mxu0 %v1810
        %v1937 = vpop.f32.mrf.mxu0
        %v1938 = vadd.f32 0.0, %v1937
        %1939 = vmatmul.f32.gmra.mxu0 %v1813
        %v1940 = vpop.f32.mrf.mxu0
        %v1941 = vadd.f32 0.0, %v1940
        %1942 = vmatmul.f32.gmra.mxu0 %v1816
        %v1943 = vpop.f32.mrf.mxu0
        %v1944 = vadd.f32 0.0, %v1943
        %1945 = vmatmul.f32.gmra.mxu0 %v1819
        %v1946 = vpop.f32.mrf.mxu0
        %v1947 = vadd.f32 0.0, %v1946
        %1948 = vmatmul.f32.gmra.mxu0 %v1822
        %v1949 = vpop.f32.mrf.mxu0
        %v1950 = vadd.f32 0.0, %v1949
        %1951 = vmatmul.f32.gmra.mxu0 %v1825
        %v1952 = vpop.f32.mrf.mxu0
        %v1953 = vadd.f32 0.0, %v1952
        %1954 = vmatmul.f32.gmra.mxu0 %v1828
        %v1955 = vpop.f32.mrf.mxu0
        %v1956 = vadd.f32 0.0, %v1955
        %1957 = vmatmul.f32.gmra.mxu0 %v1831
        %v1958 = vpop.f32.mrf.mxu0
        %v1959 = vadd.f32 0.0, %v1958
        %1960 = vdwg.mxu0
        %v1961 = vadd.f32 %v1651, %v1854
        %v1962 = vadd.f32 %v1652, %v1857
        %v1963 = vadd.f32 %v1653, %v1860
        %v1964 = vadd.f32 %v1654, %v1863
        %v1965 = vadd.f32 %v1655, %v1866
        %v1966 = vadd.f32 %v1656, %v1869
        %v1967 = vadd.f32 %v1657, %v1872
        %v1968 = vadd.f32 %v1658, %v1875
        %v1969 = vadd.f32 %v1659, %v1878
        %v1970 = vadd.f32 %v1660, %v1881
        %v1971 = vadd.f32 %v1661, %v1884
        %v1972 = vadd.f32 %v1662, %v1887
        %v1973 = vadd.f32 %v1663, %v1890
        %v1974 = vadd.f32 %v1664, %v1893
        %v1975 = vadd.f32 %v1665, %v1896
        %v1976 = vadd.f32 %v1666, %v1899
        %v1977 = vadd.f32 %v1667, %v1902
        %v1978 = vadd.f32 %v1668, %v1905
        %v1979 = vadd.f32 %v1669, %v1908
        %v1980 = vadd.f32 %v1670, %v1911
        %v1981 = vadd.f32 %v1671, %v1914
        %v1982 = vadd.f32 %v1672, %v1917
        %v1983 = vadd.f32 %v1673, %v1920
        %v1984 = vadd.f32 %v1674, %v1923
        %v1985 = vadd.f32 %v1675, %v1926
        %v1986 = vadd.f32 %v1676, %v1929
        %v1987 = vadd.f32 %v1677, %v1932
        %v1988 = vadd.f32 %v1678, %v1935
        %v1989 = vadd.f32 %v1679, %v1938
        %v1990 = vadd.f32 %v1680, %v1941
        %v1991 = vadd.f32 %v1681, %v1944
        %v1992 = vadd.f32 %v1682, %v1947
        %v1993 = vadd.f32 %v1683, %v1950
        %v1994 = vadd.f32 %v1684, %v1953
        %v1995 = vadd.f32 %v1685, %v1956
        %v1996 = vadd.f32 %v1686, %v1959
        %v1997 = vld [vmem:[%s207 + $0x24] sm:$0xff]
        %v1998 = vld [vmem:[%s207 + $0x2c] sm:$0xff]
        %v1999 = vld [vmem:[%s207 + $0x34] sm:$0xff]
        %v2000 = vld [vmem:[%s207 + $0x3c] sm:$0xff]
        %v2001 = vld [vmem:[%s207 + $0x44] sm:$0xff]
        %v2002 = vld [vmem:[%s207 + $0x4c] sm:$0xff]
        %v2003 = vld [vmem:[%s207 + $0x54] sm:$0xff]
        %v2004 = vld [vmem:[%s207 + $0x5c] sm:$0xff]
        %v2005 = vld [vmem:[%s207 + $0x64] sm:$0xff]
        %v2006 = vld [vmem:[%s207 + $0x6c] sm:$0xff]
        %v2007 = vld [vmem:[%s207 + $0x74] sm:$0xff]
        %v2008 = vld [vmem:[%s207 + $0x7c] sm:$0xff]
        %v2009 = vld [vmem:[%s207 + $0x84] sm:$0xff]
        %v2010 = vld [vmem:[%s207 + $0x8c] sm:$0xff]
        %v2011 = vld [vmem:[%s207 + $0x94] sm:$0xff]
        %v2012 = vld [vmem:[%s207 + $0x9c] sm:$0xff]
        %v2013 = vld [vmem:[%s207 + $0xa4] sm:$0xff]
        %v2014 = vld [vmem:[%s207 + $0xac] sm:$0xff]
        %v2015 = vld [vmem:[%s207 + $0xb4] sm:$0xff]
        %v2016 = vld [vmem:[%s207 + $0xbc] sm:$0xff]
        %v2017 = vld [vmem:[%s207 + $0xc4] sm:$0xff]
        %v2018 = vld [vmem:[%s207 + $0xcc] sm:$0xff]
        %v2019 = vld [vmem:[%s207 + $0xd4] sm:$0xff]
        %v2020 = vld [vmem:[%s207 + $0xdc] sm:$0xff]
        %v2021 = vld [vmem:[%s207 + $0xe4] sm:$0xff]
        %v2022 = vld [vmem:[%s207 + $0xec] sm:$0xff]
        %v2023 = vld [vmem:[%s207 + $0xf4] sm:$0xff]
        %v2024 = vld [vmem:[%s207 + $0xfc] sm:$0xff]
        %v2025 = vld [vmem:[%s207 + $0x104] sm:$0xff]
        %v2026 = vld [vmem:[%s207 + $0x10c] sm:$0xff]
        %v2027 = vld [vmem:[%s207 + $0x114] sm:$0xff]
        %v2028 = vld [vmem:[%s207 + $0x11c] sm:$0xff]
        %v2029 = vld [vmem:[%s207 + $0x124] sm:$0xff]
        %v2030 = vld [vmem:[%s207 + $0x12c] sm:$0xff]
        %v2031 = vld [vmem:[%s207 + $0x134] sm:$0xff]
        %v2032 = vld [vmem:[%s207 + $0x13c] sm:$0xff]
        %s2033 = scalar_lea.vmem %s1, 24
        %v2034 = vld [vmem:[%s2033] sm:$0xf]
        %v2036 = vsel %vm283, %v1997, 0
        %v2039 = vsel %vm283, %v1998, 0
        %v2042 = vsel %vm283, %v1999, 0
        %v2045 = vsel %vm283, %v2000, 0
        %v2048 = vsel %vm283, %v2001, 0
        %v2051 = vsel %vm283, %v2002, 0
        %v2054 = vsel %vm283, %v2003, 0
        %v2057 = vsel %vm283, %v2004, 0
        %v2060 = vsel %vm283, %v2005, 0
        %v2063 = vsel %vm283, %v2006, 0
        %v2066 = vsel %vm283, %v2007, 0
        %v2069 = vsel %vm283, %v2008, 0
        %v2072 = vsel %vm283, %v2009, 0
        %v2075 = vsel %vm283, %v2010, 0
        %v2078 = vsel %vm283, %v2011, 0
        %v2081 = vsel %vm283, %v2012, 0
        %v2084 = vsel %vm283, %v2013, 0
        %v2087 = vsel %vm283, %v2014, 0
        %v2090 = vsel %vm283, %v2015, 0
        %v2093 = vsel %vm283, %v2016, 0
        %v2096 = vsel %vm283, %v2017, 0
        %v2099 = vsel %vm283, %v2018, 0
        %v2102 = vsel %vm283, %v2019, 0
        %v2105 = vsel %vm283, %v2020, 0
        %v2108 = vsel %vm283, %v2021, 0
        %v2111 = vsel %vm283, %v2022, 0
        %v2114 = vsel %vm283, %v2023, 0
        %v2117 = vsel %vm283, %v2024, 0
        %v2120 = vsel %vm283, %v2025, 0
        %v2123 = vsel %vm283, %v2026, 0
        %v2126 = vsel %vm283, %v2027, 0
        %v2129 = vsel %vm283, %v2028, 0
        %v2132 = vsel %vm283, %v2029, 0
        %v2135 = vsel %vm283, %v2030, 0
        %v2138 = vsel %vm283, %v2031, 0
        %v2141 = vsel %vm283, %v2032, 0
        %v2144 = vsel %vm392, %v2034, 0
        %2146 = vmatpush.msra.mxu0 0.0
        %2147 = vmatpush.msra.mxu0 0.0
        %2148 = vmatpush.msra.mxu0 0.0
        %2149 = vmatpush.msra.mxu0 0.0
        %2150 = vmatpush.msra.mxu0 0.0
        %2151 = vmatpush.msra.mxu0 0.0
        %2152 = vmatpush.msra.mxu0 0.0
        %2153 = vmatpush.msra.mxu0 0.0
        %2154 = vmatpush.msra.mxu0 0.0
        %2155 = vmatpush.msra.mxu0 0.0
        %2156 = vmatpush.msra.mxu0 0.0
        %2157 = vmatpush.msra.mxu0 0.0
        %2158 = vmatpush.msra.mxu0 0.0
        %2159 = vmatpush.msra.mxu0 0.0
        %2160 = vmatpush.msra.mxu0 0.0
        %2161 = vmatpush.msra.mxu0 %v2144
        %2162 = vmatmul.f32.gmra.mxu0 %v2036
        %v2163 = vpop.f32.mrf.mxu0
        %v2164 = vadd.f32 0.0, %v2163
        %2165 = vmatmul.f32.gmra.mxu0 %v2039
        %v2166 = vpop.f32.mrf.mxu0
        %v2167 = vadd.f32 0.0, %v2166
        %2168 = vmatmul.f32.gmra.mxu0 %v2042
        %v2169 = vpop.f32.mrf.mxu0
        %v2170 = vadd.f32 0.0, %v2169
        %2171 = vmatmul.f32.gmra.mxu0 %v2045
        %v2172 = vpop.f32.mrf.mxu0
        %v2173 = vadd.f32 0.0, %v2172
        %2174 = vmatmul.f32.gmra.mxu0 %v2048
        %v2175 = vpop.f32.mrf.mxu0
        %v2176 = vadd.f32 0.0, %v2175
        %2177 = vmatmul.f32.gmra.mxu0 %v2051
        %v2178 = vpop.f32.mrf.mxu0
        %v2179 = vadd.f32 0.0, %v2178
        %2180 = vmatmul.f32.gmra.mxu0 %v2054
        %v2181 = vpop.f32.mrf.mxu0
        %v2182 = vadd.f32 0.0, %v2181
        %2183 = vmatmul.f32.gmra.mxu0 %v2057
        %v2184 = vpop.f32.mrf.mxu0
        %v2185 = vadd.f32 0.0, %v2184
        %2186 = vmatmul.f32.gmra.mxu0 %v2060
        %v2187 = vpop.f32.mrf.mxu0
        %v2188 = vadd.f32 0.0, %v2187
        %2189 = vmatmul.f32.gmra.mxu0 %v2063
        %v2190 = vpop.f32.mrf.mxu0
        %v2191 = vadd.f32 0.0, %v2190
        %2192 = vmatmul.f32.gmra.mxu0 %v2066
        %v2193 = vpop.f32.mrf.mxu0
        %v2194 = vadd.f32 0.0, %v2193
        %2195 = vmatmul.f32.gmra.mxu0 %v2069
        %v2196 = vpop.f32.mrf.mxu0
        %v2197 = vadd.f32 0.0, %v2196
        %2198 = vmatmul.f32.gmra.mxu0 %v2072
        %v2199 = vpop.f32.mrf.mxu0
        %v2200 = vadd.f32 0.0, %v2199
        %2201 = vmatmul.f32.gmra.mxu0 %v2075
        %v2202 = vpop.f32.mrf.mxu0
        %v2203 = vadd.f32 0.0, %v2202
        %2204 = vmatmul.f32.gmra.mxu0 %v2078
        %v2205 = vpop.f32.mrf.mxu0
        %v2206 = vadd.f32 0.0, %v2205
        %2207 = vmatmul.f32.gmra.mxu0 %v2081
        %v2208 = vpop.f32.mrf.mxu0
        %v2209 = vadd.f32 0.0, %v2208
        %2210 = vmatmul.f32.gmra.mxu0 %v2084
        %v2211 = vpop.f32.mrf.mxu0
        %v2212 = vadd.f32 0.0, %v2211
        %2213 = vmatmul.f32.gmra.mxu0 %v2087
        %v2214 = vpop.f32.mrf.mxu0
        %v2215 = vadd.f32 0.0, %v2214
        %2216 = vmatmul.f32.gmra.mxu0 %v2090
        %v2217 = vpop.f32.mrf.mxu0
        %v2218 = vadd.f32 0.0, %v2217
        %2219 = vmatmul.f32.gmra.mxu0 %v2093
        %v2220 = vpop.f32.mrf.mxu0
        %v2221 = vadd.f32 0.0, %v2220
        %2222 = vmatmul.f32.gmra.mxu0 %v2096
        %v2223 = vpop.f32.mrf.mxu0
        %v2224 = vadd.f32 0.0, %v2223
        %2225 = vmatmul.f32.gmra.mxu0 %v2099
        %v2226 = vpop.f32.mrf.mxu0
        %v2227 = vadd.f32 0.0, %v2226
        %2228 = vmatmul.f32.gmra.mxu0 %v2102
        %v2229 = vpop.f32.mrf.mxu0
        %v2230 = vadd.f32 0.0, %v2229
        %2231 = vmatmul.f32.gmra.mxu0 %v2105
        %v2232 = vpop.f32.mrf.mxu0
        %v2233 = vadd.f32 0.0, %v2232
        %2234 = vmatmul.f32.gmra.mxu0 %v2108
        %v2235 = vpop.f32.mrf.mxu0
        %v2236 = vadd.f32 0.0, %v2235
        %2237 = vmatmul.f32.gmra.mxu0 %v2111
        %v2238 = vpop.f32.mrf.mxu0
        %v2239 = vadd.f32 0.0, %v2238
        %2240 = vmatmul.f32.gmra.mxu0 %v2114
        %v2241 = vpop.f32.mrf.mxu0
        %v2242 = vadd.f32 0.0, %v2241
        %2243 = vmatmul.f32.gmra.mxu0 %v2117
        %v2244 = vpop.f32.mrf.mxu0
        %v2245 = vadd.f32 0.0, %v2244
        %2246 = vmatmul.f32.gmra.mxu0 %v2120
        %v2247 = vpop.f32.mrf.mxu0
        %v2248 = vadd.f32 0.0, %v2247
        %2249 = vmatmul.f32.gmra.mxu0 %v2123
        %v2250 = vpop.f32.mrf.mxu0
        %v2251 = vadd.f32 0.0, %v2250
        %2252 = vmatmul.f32.gmra.mxu0 %v2126
        %v2253 = vpop.f32.mrf.mxu0
        %v2254 = vadd.f32 0.0, %v2253
        %2255 = vmatmul.f32.gmra.mxu0 %v2129
        %v2256 = vpop.f32.mrf.mxu0
        %v2257 = vadd.f32 0.0, %v2256
        %2258 = vmatmul.f32.gmra.mxu0 %v2132
        %v2259 = vpop.f32.mrf.mxu0
        %v2260 = vadd.f32 0.0, %v2259
        %2261 = vmatmul.f32.gmra.mxu0 %v2135
        %v2262 = vpop.f32.mrf.mxu0
        %v2263 = vadd.f32 0.0, %v2262
        %2264 = vmatmul.f32.gmra.mxu0 %v2138
        %v2265 = vpop.f32.mrf.mxu0
        %v2266 = vadd.f32 0.0, %v2265
        %2267 = vmatmul.f32.gmra.mxu0 %v2141
        %v2268 = vpop.f32.mrf.mxu0
        %v2269 = vadd.f32 0.0, %v2268
        %2270 = vdwg.mxu0
        %v2271 = vadd.f32 %v1961, %v2164
        %v2272 = vadd.f32 %v1962, %v2167
        %v2273 = vadd.f32 %v1963, %v2170
        %v2274 = vadd.f32 %v1964, %v2173
        %v2275 = vadd.f32 %v1965, %v2176
        %v2276 = vadd.f32 %v1966, %v2179
        %v2277 = vadd.f32 %v1967, %v2182
        %v2278 = vadd.f32 %v1968, %v2185
        %v2279 = vadd.f32 %v1969, %v2188
        %v2280 = vadd.f32 %v1970, %v2191
        %v2281 = vadd.f32 %v1971, %v2194
        %v2282 = vadd.f32 %v1972, %v2197
        %v2283 = vadd.f32 %v1973, %v2200
        %v2284 = vadd.f32 %v1974, %v2203
        %v2285 = vadd.f32 %v1975, %v2206
        %v2286 = vadd.f32 %v1976, %v2209
        %v2287 = vadd.f32 %v1977, %v2212
        %v2288 = vadd.f32 %v1978, %v2215
        %v2289 = vadd.f32 %v1979, %v2218
        %v2290 = vadd.f32 %v1980, %v2221
        %v2291 = vadd.f32 %v1981, %v2224
        %v2292 = vadd.f32 %v1982, %v2227
        %v2293 = vadd.f32 %v1983, %v2230
        %v2294 = vadd.f32 %v1984, %v2233
        %v2295 = vadd.f32 %v1985, %v2236
        %v2296 = vadd.f32 %v1986, %v2239
        %v2297 = vadd.f32 %v1987, %v2242
        %v2298 = vadd.f32 %v1988, %v2245
        %v2299 = vadd.f32 %v1989, %v2248
        %v2300 = vadd.f32 %v1990, %v2251
        %v2301 = vadd.f32 %v1991, %v2254
        %v2302 = vadd.f32 %v1992, %v2257
        %v2303 = vadd.f32 %v1993, %v2260
        %v2304 = vadd.f32 %v1994, %v2263
        %v2305 = vadd.f32 %v1995, %v2266
        %v2306 = vadd.f32 %v1996, %v2269
        %v2307 = vld [vmem:[%s207 + $0x25] sm:$0xff]
        %v2308 = vld [vmem:[%s207 + $0x2d] sm:$0xff]
        %v2309 = vld [vmem:[%s207 + $0x35] sm:$0xff]
        %v2310 = vld [vmem:[%s207 + $0x3d] sm:$0xff]
        %v2311 = vld [vmem:[%s207 + $0x45] sm:$0xff]
        %v2312 = vld [vmem:[%s207 + $0x4d] sm:$0xff]
        %v2313 = vld [vmem:[%s207 + $0x55] sm:$0xff]
        %v2314 = vld [vmem:[%s207 + $0x5d] sm:$0xff]
        %v2315 = vld [vmem:[%s207 + $0x65] sm:$0xff]
        %v2316 = vld [vmem:[%s207 + $0x6d] sm:$0xff]
        %v2317 = vld [vmem:[%s207 + $0x75] sm:$0xff]
        %v2318 = vld [vmem:[%s207 + $0x7d] sm:$0xff]
        %v2319 = vld [vmem:[%s207 + $0x85] sm:$0xff]
        %v2320 = vld [vmem:[%s207 + $0x8d] sm:$0xff]
        %v2321 = vld [vmem:[%s207 + $0x95] sm:$0xff]
        %v2322 = vld [vmem:[%s207 + $0x9d] sm:$0xff]
        %v2323 = vld [vmem:[%s207 + $0xa5] sm:$0xff]
        %v2324 = vld [vmem:[%s207 + $0xad] sm:$0xff]
        %v2325 = vld [vmem:[%s207 + $0xb5] sm:$0xff]
        %v2326 = vld [vmem:[%s207 + $0xbd] sm:$0xff]
        %v2327 = vld [vmem:[%s207 + $0xc5] sm:$0xff]
        %v2328 = vld [vmem:[%s207 + $0xcd] sm:$0xff]
        %v2329 = vld [vmem:[%s207 + $0xd5] sm:$0xff]
        %v2330 = vld [vmem:[%s207 + $0xdd] sm:$0xff]
        %v2331 = vld [vmem:[%s207 + $0xe5] sm:$0xff]
        %v2332 = vld [vmem:[%s207 + $0xed] sm:$0xff]
        %v2333 = vld [vmem:[%s207 + $0xf5] sm:$0xff]
        %v2334 = vld [vmem:[%s207 + $0xfd] sm:$0xff]
        %v2335 = vld [vmem:[%s207 + $0x105] sm:$0xff]
        %v2336 = vld [vmem:[%s207 + $0x10d] sm:$0xff]
        %v2337 = vld [vmem:[%s207 + $0x115] sm:$0xff]
        %v2338 = vld [vmem:[%s207 + $0x11d] sm:$0xff]
        %v2339 = vld [vmem:[%s207 + $0x125] sm:$0xff]
        %v2340 = vld [vmem:[%s207 + $0x12d] sm:$0xff]
        %v2341 = vld [vmem:[%s207 + $0x135] sm:$0xff]
        %v2342 = vld [vmem:[%s207 + $0x13d] sm:$0xff]
        %s2343 = scalar_lea.vmem %s1, 28
        %v2344 = vld [vmem:[%s2343] sm:$0xf]
        %v2346 = vsel %vm283, %v2307, 0
        %v2349 = vsel %vm283, %v2308, 0
        %v2352 = vsel %vm283, %v2309, 0
        %v2355 = vsel %vm283, %v2310, 0
        %v2358 = vsel %vm283, %v2311, 0
        %v2361 = vsel %vm283, %v2312, 0
        %v2364 = vsel %vm283, %v2313, 0
        %v2367 = vsel %vm283, %v2314, 0
        %v2370 = vsel %vm283, %v2315, 0
        %v2373 = vsel %vm283, %v2316, 0
        %v2376 = vsel %vm283, %v2317, 0
        %v2379 = vsel %vm283, %v2318, 0
        %v2382 = vsel %vm283, %v2319, 0
        %v2385 = vsel %vm283, %v2320, 0
        %v2388 = vsel %vm283, %v2321, 0
        %v2391 = vsel %vm283, %v2322, 0
        %v2394 = vsel %vm283, %v2323, 0
        %v2397 = vsel %vm283, %v2324, 0
        %v2400 = vsel %vm283, %v2325, 0
        %v2403 = vsel %vm283, %v2326, 0
        %v2406 = vsel %vm283, %v2327, 0
        %v2409 = vsel %vm283, %v2328, 0
        %v2412 = vsel %vm283, %v2329, 0
        %v2415 = vsel %vm283, %v2330, 0
        %v2418 = vsel %vm283, %v2331, 0
        %v2421 = vsel %vm283, %v2332, 0
        %v2424 = vsel %vm283, %v2333, 0
        %v2427 = vsel %vm283, %v2334, 0
        %v2430 = vsel %vm283, %v2335, 0
        %v2433 = vsel %vm283, %v2336, 0
        %v2436 = vsel %vm283, %v2337, 0
        %v2439 = vsel %vm283, %v2338, 0
        %v2442 = vsel %vm283, %v2339, 0
        %v2445 = vsel %vm283, %v2340, 0
        %v2448 = vsel %vm283, %v2341, 0
        %v2451 = vsel %vm283, %v2342, 0
        %v2454 = vsel %vm392, %v2344, 0
        %2456 = vmatpush.msra.mxu0 0.0
        %2457 = vmatpush.msra.mxu0 0.0
        %2458 = vmatpush.msra.mxu0 0.0
        %2459 = vmatpush.msra.mxu0 0.0
        %2460 = vmatpush.msra.mxu0 0.0
        %2461 = vmatpush.msra.mxu0 0.0
        %2462 = vmatpush.msra.mxu0 0.0
        %2463 = vmatpush.msra.mxu0 0.0
        %2464 = vmatpush.msra.mxu0 0.0
        %2465 = vmatpush.msra.mxu0 0.0
        %2466 = vmatpush.msra.mxu0 0.0
        %2467 = vmatpush.msra.mxu0 0.0
        %2468 = vmatpush.msra.mxu0 0.0
        %2469 = vmatpush.msra.mxu0 0.0
        %2470 = vmatpush.msra.mxu0 0.0
        %2471 = vmatpush.msra.mxu0 %v2454
        %2472 = vmatmul.f32.gmra.mxu0 %v2346
        %v2473 = vpop.f32.mrf.mxu0
        %v2474 = vadd.f32 0.0, %v2473
        %2475 = vmatmul.f32.gmra.mxu0 %v2349
        %v2476 = vpop.f32.mrf.mxu0
        %v2477 = vadd.f32 0.0, %v2476
        %2478 = vmatmul.f32.gmra.mxu0 %v2352
        %v2479 = vpop.f32.mrf.mxu0
        %v2480 = vadd.f32 0.0, %v2479
        %2481 = vmatmul.f32.gmra.mxu0 %v2355
        %v2482 = vpop.f32.mrf.mxu0
        %v2483 = vadd.f32 0.0, %v2482
        %2484 = vmatmul.f32.gmra.mxu0 %v2358
        %v2485 = vpop.f32.mrf.mxu0
        %v2486 = vadd.f32 0.0, %v2485
        %2487 = vmatmul.f32.gmra.mxu0 %v2361
        %v2488 = vpop.f32.mrf.mxu0
        %v2489 = vadd.f32 0.0, %v2488
        %2490 = vmatmul.f32.gmra.mxu0 %v2364
        %v2491 = vpop.f32.mrf.mxu0
        %v2492 = vadd.f32 0.0, %v2491
        %2493 = vmatmul.f32.gmra.mxu0 %v2367
        %v2494 = vpop.f32.mrf.mxu0
        %v2495 = vadd.f32 0.0, %v2494
        %2496 = vmatmul.f32.gmra.mxu0 %v2370
        %v2497 = vpop.f32.mrf.mxu0
        %v2498 = vadd.f32 0.0, %v2497
        %2499 = vmatmul.f32.gmra.mxu0 %v2373
        %v2500 = vpop.f32.mrf.mxu0
        %v2501 = vadd.f32 0.0, %v2500
        %2502 = vmatmul.f32.gmra.mxu0 %v2376
        %v2503 = vpop.f32.mrf.mxu0
        %v2504 = vadd.f32 0.0, %v2503
        %2505 = vmatmul.f32.gmra.mxu0 %v2379
        %v2506 = vpop.f32.mrf.mxu0
        %v2507 = vadd.f32 0.0, %v2506
        %2508 = vmatmul.f32.gmra.mxu0 %v2382
        %v2509 = vpop.f32.mrf.mxu0
        %v2510 = vadd.f32 0.0, %v2509
        %2511 = vmatmul.f32.gmra.mxu0 %v2385
        %v2512 = vpop.f32.mrf.mxu0
        %v2513 = vadd.f32 0.0, %v2512
        %2514 = vmatmul.f32.gmra.mxu0 %v2388
        %v2515 = vpop.f32.mrf.mxu0
        %v2516 = vadd.f32 0.0, %v2515
        %2517 = vmatmul.f32.gmra.mxu0 %v2391
        %v2518 = vpop.f32.mrf.mxu0
        %v2519 = vadd.f32 0.0, %v2518
        %2520 = vmatmul.f32.gmra.mxu0 %v2394
        %v2521 = vpop.f32.mrf.mxu0
        %v2522 = vadd.f32 0.0, %v2521
        %2523 = vmatmul.f32.gmra.mxu0 %v2397
        %v2524 = vpop.f32.mrf.mxu0
        %v2525 = vadd.f32 0.0, %v2524
        %2526 = vmatmul.f32.gmra.mxu0 %v2400
        %v2527 = vpop.f32.mrf.mxu0
        %v2528 = vadd.f32 0.0, %v2527
        %2529 = vmatmul.f32.gmra.mxu0 %v2403
        %v2530 = vpop.f32.mrf.mxu0
        %v2531 = vadd.f32 0.0, %v2530
        %2532 = vmatmul.f32.gmra.mxu0 %v2406
        %v2533 = vpop.f32.mrf.mxu0
        %v2534 = vadd.f32 0.0, %v2533
        %2535 = vmatmul.f32.gmra.mxu0 %v2409
        %v2536 = vpop.f32.mrf.mxu0
        %v2537 = vadd.f32 0.0, %v2536
        %2538 = vmatmul.f32.gmra.mxu0 %v2412
        %v2539 = vpop.f32.mrf.mxu0
        %v2540 = vadd.f32 0.0, %v2539
        %2541 = vmatmul.f32.gmra.mxu0 %v2415
        %v2542 = vpop.f32.mrf.mxu0
        %v2543 = vadd.f32 0.0, %v2542
        %2544 = vmatmul.f32.gmra.mxu0 %v2418
        %v2545 = vpop.f32.mrf.mxu0
        %v2546 = vadd.f32 0.0, %v2545
        %2547 = vmatmul.f32.gmra.mxu0 %v2421
        %v2548 = vpop.f32.mrf.mxu0
        %v2549 = vadd.f32 0.0, %v2548
        %2550 = vmatmul.f32.gmra.mxu0 %v2424
        %v2551 = vpop.f32.mrf.mxu0
        %v2552 = vadd.f32 0.0, %v2551
        %2553 = vmatmul.f32.gmra.mxu0 %v2427
        %v2554 = vpop.f32.mrf.mxu0
        %v2555 = vadd.f32 0.0, %v2554
        %2556 = vmatmul.f32.gmra.mxu0 %v2430
        %v2557 = vpop.f32.mrf.mxu0
        %v2558 = vadd.f32 0.0, %v2557
        %2559 = vmatmul.f32.gmra.mxu0 %v2433
        %v2560 = vpop.f32.mrf.mxu0
        %v2561 = vadd.f32 0.0, %v2560
        %2562 = vmatmul.f32.gmra.mxu0 %v2436
        %v2563 = vpop.f32.mrf.mxu0
        %v2564 = vadd.f32 0.0, %v2563
        %2565 = vmatmul.f32.gmra.mxu0 %v2439
        %v2566 = vpop.f32.mrf.mxu0
        %v2567 = vadd.f32 0.0, %v2566
        %2568 = vmatmul.f32.gmra.mxu0 %v2442
        %v2569 = vpop.f32.mrf.mxu0
        %v2570 = vadd.f32 0.0, %v2569
        %2571 = vmatmul.f32.gmra.mxu0 %v2445
        %v2572 = vpop.f32.mrf.mxu0
        %v2573 = vadd.f32 0.0, %v2572
        %2574 = vmatmul.f32.gmra.mxu0 %v2448
        %v2575 = vpop.f32.mrf.mxu0
        %v2576 = vadd.f32 0.0, %v2575
        %2577 = vmatmul.f32.gmra.mxu0 %v2451
        %v2578 = vpop.f32.mrf.mxu0
        %v2579 = vadd.f32 0.0, %v2578
        %2580 = vdwg.mxu0
        %v2581 = vadd.f32 %v2271, %v2474
        %v2582 = vadd.f32 %v2272, %v2477
        %v2583 = vadd.f32 %v2273, %v2480
        %v2584 = vadd.f32 %v2274, %v2483
        %v2585 = vadd.f32 %v2275, %v2486
        %v2586 = vadd.f32 %v2276, %v2489
        %v2587 = vadd.f32 %v2277, %v2492
        %v2588 = vadd.f32 %v2278, %v2495
        %v2589 = vadd.f32 %v2279, %v2498
        %v2590 = vadd.f32 %v2280, %v2501
        %v2591 = vadd.f32 %v2281, %v2504
        %v2592 = vadd.f32 %v2282, %v2507
        %v2593 = vadd.f32 %v2283, %v2510
        %v2594 = vadd.f32 %v2284, %v2513
        %v2595 = vadd.f32 %v2285, %v2516
        %v2596 = vadd.f32 %v2286, %v2519
        %v2597 = vadd.f32 %v2287, %v2522
        %v2598 = vadd.f32 %v2288, %v2525
        %v2599 = vadd.f32 %v2289, %v2528
        %v2600 = vadd.f32 %v2290, %v2531
        %v2601 = vadd.f32 %v2291, %v2534
        %v2602 = vadd.f32 %v2292, %v2537
        %v2603 = vadd.f32 %v2293, %v2540
        %v2604 = vadd.f32 %v2294, %v2543
        %v2605 = vadd.f32 %v2295, %v2546
        %v2606 = vadd.f32 %v2296, %v2549
        %v2607 = vadd.f32 %v2297, %v2552
        %v2608 = vadd.f32 %v2298, %v2555
        %v2609 = vadd.f32 %v2299, %v2558
        %v2610 = vadd.f32 %v2300, %v2561
        %v2611 = vadd.f32 %v2301, %v2564
        %v2612 = vadd.f32 %v2302, %v2567
        %v2613 = vadd.f32 %v2303, %v2570
        %v2614 = vadd.f32 %v2304, %v2573
        %v2615 = vadd.f32 %v2305, %v2576
        %v2616 = vadd.f32 %v2306, %v2579
        %v2617 = vld [vmem:[%s207 + $0x26] sm:$0xff]
        %v2618 = vld [vmem:[%s207 + $0x2e] sm:$0xff]
        %v2619 = vld [vmem:[%s207 + $0x36] sm:$0xff]
        %v2620 = vld [vmem:[%s207 + $0x3e] sm:$0xff]
        %v2621 = vld [vmem:[%s207 + $0x46] sm:$0xff]
        %v2622 = vld [vmem:[%s207 + $0x4e] sm:$0xff]
        %v2623 = vld [vmem:[%s207 + $0x56] sm:$0xff]
        %v2624 = vld [vmem:[%s207 + $0x5e] sm:$0xff]
        %v2625 = vld [vmem:[%s207 + $0x66] sm:$0xff]
        %v2626 = vld [vmem:[%s207 + $0x6e] sm:$0xff]
        %v2627 = vld [vmem:[%s207 + $0x76] sm:$0xff]
        %v2628 = vld [vmem:[%s207 + $0x7e] sm:$0xff]
        %v2629 = vld [vmem:[%s207 + $0x86] sm:$0xff]
        %v2630 = vld [vmem:[%s207 + $0x8e] sm:$0xff]
        %v2631 = vld [vmem:[%s207 + $0x96] sm:$0xff]
        %v2632 = vld [vmem:[%s207 + $0x9e] sm:$0xff]
        %v2633 = vld [vmem:[%s207 + $0xa6] sm:$0xff]
        %v2634 = vld [vmem:[%s207 + $0xae] sm:$0xff]
        %v2635 = vld [vmem:[%s207 + $0xb6] sm:$0xff]
        %v2636 = vld [vmem:[%s207 + $0xbe] sm:$0xff]
        %v2637 = vld [vmem:[%s207 + $0xc6] sm:$0xff]
        %v2638 = vld [vmem:[%s207 + $0xce] sm:$0xff]
        %v2639 = vld [vmem:[%s207 + $0xd6] sm:$0xff]
        %v2640 = vld [vmem:[%s207 + $0xde] sm:$0xff]
        %v2641 = vld [vmem:[%s207 + $0xe6] sm:$0xff]
        %v2642 = vld [vmem:[%s207 + $0xee] sm:$0xff]
        %v2643 = vld [vmem:[%s207 + $0xf6] sm:$0xff]
        %v2644 = vld [vmem:[%s207 + $0xfe] sm:$0xff]
        %v2645 = vld [vmem:[%s207 + $0x106] sm:$0xff]
        %v2646 = vld [vmem:[%s207 + $0x10e] sm:$0xff]
        %v2647 = vld [vmem:[%s207 + $0x116] sm:$0xff]
        %v2648 = vld [vmem:[%s207 + $0x11e] sm:$0xff]
        %v2649 = vld [vmem:[%s207 + $0x126] sm:$0xff]
        %v2650 = vld [vmem:[%s207 + $0x12e] sm:$0xff]
        %v2651 = vld [vmem:[%s207 + $0x136] sm:$0xff]
        %v2652 = vld [vmem:[%s207 + $0x13e] sm:$0xff]
        %s2653 = scalar_lea.vmem %s1, 32
        %v2654 = vld [vmem:[%s2653] sm:$0xf]
        %v2656 = vsel %vm283, %v2617, 0
        %v2659 = vsel %vm283, %v2618, 0
        %v2662 = vsel %vm283, %v2619, 0
        %v2665 = vsel %vm283, %v2620, 0
        %v2668 = vsel %vm283, %v2621, 0
        %v2671 = vsel %vm283, %v2622, 0
        %v2674 = vsel %vm283, %v2623, 0
        %v2677 = vsel %vm283, %v2624, 0
        %v2680 = vsel %vm283, %v2625, 0
        %v2683 = vsel %vm283, %v2626, 0
        %v2686 = vsel %vm283, %v2627, 0
        %v2689 = vsel %vm283, %v2628, 0
        %v2692 = vsel %vm283, %v2629, 0
        %v2695 = vsel %vm283, %v2630, 0
        %v2698 = vsel %vm283, %v2631, 0
        %v2701 = vsel %vm283, %v2632, 0
        %v2704 = vsel %vm283, %v2633, 0
        %v2707 = vsel %vm283, %v2634, 0
        %v2710 = vsel %vm283, %v2635, 0
        %v2713 = vsel %vm283, %v2636, 0
        %v2716 = vsel %vm283, %v2637, 0
        %v2719 = vsel %vm283, %v2638, 0
        %v2722 = vsel %vm283, %v2639, 0
        %v2725 = vsel %vm283, %v2640, 0
        %v2728 = vsel %vm283, %v2641, 0
        %v2731 = vsel %vm283, %v2642, 0
        %v2734 = vsel %vm283, %v2643, 0
        %v2737 = vsel %vm283, %v2644, 0
        %v2740 = vsel %vm283, %v2645, 0
        %v2743 = vsel %vm283, %v2646, 0
        %v2746 = vsel %vm283, %v2647, 0
        %v2749 = vsel %vm283, %v2648, 0
        %v2752 = vsel %vm283, %v2649, 0
        %v2755 = vsel %vm283, %v2650, 0
        %v2758 = vsel %vm283, %v2651, 0
        %v2761 = vsel %vm283, %v2652, 0
        %v2764 = vsel %vm392, %v2654, 0
        %2766 = vmatpush.msra.mxu0 0.0
        %2767 = vmatpush.msra.mxu0 0.0
        %2768 = vmatpush.msra.mxu0 0.0
        %2769 = vmatpush.msra.mxu0 0.0
        %2770 = vmatpush.msra.mxu0 0.0
        %2771 = vmatpush.msra.mxu0 0.0
        %2772 = vmatpush.msra.mxu0 0.0
        %2773 = vmatpush.msra.mxu0 0.0
        %2774 = vmatpush.msra.mxu0 0.0
        %2775 = vmatpush.msra.mxu0 0.0
        %2776 = vmatpush.msra.mxu0 0.0
        %2777 = vmatpush.msra.mxu0 0.0
        %2778 = vmatpush.msra.mxu0 0.0
        %2779 = vmatpush.msra.mxu0 0.0
        %2780 = vmatpush.msra.mxu0 0.0
        %2781 = vmatpush.msra.mxu0 %v2764
        %2782 = vmatmul.f32.gmra.mxu0 %v2656
        %v2783 = vpop.f32.mrf.mxu0
        %v2784 = vadd.f32 0.0, %v2783
        %2785 = vmatmul.f32.gmra.mxu0 %v2659
        %v2786 = vpop.f32.mrf.mxu0
        %v2787 = vadd.f32 0.0, %v2786
        %2788 = vmatmul.f32.gmra.mxu0 %v2662
        %v2789 = vpop.f32.mrf.mxu0
        %v2790 = vadd.f32 0.0, %v2789
        %2791 = vmatmul.f32.gmra.mxu0 %v2665
        %v2792 = vpop.f32.mrf.mxu0
        %v2793 = vadd.f32 0.0, %v2792
        %2794 = vmatmul.f32.gmra.mxu0 %v2668
        %v2795 = vpop.f32.mrf.mxu0
        %v2796 = vadd.f32 0.0, %v2795
        %2797 = vmatmul.f32.gmra.mxu0 %v2671
        %v2798 = vpop.f32.mrf.mxu0
        %v2799 = vadd.f32 0.0, %v2798
        %2800 = vmatmul.f32.gmra.mxu0 %v2674
        %v2801 = vpop.f32.mrf.mxu0
        %v2802 = vadd.f32 0.0, %v2801
        %2803 = vmatmul.f32.gmra.mxu0 %v2677
        %v2804 = vpop.f32.mrf.mxu0
        %v2805 = vadd.f32 0.0, %v2804
        %2806 = vmatmul.f32.gmra.mxu0 %v2680
        %v2807 = vpop.f32.mrf.mxu0
        %v2808 = vadd.f32 0.0, %v2807
        %2809 = vmatmul.f32.gmra.mxu0 %v2683
        %v2810 = vpop.f32.mrf.mxu0
        %v2811 = vadd.f32 0.0, %v2810
        %2812 = vmatmul.f32.gmra.mxu0 %v2686
        %v2813 = vpop.f32.mrf.mxu0
        %v2814 = vadd.f32 0.0, %v2813
        %2815 = vmatmul.f32.gmra.mxu0 %v2689
        %v2816 = vpop.f32.mrf.mxu0
        %v2817 = vadd.f32 0.0, %v2816
        %2818 = vmatmul.f32.gmra.mxu0 %v2692
        %v2819 = vpop.f32.mrf.mxu0
        %v2820 = vadd.f32 0.0, %v2819
        %2821 = vmatmul.f32.gmra.mxu0 %v2695
        %v2822 = vpop.f32.mrf.mxu0
        %v2823 = vadd.f32 0.0, %v2822
        %2824 = vmatmul.f32.gmra.mxu0 %v2698
        %v2825 = vpop.f32.mrf.mxu0
        %v2826 = vadd.f32 0.0, %v2825
        %2827 = vmatmul.f32.gmra.mxu0 %v2701
        %v2828 = vpop.f32.mrf.mxu0
        %v2829 = vadd.f32 0.0, %v2828
        %2830 = vmatmul.f32.gmra.mxu0 %v2704
        %v2831 = vpop.f32.mrf.mxu0
        %v2832 = vadd.f32 0.0, %v2831
        %2833 = vmatmul.f32.gmra.mxu0 %v2707
        %v2834 = vpop.f32.mrf.mxu0
        %v2835 = vadd.f32 0.0, %v2834
        %2836 = vmatmul.f32.gmra.mxu0 %v2710
        %v2837 = vpop.f32.mrf.mxu0
        %v2838 = vadd.f32 0.0, %v2837
        %2839 = vmatmul.f32.gmra.mxu0 %v2713
        %v2840 = vpop.f32.mrf.mxu0
        %v2841 = vadd.f32 0.0, %v2840
        %2842 = vmatmul.f32.gmra.mxu0 %v2716
        %v2843 = vpop.f32.mrf.mxu0
        %v2844 = vadd.f32 0.0, %v2843
        %2845 = vmatmul.f32.gmra.mxu0 %v2719
        %v2846 = vpop.f32.mrf.mxu0
        %v2847 = vadd.f32 0.0, %v2846
        %2848 = vmatmul.f32.gmra.mxu0 %v2722
        %v2849 = vpop.f32.mrf.mxu0
        %v2850 = vadd.f32 0.0, %v2849
        %2851 = vmatmul.f32.gmra.mxu0 %v2725
        %v2852 = vpop.f32.mrf.mxu0
        %v2853 = vadd.f32 0.0, %v2852
        %2854 = vmatmul.f32.gmra.mxu0 %v2728
        %v2855 = vpop.f32.mrf.mxu0
        %v2856 = vadd.f32 0.0, %v2855
        %2857 = vmatmul.f32.gmra.mxu0 %v2731
        %v2858 = vpop.f32.mrf.mxu0
        %v2859 = vadd.f32 0.0, %v2858
        %2860 = vmatmul.f32.gmra.mxu0 %v2734
        %v2861 = vpop.f32.mrf.mxu0
        %v2862 = vadd.f32 0.0, %v2861
        %2863 = vmatmul.f32.gmra.mxu0 %v2737
        %v2864 = vpop.f32.mrf.mxu0
        %v2865 = vadd.f32 0.0, %v2864
        %2866 = vmatmul.f32.gmra.mxu0 %v2740
        %v2867 = vpop.f32.mrf.mxu0
        %v2868 = vadd.f32 0.0, %v2867
        %2869 = vmatmul.f32.gmra.mxu0 %v2743
        %v2870 = vpop.f32.mrf.mxu0
        %v2871 = vadd.f32 0.0, %v2870
        %2872 = vmatmul.f32.gmra.mxu0 %v2746
        %v2873 = vpop.f32.mrf.mxu0
        %v2874 = vadd.f32 0.0, %v2873
        %2875 = vmatmul.f32.gmra.mxu0 %v2749
        %v2876 = vpop.f32.mrf.mxu0
        %v2877 = vadd.f32 0.0, %v2876
        %2878 = vmatmul.f32.gmra.mxu0 %v2752
        %v2879 = vpop.f32.mrf.mxu0
        %v2880 = vadd.f32 0.0, %v2879
        %2881 = vmatmul.f32.gmra.mxu0 %v2755
        %v2882 = vpop.f32.mrf.mxu0
        %v2883 = vadd.f32 0.0, %v2882
        %2884 = vmatmul.f32.gmra.mxu0 %v2758
        %v2885 = vpop.f32.mrf.mxu0
        %v2886 = vadd.f32 0.0, %v2885
        %2887 = vmatmul.f32.gmra.mxu0 %v2761
        %v2888 = vpop.f32.mrf.mxu0
        %v2889 = vadd.f32 0.0, %v2888
        %2890 = vdwg.mxu0
        %v2891 = vadd.f32 %v2581, %v2784
        %v2892 = vadd.f32 %v2582, %v2787
        %v2893 = vadd.f32 %v2583, %v2790
        %v2894 = vadd.f32 %v2584, %v2793
        %v2895 = vadd.f32 %v2585, %v2796
        %v2896 = vadd.f32 %v2586, %v2799
        %v2897 = vadd.f32 %v2587, %v2802
        %v2898 = vadd.f32 %v2588, %v2805
        %v2899 = vadd.f32 %v2589, %v2808
        %v2900 = vadd.f32 %v2590, %v2811
        %v2901 = vadd.f32 %v2591, %v2814
        %v2902 = vadd.f32 %v2592, %v2817
        %v2903 = vadd.f32 %v2593, %v2820
        %v2904 = vadd.f32 %v2594, %v2823
        %v2905 = vadd.f32 %v2595, %v2826
        %v2906 = vadd.f32 %v2596, %v2829
        %v2907 = vadd.f32 %v2597, %v2832
        %v2908 = vadd.f32 %v2598, %v2835
        %v2909 = vadd.f32 %v2599, %v2838
        %v2910 = vadd.f32 %v2600, %v2841
        %v2911 = vadd.f32 %v2601, %v2844
        %v2912 = vadd.f32 %v2602, %v2847
        %v2913 = vadd.f32 %v2603, %v2850
        %v2914 = vadd.f32 %v2604, %v2853
        %v2915 = vadd.f32 %v2605, %v2856
        %v2916 = vadd.f32 %v2606, %v2859
        %v2917 = vadd.f32 %v2607, %v2862
        %v2918 = vadd.f32 %v2608, %v2865
        %v2919 = vadd.f32 %v2609, %v2868
        %v2920 = vadd.f32 %v2610, %v2871
        %v2921 = vadd.f32 %v2611, %v2874
        %v2922 = vadd.f32 %v2612, %v2877
        %v2923 = vadd.f32 %v2613, %v2880
        %v2924 = vadd.f32 %v2614, %v2883
        %v2925 = vadd.f32 %v2615, %v2886
        %v2926 = vadd.f32 %v2616, %v2889
        %v2927 = vlaneseq
        %v2928 = vshrl.u32 %v2927, 7
        %v2929 = vadd.s32 %v2928, 8
        %v2930 = vadd.s32 %v2928, 16
        %v2931 = vadd.s32 %v2928, 24
        %v2932 = vadd.s32 %v2928, 32
        %v2933 = vadd.s32 %v2928, 40
        %v2934 = vadd.s32 %v2928, 48
        %v2935 = vadd.s32 %v2928, 56
        %v2936 = vadd.s32 %v2928, 64
        %v2937 = vadd.s32 %v2928, 72
        %v2938 = vadd.s32 %v2928, 80
        %v2939 = vadd.s32 %v2928, 88
        %v2940 = vadd.s32 %v2928, 96
        %v2941 = vadd.s32 %v2928, 104
        %v2942 = vadd.s32 %v2928, 112
        %v2943 = vadd.s32 %v2928, 120
        %v2944 = vadd.s32 %v2928, 128
        %v2945 = vadd.s32 %v2928, 136
        %v2946 = vadd.s32 %v2928, 144
        %v2947 = vadd.s32 %v2928, 152
        %v2948 = vadd.s32 %v2928, 160
        %v2949 = vadd.s32 %v2928, 168
        %v2950 = vadd.s32 %v2928, 176
        %v2951 = vadd.s32 %v2928, 184
        %v2952 = vadd.s32 %v2928, 192
        %v2953 = vadd.s32 %v2928, 200
        %v2954 = vadd.s32 %v2928, 208
        %v2955 = vadd.s32 %v2928, 216
        %v2956 = vadd.s32 %v2928, 224
        %v2957 = vadd.s32 %v2928, 232
        %v2958 = vadd.s32 %v2928, 240
        %v2959 = vadd.s32 %v2928, 248
        %v2960 = vadd.s32 %v2928, 256
        %v2961 = vadd.s32 %v2928, 264
        %v2962 = vadd.s32 %v2928, 272
        %v2963 = vadd.s32 %v2928, 280
        %vm2964 = vcmp.lt.s32.totalorder %v2928, 0
        %v2965 = vsub.s32 0, %v2928
        %v2966 = vsel %vm2964, %v2965, %v2928
        %v2967 = vand.u32 %v2966, 65535
        %v2968 = vshrl.u32 %v2966, 16
        %v2970 = vmul.u32 %v2967, 14564
        %v2971 = vmul.u32 %v2967, 58254
        %v2972 = vmul.u32 %v2968, 14564
        %v2973 = vmul.u32 %v2968, 58254
        %v2974 = vshll.u32 %v2971, 16
        %v2975 = vshrl.u32 %v2971, 16
        %v2976 = vshll.u32 %v2972, 16
        %v2977 = vshrl.u32 %v2972, 16
        %vm2978 = vc.u32 %v2970, %v2974
        %v2979 = vsel %vm2978, 1, 0
        %v2980 = vadd.s32 %v2970, %v2974
        %v2981 = vadd.s32 %v2973, %v2979
        %vm2982 = vc.u32 %v2980, %v2976
        %v2983 = vsel %vm2982, 1, 0
        %v2984 = vadd.s32 %v2980, %v2976
        %v2985 = vadd.s32 %v2981, %v2983
        %v2986 = vadd.s32 %v2985, %v2975
        %v2987 = vadd.s32 %v2986, %v2977
        %v2988 = vshrl.u32 %v2987, 4
        %v2989 = vmul.u32 %v2988, 18
        %v2990 = vsub.s32 %v2966, %v2989
        %v2991 = vsub.s32 0, %v2990
        %v2992 = vsel %vm2964, %v2991, %v2990
        %vm2993 = vcmp.lt.s32.totalorder %v2929, 0
        %v2994 = vsub.s32 0, %v2929
        %v2995 = vsel %vm2993, %v2994, %v2929
        %v2996 = vand.u32 %v2995, 65535
        %v2997 = vshrl.u32 %v2995, 16
        %v2999 = vmul.u32 %v2996, 14564
        %v3000 = vmul.u32 %v2996, 58254
        %v3001 = vmul.u32 %v2997, 14564
        %v3002 = vmul.u32 %v2997, 58254
        %v3003 = vshll.u32 %v3000, 16
        %v3004 = vshrl.u32 %v3000, 16
        %v3005 = vshll.u32 %v3001, 16
        %v3006 = vshrl.u32 %v3001, 16
        %vm3007 = vc.u32 %v2999, %v3003
        %v3008 = vsel %vm3007, 1, 0
        %v3009 = vadd.s32 %v2999, %v3003
        %v3010 = vadd.s32 %v3002, %v3008
        %vm3011 = vc.u32 %v3009, %v3005
        %v3012 = vsel %vm3011, 1, 0
        %v3013 = vadd.s32 %v3009, %v3005
        %v3014 = vadd.s32 %v3010, %v3012
        %v3015 = vadd.s32 %v3014, %v3004
        %v3016 = vadd.s32 %v3015, %v3006
        %v3017 = vshrl.u32 %v3016, 4
        %v3018 = vmul.u32 %v3017, 18
        %v3019 = vsub.s32 %v2995, %v3018
        %v3020 = vsub.s32 0, %v3019
        %v3021 = vsel %vm2993, %v3020, %v3019
        %vm3022 = vcmp.lt.s32.totalorder %v2930, 0
        %v3023 = vsub.s32 0, %v2930
        %v3024 = vsel %vm3022, %v3023, %v2930
        %v3025 = vand.u32 %v3024, 65535
        %v3026 = vshrl.u32 %v3024, 16
        %v3028 = vmul.u32 %v3025, 14564
        %v3029 = vmul.u32 %v3025, 58254
        %v3030 = vmul.u32 %v3026, 14564
        %v3031 = vmul.u32 %v3026, 58254
        %v3032 = vshll.u32 %v3029, 16
        %v3033 = vshrl.u32 %v3029, 16
        %v3034 = vshll.u32 %v3030, 16
        %v3035 = vshrl.u32 %v3030, 16
        %vm3036 = vc.u32 %v3028, %v3032
        %v3037 = vsel %vm3036, 1, 0
        %v3038 = vadd.s32 %v3028, %v3032
        %v3039 = vadd.s32 %v3031, %v3037
        %vm3040 = vc.u32 %v3038, %v3034
        %v3041 = vsel %vm3040, 1, 0
        %v3042 = vadd.s32 %v3038, %v3034
        %v3043 = vadd.s32 %v3039, %v3041
        %v3044 = vadd.s32 %v3043, %v3033
        %v3045 = vadd.s32 %v3044, %v3035
        %v3046 = vshrl.u32 %v3045, 4
        %v3047 = vmul.u32 %v3046, 18
        %v3048 = vsub.s32 %v3024, %v3047
        %v3049 = vsub.s32 0, %v3048
        %v3050 = vsel %vm3022, %v3049, %v3048
        %vm3051 = vcmp.lt.s32.totalorder %v2931, 0
        %v3052 = vsub.s32 0, %v2931
        %v3053 = vsel %vm3051, %v3052, %v2931
        %v3054 = vand.u32 %v3053, 65535
        %v3055 = vshrl.u32 %v3053, 16
        %v3057 = vmul.u32 %v3054, 14564
        %v3058 = vmul.u32 %v3054, 58254
        %v3059 = vmul.u32 %v3055, 14564
        %v3060 = vmul.u32 %v3055, 58254
        %v3061 = vshll.u32 %v3058, 16
        %v3062 = vshrl.u32 %v3058, 16
        %v3063 = vshll.u32 %v3059, 16
        %v3064 = vshrl.u32 %v3059, 16
        %vm3065 = vc.u32 %v3057, %v3061
        %v3066 = vsel %vm3065, 1, 0
        %v3067 = vadd.s32 %v3057, %v3061
        %v3068 = vadd.s32 %v3060, %v3066
        %vm3069 = vc.u32 %v3067, %v3063
        %v3070 = vsel %vm3069, 1, 0
        %v3071 = vadd.s32 %v3067, %v3063
        %v3072 = vadd.s32 %v3068, %v3070
        %v3073 = vadd.s32 %v3072, %v3062
        %v3074 = vadd.s32 %v3073, %v3064
        %v3075 = vshrl.u32 %v3074, 4
        %v3076 = vmul.u32 %v3075, 18
        %v3077 = vsub.s32 %v3053, %v3076
        %v3078 = vsub.s32 0, %v3077
        %v3079 = vsel %vm3051, %v3078, %v3077
        %vm3080 = vcmp.lt.s32.totalorder %v2932, 0
        %v3081 = vsub.s32 0, %v2932
        %v3082 = vsel %vm3080, %v3081, %v2932
        %v3083 = vand.u32 %v3082, 65535
        %v3084 = vshrl.u32 %v3082, 16
        %v3086 = vmul.u32 %v3083, 14564
        %v3087 = vmul.u32 %v3083, 58254
        %v3088 = vmul.u32 %v3084, 14564
        %v3089 = vmul.u32 %v3084, 58254
        %v3090 = vshll.u32 %v3087, 16
        %v3091 = vshrl.u32 %v3087, 16
        %v3092 = vshll.u32 %v3088, 16
        %v3093 = vshrl.u32 %v3088, 16
        %vm3094 = vc.u32 %v3086, %v3090
        %v3095 = vsel %vm3094, 1, 0
        %v3096 = vadd.s32 %v3086, %v3090
        %v3097 = vadd.s32 %v3089, %v3095
        %vm3098 = vc.u32 %v3096, %v3092
        %v3099 = vsel %vm3098, 1, 0
        %v3100 = vadd.s32 %v3096, %v3092
        %v3101 = vadd.s32 %v3097, %v3099
        %v3102 = vadd.s32 %v3101, %v3091
        %v3103 = vadd.s32 %v3102, %v3093
        %v3104 = vshrl.u32 %v3103, 4
        %v3105 = vmul.u32 %v3104, 18
        %v3106 = vsub.s32 %v3082, %v3105
        %v3107 = vsub.s32 0, %v3106
        %v3108 = vsel %vm3080, %v3107, %v3106
        %vm3109 = vcmp.lt.s32.totalorder %v2933, 0
        %v3110 = vsub.s32 0, %v2933
        %v3111 = vsel %vm3109, %v3110, %v2933
        %v3112 = vand.u32 %v3111, 65535
        %v3113 = vshrl.u32 %v3111, 16
        %v3115 = vmul.u32 %v3112, 14564
        %v3116 = vmul.u32 %v3112, 58254
        %v3117 = vmul.u32 %v3113, 14564
        %v3118 = vmul.u32 %v3113, 58254
        %v3119 = vshll.u32 %v3116, 16
        %v3120 = vshrl.u32 %v3116, 16
        %v3121 = vshll.u32 %v3117, 16
        %v3122 = vshrl.u32 %v3117, 16
        %vm3123 = vc.u32 %v3115, %v3119
        %v3124 = vsel %vm3123, 1, 0
        %v3125 = vadd.s32 %v3115, %v3119
        %v3126 = vadd.s32 %v3118, %v3124
        %vm3127 = vc.u32 %v3125, %v3121
        %v3128 = vsel %vm3127, 1, 0
        %v3129 = vadd.s32 %v3125, %v3121
        %v3130 = vadd.s32 %v3126, %v3128
        %v3131 = vadd.s32 %v3130, %v3120
        %v3132 = vadd.s32 %v3131, %v3122
        %v3133 = vshrl.u32 %v3132, 4
        %v3134 = vmul.u32 %v3133, 18
        %v3135 = vsub.s32 %v3111, %v3134
        %v3136 = vsub.s32 0, %v3135
        %v3137 = vsel %vm3109, %v3136, %v3135
        %vm3138 = vcmp.lt.s32.totalorder %v2934, 0
        %v3139 = vsub.s32 0, %v2934
        %v3140 = vsel %vm3138, %v3139, %v2934
        %v3141 = vand.u32 %v3140, 65535
        %v3142 = vshrl.u32 %v3140, 16
        %v3144 = vmul.u32 %v3141, 14564
        %v3145 = vmul.u32 %v3141, 58254
        %v3146 = vmul.u32 %v3142, 14564
        %v3147 = vmul.u32 %v3142, 58254
        %v3148 = vshll.u32 %v3145, 16
        %v3149 = vshrl.u32 %v3145, 16
        %v3150 = vshll.u32 %v3146, 16
        %v3151 = vshrl.u32 %v3146, 16
        %vm3152 = vc.u32 %v3144, %v3148
        %v3153 = vsel %vm3152, 1, 0
        %v3154 = vadd.s32 %v3144, %v3148
        %v3155 = vadd.s32 %v3147, %v3153
        %vm3156 = vc.u32 %v3154, %v3150
        %v3157 = vsel %vm3156, 1, 0
        %v3158 = vadd.s32 %v3154, %v3150
        %v3159 = vadd.s32 %v3155, %v3157
        %v3160 = vadd.s32 %v3159, %v3149
        %v3161 = vadd.s32 %v3160, %v3151
        %v3162 = vshrl.u32 %v3161, 4
        %v3163 = vmul.u32 %v3162, 18
        %v3164 = vsub.s32 %v3140, %v3163
        %v3165 = vsub.s32 0, %v3164
        %v3166 = vsel %vm3138, %v3165, %v3164
        %vm3167 = vcmp.lt.s32.totalorder %v2935, 0
        %v3168 = vsub.s32 0, %v2935
        %v3169 = vsel %vm3167, %v3168, %v2935
        %v3170 = vand.u32 %v3169, 65535
        %v3171 = vshrl.u32 %v3169, 16
        %v3173 = vmul.u32 %v3170, 14564
        %v3174 = vmul.u32 %v3170, 58254
        %v3175 = vmul.u32 %v3171, 14564
        %v3176 = vmul.u32 %v3171, 58254
        %v3177 = vshll.u32 %v3174, 16
        %v3178 = vshrl.u32 %v3174, 16
        %v3179 = vshll.u32 %v3175, 16
        %v3180 = vshrl.u32 %v3175, 16
        %vm3181 = vc.u32 %v3173, %v3177
        %v3182 = vsel %vm3181, 1, 0
        %v3183 = vadd.s32 %v3173, %v3177
        %v3184 = vadd.s32 %v3176, %v3182
        %vm3185 = vc.u32 %v3183, %v3179
        %v3186 = vsel %vm3185, 1, 0
        %v3187 = vadd.s32 %v3183, %v3179
        %v3188 = vadd.s32 %v3184, %v3186
        %v3189 = vadd.s32 %v3188, %v3178
        %v3190 = vadd.s32 %v3189, %v3180
        %v3191 = vshrl.u32 %v3190, 4
        %v3192 = vmul.u32 %v3191, 18
        %v3193 = vsub.s32 %v3169, %v3192
        %v3194 = vsub.s32 0, %v3193
        %v3195 = vsel %vm3167, %v3194, %v3193
        %vm3196 = vcmp.lt.s32.totalorder %v2936, 0
        %v3197 = vsub.s32 0, %v2936
        %v3198 = vsel %vm3196, %v3197, %v2936
        %v3199 = vand.u32 %v3198, 65535
        %v3200 = vshrl.u32 %v3198, 16
        %v3202 = vmul.u32 %v3199, 14564
        %v3203 = vmul.u32 %v3199, 58254
        %v3204 = vmul.u32 %v3200, 14564
        %v3205 = vmul.u32 %v3200, 58254
        %v3206 = vshll.u32 %v3203, 16
        %v3207 = vshrl.u32 %v3203, 16
        %v3208 = vshll.u32 %v3204, 16
        %v3209 = vshrl.u32 %v3204, 16
        %vm3210 = vc.u32 %v3202, %v3206
        %v3211 = vsel %vm3210, 1, 0
        %v3212 = vadd.s32 %v3202, %v3206
        %v3213 = vadd.s32 %v3205, %v3211
        %vm3214 = vc.u32 %v3212, %v3208
        %v3215 = vsel %vm3214, 1, 0
        %v3216 = vadd.s32 %v3212, %v3208
        %v3217 = vadd.s32 %v3213, %v3215
        %v3218 = vadd.s32 %v3217, %v3207
        %v3219 = vadd.s32 %v3218, %v3209
        %v3220 = vshrl.u32 %v3219, 4
        %v3221 = vmul.u32 %v3220, 18
        %v3222 = vsub.s32 %v3198, %v3221
        %v3223 = vsub.s32 0, %v3222
        %v3224 = vsel %vm3196, %v3223, %v3222
        %vm3225 = vcmp.lt.s32.totalorder %v2937, 0
        %v3226 = vsub.s32 0, %v2937
        %v3227 = vsel %vm3225, %v3226, %v2937
        %v3228 = vand.u32 %v3227, 65535
        %v3229 = vshrl.u32 %v3227, 16
        %v3231 = vmul.u32 %v3228, 14564
        %v3232 = vmul.u32 %v3228, 58254
        %v3233 = vmul.u32 %v3229, 14564
        %v3234 = vmul.u32 %v3229, 58254
        %v3235 = vshll.u32 %v3232, 16
        %v3236 = vshrl.u32 %v3232, 16
        %v3237 = vshll.u32 %v3233, 16
        %v3238 = vshrl.u32 %v3233, 16
        %vm3239 = vc.u32 %v3231, %v3235
        %v3240 = vsel %vm3239, 1, 0
        %v3241 = vadd.s32 %v3231, %v3235
        %v3242 = vadd.s32 %v3234, %v3240
        %vm3243 = vc.u32 %v3241, %v3237
        %v3244 = vsel %vm3243, 1, 0
        %v3245 = vadd.s32 %v3241, %v3237
        %v3246 = vadd.s32 %v3242, %v3244
        %v3247 = vadd.s32 %v3246, %v3236
        %v3248 = vadd.s32 %v3247, %v3238
        %v3249 = vshrl.u32 %v3248, 4
        %v3250 = vmul.u32 %v3249, 18
        %v3251 = vsub.s32 %v3227, %v3250
        %v3252 = vsub.s32 0, %v3251
        %v3253 = vsel %vm3225, %v3252, %v3251
        %vm3254 = vcmp.lt.s32.totalorder %v2938, 0
        %v3255 = vsub.s32 0, %v2938
        %v3256 = vsel %vm3254, %v3255, %v2938
        %v3257 = vand.u32 %v3256, 65535
        %v3258 = vshrl.u32 %v3256, 16
        %v3260 = vmul.u32 %v3257, 14564
        %v3261 = vmul.u32 %v3257, 58254
        %v3262 = vmul.u32 %v3258, 14564
        %v3263 = vmul.u32 %v3258, 58254
        %v3264 = vshll.u32 %v3261, 16
        %v3265 = vshrl.u32 %v3261, 16
        %v3266 = vshll.u32 %v3262, 16
        %v3267 = vshrl.u32 %v3262, 16
        %vm3268 = vc.u32 %v3260, %v3264
        %v3269 = vsel %vm3268, 1, 0
        %v3270 = vadd.s32 %v3260, %v3264
        %v3271 = vadd.s32 %v3263, %v3269
        %vm3272 = vc.u32 %v3270, %v3266
        %v3273 = vsel %vm3272, 1, 0
        %v3274 = vadd.s32 %v3270, %v3266
        %v3275 = vadd.s32 %v3271, %v3273
        %v3276 = vadd.s32 %v3275, %v3265
        %v3277 = vadd.s32 %v3276, %v3267
        %v3278 = vshrl.u32 %v3277, 4
        %v3279 = vmul.u32 %v3278, 18
        %v3280 = vsub.s32 %v3256, %v3279
        %v3281 = vsub.s32 0, %v3280
        %v3282 = vsel %vm3254, %v3281, %v3280
        %vm3283 = vcmp.lt.s32.totalorder %v2939, 0
        %v3284 = vsub.s32 0, %v2939
        %v3285 = vsel %vm3283, %v3284, %v2939
        %v3286 = vand.u32 %v3285, 65535
        %v3287 = vshrl.u32 %v3285, 16
        %v3289 = vmul.u32 %v3286, 14564
        %v3290 = vmul.u32 %v3286, 58254
        %v3291 = vmul.u32 %v3287, 14564
        %v3292 = vmul.u32 %v3287, 58254
        %v3293 = vshll.u32 %v3290, 16
        %v3294 = vshrl.u32 %v3290, 16
        %v3295 = vshll.u32 %v3291, 16
        %v3296 = vshrl.u32 %v3291, 16
        %vm3297 = vc.u32 %v3289, %v3293
        %v3298 = vsel %vm3297, 1, 0
        %v3299 = vadd.s32 %v3289, %v3293
        %v3300 = vadd.s32 %v3292, %v3298
        %vm3301 = vc.u32 %v3299, %v3295
        %v3302 = vsel %vm3301, 1, 0
        %v3303 = vadd.s32 %v3299, %v3295
        %v3304 = vadd.s32 %v3300, %v3302
        %v3305 = vadd.s32 %v3304, %v3294
        %v3306 = vadd.s32 %v3305, %v3296
        %v3307 = vshrl.u32 %v3306, 4
        %v3308 = vmul.u32 %v3307, 18
        %v3309 = vsub.s32 %v3285, %v3308
        %v3310 = vsub.s32 0, %v3309
        %v3311 = vsel %vm3283, %v3310, %v3309
        %vm3312 = vcmp.lt.s32.totalorder %v2940, 0
        %v3313 = vsub.s32 0, %v2940
        %v3314 = vsel %vm3312, %v3313, %v2940
        %v3315 = vand.u32 %v3314, 65535
        %v3316 = vshrl.u32 %v3314, 16
        %v3318 = vmul.u32 %v3315, 14564
        %v3319 = vmul.u32 %v3315, 58254
        %v3320 = vmul.u32 %v3316, 14564
        %v3321 = vmul.u32 %v3316, 58254
        %v3322 = vshll.u32 %v3319, 16
        %v3323 = vshrl.u32 %v3319, 16
        %v3324 = vshll.u32 %v3320, 16
        %v3325 = vshrl.u32 %v3320, 16
        %vm3326 = vc.u32 %v3318, %v3322
        %v3327 = vsel %vm3326, 1, 0
        %v3328 = vadd.s32 %v3318, %v3322
        %v3329 = vadd.s32 %v3321, %v3327
        %vm3330 = vc.u32 %v3328, %v3324
        %v3331 = vsel %vm3330, 1, 0
        %v3332 = vadd.s32 %v3328, %v3324
        %v3333 = vadd.s32 %v3329, %v3331
        %v3334 = vadd.s32 %v3333, %v3323
        %v3335 = vadd.s32 %v3334, %v3325
        %v3336 = vshrl.u32 %v3335, 4
        %v3337 = vmul.u32 %v3336, 18
        %v3338 = vsub.s32 %v3314, %v3337
        %v3339 = vsub.s32 0, %v3338
        %v3340 = vsel %vm3312, %v3339, %v3338
        %vm3341 = vcmp.lt.s32.totalorder %v2941, 0
        %v3342 = vsub.s32 0, %v2941
        %v3343 = vsel %vm3341, %v3342, %v2941
        %v3344 = vand.u32 %v3343, 65535
        %v3345 = vshrl.u32 %v3343, 16
        %v3347 = vmul.u32 %v3344, 14564
        %v3348 = vmul.u32 %v3344, 58254
        %v3349 = vmul.u32 %v3345, 14564
        %v3350 = vmul.u32 %v3345, 58254
        %v3351 = vshll.u32 %v3348, 16
        %v3352 = vshrl.u32 %v3348, 16
        %v3353 = vshll.u32 %v3349, 16
        %v3354 = vshrl.u32 %v3349, 16
        %vm3355 = vc.u32 %v3347, %v3351
        %v3356 = vsel %vm3355, 1, 0
        %v3357 = vadd.s32 %v3347, %v3351
        %v3358 = vadd.s32 %v3350, %v3356
        %vm3359 = vc.u32 %v3357, %v3353
        %v3360 = vsel %vm3359, 1, 0
        %v3361 = vadd.s32 %v3357, %v3353
        %v3362 = vadd.s32 %v3358, %v3360
        %v3363 = vadd.s32 %v3362, %v3352
        %v3364 = vadd.s32 %v3363, %v3354
        %v3365 = vshrl.u32 %v3364, 4
        %v3366 = vmul.u32 %v3365, 18
        %v3367 = vsub.s32 %v3343, %v3366
        %v3368 = vsub.s32 0, %v3367
        %v3369 = vsel %vm3341, %v3368, %v3367
        %vm3370 = vcmp.lt.s32.totalorder %v2942, 0
        %v3371 = vsub.s32 0, %v2942
        %v3372 = vsel %vm3370, %v3371, %v2942
        %v3373 = vand.u32 %v3372, 65535
        %v3374 = vshrl.u32 %v3372, 16
        %v3376 = vmul.u32 %v3373, 14564
        %v3377 = vmul.u32 %v3373, 58254
        %v3378 = vmul.u32 %v3374, 14564
        %v3379 = vmul.u32 %v3374, 58254
        %v3380 = vshll.u32 %v3377, 16
        %v3381 = vshrl.u32 %v3377, 16
        %v3382 = vshll.u32 %v3378, 16
        %v3383 = vshrl.u32 %v3378, 16
        %vm3384 = vc.u32 %v3376, %v3380
        %v3385 = vsel %vm3384, 1, 0
        %v3386 = vadd.s32 %v3376, %v3380
        %v3387 = vadd.s32 %v3379, %v3385
        %vm3388 = vc.u32 %v3386, %v3382
        %v3389 = vsel %vm3388, 1, 0
        %v3390 = vadd.s32 %v3386, %v3382
        %v3391 = vadd.s32 %v3387, %v3389
        %v3392 = vadd.s32 %v3391, %v3381
        %v3393 = vadd.s32 %v3392, %v3383
        %v3394 = vshrl.u32 %v3393, 4
        %v3395 = vmul.u32 %v3394, 18
        %v3396 = vsub.s32 %v3372, %v3395
        %v3397 = vsub.s32 0, %v3396
        %v3398 = vsel %vm3370, %v3397, %v3396
        %vm3399 = vcmp.lt.s32.totalorder %v2943, 0
        %v3400 = vsub.s32 0, %v2943
        %v3401 = vsel %vm3399, %v3400, %v2943
        %v3402 = vand.u32 %v3401, 65535
        %v3403 = vshrl.u32 %v3401, 16
        %v3405 = vmul.u32 %v3402, 14564
        %v3406 = vmul.u32 %v3402, 58254
        %v3407 = vmul.u32 %v3403, 14564
        %v3408 = vmul.u32 %v3403, 58254
        %v3409 = vshll.u32 %v3406, 16
        %v3410 = vshrl.u32 %v3406, 16
        %v3411 = vshll.u32 %v3407, 16
        %v3412 = vshrl.u32 %v3407, 16
        %vm3413 = vc.u32 %v3405, %v3409
        %v3414 = vsel %vm3413, 1, 0
        %v3415 = vadd.s32 %v3405, %v3409
        %v3416 = vadd.s32 %v3408, %v3414
        %vm3417 = vc.u32 %v3415, %v3411
        %v3418 = vsel %vm3417, 1, 0
        %v3419 = vadd.s32 %v3415, %v3411
        %v3420 = vadd.s32 %v3416, %v3418
        %v3421 = vadd.s32 %v3420, %v3410
        %v3422 = vadd.s32 %v3421, %v3412
        %v3423 = vshrl.u32 %v3422, 4
        %v3424 = vmul.u32 %v3423, 18
        %v3425 = vsub.s32 %v3401, %v3424
        %v3426 = vsub.s32 0, %v3425
        %v3427 = vsel %vm3399, %v3426, %v3425
        %vm3428 = vcmp.lt.s32.totalorder %v2944, 0
        %v3429 = vsub.s32 0, %v2944
        %v3430 = vsel %vm3428, %v3429, %v2944
        %v3431 = vand.u32 %v3430, 65535
        %v3432 = vshrl.u32 %v3430, 16
        %v3434 = vmul.u32 %v3431, 14564
        %v3435 = vmul.u32 %v3431, 58254
        %v3436 = vmul.u32 %v3432, 14564
        %v3437 = vmul.u32 %v3432, 58254
        %v3438 = vshll.u32 %v3435, 16
        %v3439 = vshrl.u32 %v3435, 16
        %v3440 = vshll.u32 %v3436, 16
        %v3441 = vshrl.u32 %v3436, 16
        %vm3442 = vc.u32 %v3434, %v3438
        %v3443 = vsel %vm3442, 1, 0
        %v3444 = vadd.s32 %v3434, %v3438
        %v3445 = vadd.s32 %v3437, %v3443
        %vm3446 = vc.u32 %v3444, %v3440
        %v3447 = vsel %vm3446, 1, 0
        %v3448 = vadd.s32 %v3444, %v3440
        %v3449 = vadd.s32 %v3445, %v3447
        %v3450 = vadd.s32 %v3449, %v3439
        %v3451 = vadd.s32 %v3450, %v3441
        %v3452 = vshrl.u32 %v3451, 4
        %v3453 = vmul.u32 %v3452, 18
        %v3454 = vsub.s32 %v3430, %v3453
        %v3455 = vsub.s32 0, %v3454
        %v3456 = vsel %vm3428, %v3455, %v3454
        %vm3457 = vcmp.lt.s32.totalorder %v2945, 0
        %v3458 = vsub.s32 0, %v2945
        %v3459 = vsel %vm3457, %v3458, %v2945
        %v3460 = vand.u32 %v3459, 65535
        %v3461 = vshrl.u32 %v3459, 16
        %v3463 = vmul.u32 %v3460, 14564
        %v3464 = vmul.u32 %v3460, 58254
        %v3465 = vmul.u32 %v3461, 14564
        %v3466 = vmul.u32 %v3461, 58254
        %v3467 = vshll.u32 %v3464, 16
        %v3468 = vshrl.u32 %v3464, 16
        %v3469 = vshll.u32 %v3465, 16
        %v3470 = vshrl.u32 %v3465, 16
        %vm3471 = vc.u32 %v3463, %v3467
        %v3472 = vsel %vm3471, 1, 0
        %v3473 = vadd.s32 %v3463, %v3467
        %v3474 = vadd.s32 %v3466, %v3472
        %vm3475 = vc.u32 %v3473, %v3469
        %v3476 = vsel %vm3475, 1, 0
        %v3477 = vadd.s32 %v3473, %v3469
        %v3478 = vadd.s32 %v3474, %v3476
        %v3479 = vadd.s32 %v3478, %v3468
        %v3480 = vadd.s32 %v3479, %v3470
        %v3481 = vshrl.u32 %v3480, 4
        %v3482 = vmul.u32 %v3481, 18
        %v3483 = vsub.s32 %v3459, %v3482
        %v3484 = vsub.s32 0, %v3483
        %v3485 = vsel %vm3457, %v3484, %v3483
        %vm3486 = vcmp.lt.s32.totalorder %v2946, 0
        %v3487 = vsub.s32 0, %v2946
        %v3488 = vsel %vm3486, %v3487, %v2946
        %v3489 = vand.u32 %v3488, 65535
        %v3490 = vshrl.u32 %v3488, 16
        %v3492 = vmul.u32 %v3489, 14564
        %v3493 = vmul.u32 %v3489, 58254
        %v3494 = vmul.u32 %v3490, 14564
        %v3495 = vmul.u32 %v3490, 58254
        %v3496 = vshll.u32 %v3493, 16
        %v3497 = vshrl.u32 %v3493, 16
        %v3498 = vshll.u32 %v3494, 16
        %v3499 = vshrl.u32 %v3494, 16
        %vm3500 = vc.u32 %v3492, %v3496
        %v3501 = vsel %vm3500, 1, 0
        %v3502 = vadd.s32 %v3492, %v3496
        %v3503 = vadd.s32 %v3495, %v3501
        %vm3504 = vc.u32 %v3502, %v3498
        %v3505 = vsel %vm3504, 1, 0
        %v3506 = vadd.s32 %v3502, %v3498
        %v3507 = vadd.s32 %v3503, %v3505
        %v3508 = vadd.s32 %v3507, %v3497
        %v3509 = vadd.s32 %v3508, %v3499
        %v3510 = vshrl.u32 %v3509, 4
        %v3511 = vmul.u32 %v3510, 18
        %v3512 = vsub.s32 %v3488, %v3511
        %v3513 = vsub.s32 0, %v3512
        %v3514 = vsel %vm3486, %v3513, %v3512
        %vm3515 = vcmp.lt.s32.totalorder %v2947, 0
        %v3516 = vsub.s32 0, %v2947
        %v3517 = vsel %vm3515, %v3516, %v2947
        %v3518 = vand.u32 %v3517, 65535
        %v3519 = vshrl.u32 %v3517, 16
        %v3521 = vmul.u32 %v3518, 14564
        %v3522 = vmul.u32 %v3518, 58254
        %v3523 = vmul.u32 %v3519, 14564
        %v3524 = vmul.u32 %v3519, 58254
        %v3525 = vshll.u32 %v3522, 16
        %v3526 = vshrl.u32 %v3522, 16
        %v3527 = vshll.u32 %v3523, 16
        %v3528 = vshrl.u32 %v3523, 16
        %vm3529 = vc.u32 %v3521, %v3525
        %v3530 = vsel %vm3529, 1, 0
        %v3531 = vadd.s32 %v3521, %v3525
        %v3532 = vadd.s32 %v3524, %v3530
        %vm3533 = vc.u32 %v3531, %v3527
        %v3534 = vsel %vm3533, 1, 0
        %v3535 = vadd.s32 %v3531, %v3527
        %v3536 = vadd.s32 %v3532, %v3534
        %v3537 = vadd.s32 %v3536, %v3526
        %v3538 = vadd.s32 %v3537, %v3528
        %v3539 = vshrl.u32 %v3538, 4
        %v3540 = vmul.u32 %v3539, 18
        %v3541 = vsub.s32 %v3517, %v3540
        %v3542 = vsub.s32 0, %v3541
        %v3543 = vsel %vm3515, %v3542, %v3541
        %vm3544 = vcmp.lt.s32.totalorder %v2948, 0
        %v3545 = vsub.s32 0, %v2948
        %v3546 = vsel %vm3544, %v3545, %v2948
        %v3547 = vand.u32 %v3546, 65535
        %v3548 = vshrl.u32 %v3546, 16
        %v3550 = vmul.u32 %v3547, 14564
        %v3551 = vmul.u32 %v3547, 58254
        %v3552 = vmul.u32 %v3548, 14564
        %v3553 = vmul.u32 %v3548, 58254
        %v3554 = vshll.u32 %v3551, 16
        %v3555 = vshrl.u32 %v3551, 16
        %v3556 = vshll.u32 %v3552, 16
        %v3557 = vshrl.u32 %v3552, 16
        %vm3558 = vc.u32 %v3550, %v3554
        %v3559 = vsel %vm3558, 1, 0
        %v3560 = vadd.s32 %v3550, %v3554
        %v3561 = vadd.s32 %v3553, %v3559
        %vm3562 = vc.u32 %v3560, %v3556
        %v3563 = vsel %vm3562, 1, 0
        %v3564 = vadd.s32 %v3560, %v3556
        %v3565 = vadd.s32 %v3561, %v3563
        %v3566 = vadd.s32 %v3565, %v3555
        %v3567 = vadd.s32 %v3566, %v3557
        %v3568 = vshrl.u32 %v3567, 4
        %v3569 = vmul.u32 %v3568, 18
        %v3570 = vsub.s32 %v3546, %v3569
        %v3571 = vsub.s32 0, %v3570
        %v3572 = vsel %vm3544, %v3571, %v3570
        %vm3573 = vcmp.lt.s32.totalorder %v2949, 0
        %v3574 = vsub.s32 0, %v2949
        %v3575 = vsel %vm3573, %v3574, %v2949
        %v3576 = vand.u32 %v3575, 65535
        %v3577 = vshrl.u32 %v3575, 16
        %v3579 = vmul.u32 %v3576, 14564
        %v3580 = vmul.u32 %v3576, 58254
        %v3581 = vmul.u32 %v3577, 14564
        %v3582 = vmul.u32 %v3577, 58254
        %v3583 = vshll.u32 %v3580, 16
        %v3584 = vshrl.u32 %v3580, 16
        %v3585 = vshll.u32 %v3581, 16
        %v3586 = vshrl.u32 %v3581, 16
        %vm3587 = vc.u32 %v3579, %v3583
        %v3588 = vsel %vm3587, 1, 0
        %v3589 = vadd.s32 %v3579, %v3583
        %v3590 = vadd.s32 %v3582, %v3588
        %vm3591 = vc.u32 %v3589, %v3585
        %v3592 = vsel %vm3591, 1, 0
        %v3593 = vadd.s32 %v3589, %v3585
        %v3594 = vadd.s32 %v3590, %v3592
        %v3595 = vadd.s32 %v3594, %v3584
        %v3596 = vadd.s32 %v3595, %v3586
        %v3597 = vshrl.u32 %v3596, 4
        %v3598 = vmul.u32 %v3597, 18
        %v3599 = vsub.s32 %v3575, %v3598
        %v3600 = vsub.s32 0, %v3599
        %v3601 = vsel %vm3573, %v3600, %v3599
        %vm3602 = vcmp.lt.s32.totalorder %v2950, 0
        %v3603 = vsub.s32 0, %v2950
        %v3604 = vsel %vm3602, %v3603, %v2950
        %v3605 = vand.u32 %v3604, 65535
        %v3606 = vshrl.u32 %v3604, 16
        %v3608 = vmul.u32 %v3605, 14564
        %v3609 = vmul.u32 %v3605, 58254
        %v3610 = vmul.u32 %v3606, 14564
        %v3611 = vmul.u32 %v3606, 58254
        %v3612 = vshll.u32 %v3609, 16
        %v3613 = vshrl.u32 %v3609, 16
        %v3614 = vshll.u32 %v3610, 16
        %v3615 = vshrl.u32 %v3610, 16
        %vm3616 = vc.u32 %v3608, %v3612
        %v3617 = vsel %vm3616, 1, 0
        %v3618 = vadd.s32 %v3608, %v3612
        %v3619 = vadd.s32 %v3611, %v3617
        %vm3620 = vc.u32 %v3618, %v3614
        %v3621 = vsel %vm3620, 1, 0
        %v3622 = vadd.s32 %v3618, %v3614
        %v3623 = vadd.s32 %v3619, %v3621
        %v3624 = vadd.s32 %v3623, %v3613
        %v3625 = vadd.s32 %v3624, %v3615
        %v3626 = vshrl.u32 %v3625, 4
        %v3627 = vmul.u32 %v3626, 18
        %v3628 = vsub.s32 %v3604, %v3627
        %v3629 = vsub.s32 0, %v3628
        %v3630 = vsel %vm3602, %v3629, %v3628
        %vm3631 = vcmp.lt.s32.totalorder %v2951, 0
        %v3632 = vsub.s32 0, %v2951
        %v3633 = vsel %vm3631, %v3632, %v2951
        %v3634 = vand.u32 %v3633, 65535
        %v3635 = vshrl.u32 %v3633, 16
        %v3637 = vmul.u32 %v3634, 14564
        %v3638 = vmul.u32 %v3634, 58254
        %v3639 = vmul.u32 %v3635, 14564
        %v3640 = vmul.u32 %v3635, 58254
        %v3641 = vshll.u32 %v3638, 16
        %v3642 = vshrl.u32 %v3638, 16
        %v3643 = vshll.u32 %v3639, 16
        %v3644 = vshrl.u32 %v3639, 16
        %vm3645 = vc.u32 %v3637, %v3641
        %v3646 = vsel %vm3645, 1, 0
        %v3647 = vadd.s32 %v3637, %v3641
        %v3648 = vadd.s32 %v3640, %v3646
        %vm3649 = vc.u32 %v3647, %v3643
        %v3650 = vsel %vm3649, 1, 0
        %v3651 = vadd.s32 %v3647, %v3643
        %v3652 = vadd.s32 %v3648, %v3650
        %v3653 = vadd.s32 %v3652, %v3642
        %v3654 = vadd.s32 %v3653, %v3644
        %v3655 = vshrl.u32 %v3654, 4
        %v3656 = vmul.u32 %v3655, 18
        %v3657 = vsub.s32 %v3633, %v3656
        %v3658 = vsub.s32 0, %v3657
        %v3659 = vsel %vm3631, %v3658, %v3657
        %vm3660 = vcmp.lt.s32.totalorder %v2952, 0
        %v3661 = vsub.s32 0, %v2952
        %v3662 = vsel %vm3660, %v3661, %v2952
        %v3663 = vand.u32 %v3662, 65535
        %v3664 = vshrl.u32 %v3662, 16
        %v3666 = vmul.u32 %v3663, 14564
        %v3667 = vmul.u32 %v3663, 58254
        %v3668 = vmul.u32 %v3664, 14564
        %v3669 = vmul.u32 %v3664, 58254
        %v3670 = vshll.u32 %v3667, 16
        %v3671 = vshrl.u32 %v3667, 16
        %v3672 = vshll.u32 %v3668, 16
        %v3673 = vshrl.u32 %v3668, 16
        %vm3674 = vc.u32 %v3666, %v3670
        %v3675 = vsel %vm3674, 1, 0
        %v3676 = vadd.s32 %v3666, %v3670
        %v3677 = vadd.s32 %v3669, %v3675
        %vm3678 = vc.u32 %v3676, %v3672
        %v3679 = vsel %vm3678, 1, 0
        %v3680 = vadd.s32 %v3676, %v3672
        %v3681 = vadd.s32 %v3677, %v3679
        %v3682 = vadd.s32 %v3681, %v3671
        %v3683 = vadd.s32 %v3682, %v3673
        %v3684 = vshrl.u32 %v3683, 4
        %v3685 = vmul.u32 %v3684, 18
        %v3686 = vsub.s32 %v3662, %v3685
        %v3687 = vsub.s32 0, %v3686
        %v3688 = vsel %vm3660, %v3687, %v3686
        %vm3689 = vcmp.lt.s32.totalorder %v2953, 0
        %v3690 = vsub.s32 0, %v2953
        %v3691 = vsel %vm3689, %v3690, %v2953
        %v3692 = vand.u32 %v3691, 65535
        %v3693 = vshrl.u32 %v3691, 16
        %v3695 = vmul.u32 %v3692, 14564
        %v3696 = vmul.u32 %v3692, 58254
        %v3697 = vmul.u32 %v3693, 14564
        %v3698 = vmul.u32 %v3693, 58254
        %v3699 = vshll.u32 %v3696, 16
        %v3700 = vshrl.u32 %v3696, 16
        %v3701 = vshll.u32 %v3697, 16
        %v3702 = vshrl.u32 %v3697, 16
        %vm3703 = vc.u32 %v3695, %v3699
        %v3704 = vsel %vm3703, 1, 0
        %v3705 = vadd.s32 %v3695, %v3699
        %v3706 = vadd.s32 %v3698, %v3704
        %vm3707 = vc.u32 %v3705, %v3701
        %v3708 = vsel %vm3707, 1, 0
        %v3709 = vadd.s32 %v3705, %v3701
        %v3710 = vadd.s32 %v3706, %v3708
        %v3711 = vadd.s32 %v3710, %v3700
        %v3712 = vadd.s32 %v3711, %v3702
        %v3713 = vshrl.u32 %v3712, 4
        %v3714 = vmul.u32 %v3713, 18
        %v3715 = vsub.s32 %v3691, %v3714
        %v3716 = vsub.s32 0, %v3715
        %v3717 = vsel %vm3689, %v3716, %v3715
        %vm3718 = vcmp.lt.s32.totalorder %v2954, 0
        %v3719 = vsub.s32 0, %v2954
        %v3720 = vsel %vm3718, %v3719, %v2954
        %v3721 = vand.u32 %v3720, 65535
        %v3722 = vshrl.u32 %v3720, 16
        %v3724 = vmul.u32 %v3721, 14564
        %v3725 = vmul.u32 %v3721, 58254
        %v3726 = vmul.u32 %v3722, 14564
        %v3727 = vmul.u32 %v3722, 58254
        %v3728 = vshll.u32 %v3725, 16
        %v3729 = vshrl.u32 %v3725, 16
        %v3730 = vshll.u32 %v3726, 16
        %v3731 = vshrl.u32 %v3726, 16
        %vm3732 = vc.u32 %v3724, %v3728
        %v3733 = vsel %vm3732, 1, 0
        %v3734 = vadd.s32 %v3724, %v3728
        %v3735 = vadd.s32 %v3727, %v3733
        %vm3736 = vc.u32 %v3734, %v3730
        %v3737 = vsel %vm3736, 1, 0
        %v3738 = vadd.s32 %v3734, %v3730
        %v3739 = vadd.s32 %v3735, %v3737
        %v3740 = vadd.s32 %v3739, %v3729
        %v3741 = vadd.s32 %v3740, %v3731
        %v3742 = vshrl.u32 %v3741, 4
        %v3743 = vmul.u32 %v3742, 18
        %v3744 = vsub.s32 %v3720, %v3743
        %v3745 = vsub.s32 0, %v3744
        %v3746 = vsel %vm3718, %v3745, %v3744
        %vm3747 = vcmp.lt.s32.totalorder %v2955, 0
        %v3748 = vsub.s32 0, %v2955
        %v3749 = vsel %vm3747, %v3748, %v2955
        %v3750 = vand.u32 %v3749, 65535
        %v3751 = vshrl.u32 %v3749, 16
        %v3753 = vmul.u32 %v3750, 14564
        %v3754 = vmul.u32 %v3750, 58254
        %v3755 = vmul.u32 %v3751, 14564
        %v3756 = vmul.u32 %v3751, 58254
        %v3757 = vshll.u32 %v3754, 16
        %v3758 = vshrl.u32 %v3754, 16
        %v3759 = vshll.u32 %v3755, 16
        %v3760 = vshrl.u32 %v3755, 16
        %vm3761 = vc.u32 %v3753, %v3757
        %v3762 = vsel %vm3761, 1, 0
        %v3763 = vadd.s32 %v3753, %v3757
        %v3764 = vadd.s32 %v3756, %v3762
        %vm3765 = vc.u32 %v3763, %v3759
        %v3766 = vsel %vm3765, 1, 0
        %v3767 = vadd.s32 %v3763, %v3759
        %v3768 = vadd.s32 %v3764, %v3766
        %v3769 = vadd.s32 %v3768, %v3758
        %v3770 = vadd.s32 %v3769, %v3760
        %v3771 = vshrl.u32 %v3770, 4
        %v3772 = vmul.u32 %v3771, 18
        %v3773 = vsub.s32 %v3749, %v3772
        %v3774 = vsub.s32 0, %v3773
        %v3775 = vsel %vm3747, %v3774, %v3773
        %vm3776 = vcmp.lt.s32.totalorder %v2956, 0
        %v3777 = vsub.s32 0, %v2956
        %v3778 = vsel %vm3776, %v3777, %v2956
        %v3779 = vand.u32 %v3778, 65535
        %v3780 = vshrl.u32 %v3778, 16
        %v3782 = vmul.u32 %v3779, 14564
        %v3783 = vmul.u32 %v3779, 58254
        %v3784 = vmul.u32 %v3780, 14564
        %v3785 = vmul.u32 %v3780, 58254
        %v3786 = vshll.u32 %v3783, 16
        %v3787 = vshrl.u32 %v3783, 16
        %v3788 = vshll.u32 %v3784, 16
        %v3789 = vshrl.u32 %v3784, 16
        %vm3790 = vc.u32 %v3782, %v3786
        %v3791 = vsel %vm3790, 1, 0
        %v3792 = vadd.s32 %v3782, %v3786
        %v3793 = vadd.s32 %v3785, %v3791
        %vm3794 = vc.u32 %v3792, %v3788
        %v3795 = vsel %vm3794, 1, 0
        %v3796 = vadd.s32 %v3792, %v3788
        %v3797 = vadd.s32 %v3793, %v3795
        %v3798 = vadd.s32 %v3797, %v3787
        %v3799 = vadd.s32 %v3798, %v3789
        %v3800 = vshrl.u32 %v3799, 4
        %v3801 = vmul.u32 %v3800, 18
        %v3802 = vsub.s32 %v3778, %v3801
        %v3803 = vsub.s32 0, %v3802
        %v3804 = vsel %vm3776, %v3803, %v3802
        %vm3805 = vcmp.lt.s32.totalorder %v2957, 0
        %v3806 = vsub.s32 0, %v2957
        %v3807 = vsel %vm3805, %v3806, %v2957
        %v3808 = vand.u32 %v3807, 65535
        %v3809 = vshrl.u32 %v3807, 16
        %v3811 = vmul.u32 %v3808, 14564
        %v3812 = vmul.u32 %v3808, 58254
        %v3813 = vmul.u32 %v3809, 14564
        %v3814 = vmul.u32 %v3809, 58254
        %v3815 = vshll.u32 %v3812, 16
        %v3816 = vshrl.u32 %v3812, 16
        %v3817 = vshll.u32 %v3813, 16
        %v3818 = vshrl.u32 %v3813, 16
        %vm3819 = vc.u32 %v3811, %v3815
        %v3820 = vsel %vm3819, 1, 0
        %v3821 = vadd.s32 %v3811, %v3815
        %v3822 = vadd.s32 %v3814, %v3820
        %vm3823 = vc.u32 %v3821, %v3817
        %v3824 = vsel %vm3823, 1, 0
        %v3825 = vadd.s32 %v3821, %v3817
        %v3826 = vadd.s32 %v3822, %v3824
        %v3827 = vadd.s32 %v3826, %v3816
        %v3828 = vadd.s32 %v3827, %v3818
        %v3829 = vshrl.u32 %v3828, 4
        %v3830 = vmul.u32 %v3829, 18
        %v3831 = vsub.s32 %v3807, %v3830
        %v3832 = vsub.s32 0, %v3831
        %v3833 = vsel %vm3805, %v3832, %v3831
        %vm3834 = vcmp.lt.s32.totalorder %v2958, 0
        %v3835 = vsub.s32 0, %v2958
        %v3836 = vsel %vm3834, %v3835, %v2958
        %v3837 = vand.u32 %v3836, 65535
        %v3838 = vshrl.u32 %v3836, 16
        %v3840 = vmul.u32 %v3837, 14564
        %v3841 = vmul.u32 %v3837, 58254
        %v3842 = vmul.u32 %v3838, 14564
        %v3843 = vmul.u32 %v3838, 58254
        %v3844 = vshll.u32 %v3841, 16
        %v3845 = vshrl.u32 %v3841, 16
        %v3846 = vshll.u32 %v3842, 16
        %v3847 = vshrl.u32 %v3842, 16
        %vm3848 = vc.u32 %v3840, %v3844
        %v3849 = vsel %vm3848, 1, 0
        %v3850 = vadd.s32 %v3840, %v3844
        %v3851 = vadd.s32 %v3843, %v3849
        %vm3852 = vc.u32 %v3850, %v3846
        %v3853 = vsel %vm3852, 1, 0
        %v3854 = vadd.s32 %v3850, %v3846
        %v3855 = vadd.s32 %v3851, %v3853
        %v3856 = vadd.s32 %v3855, %v3845
        %v3857 = vadd.s32 %v3856, %v3847
        %v3858 = vshrl.u32 %v3857, 4
        %v3859 = vmul.u32 %v3858, 18
        %v3860 = vsub.s32 %v3836, %v3859
        %v3861 = vsub.s32 0, %v3860
        %v3862 = vsel %vm3834, %v3861, %v3860
        %vm3863 = vcmp.lt.s32.totalorder %v2959, 0
        %v3864 = vsub.s32 0, %v2959
        %v3865 = vsel %vm3863, %v3864, %v2959
        %v3866 = vand.u32 %v3865, 65535
        %v3867 = vshrl.u32 %v3865, 16
        %v3869 = vmul.u32 %v3866, 14564
        %v3870 = vmul.u32 %v3866, 58254
        %v3871 = vmul.u32 %v3867, 14564
        %v3872 = vmul.u32 %v3867, 58254
        %v3873 = vshll.u32 %v3870, 16
        %v3874 = vshrl.u32 %v3870, 16
        %v3875 = vshll.u32 %v3871, 16
        %v3876 = vshrl.u32 %v3871, 16
        %vm3877 = vc.u32 %v3869, %v3873
        %v3878 = vsel %vm3877, 1, 0
        %v3879 = vadd.s32 %v3869, %v3873
        %v3880 = vadd.s32 %v3872, %v3878
        %vm3881 = vc.u32 %v3879, %v3875
        %v3882 = vsel %vm3881, 1, 0
        %v3883 = vadd.s32 %v3879, %v3875
        %v3884 = vadd.s32 %v3880, %v3882
        %v3885 = vadd.s32 %v3884, %v3874
        %v3886 = vadd.s32 %v3885, %v3876
        %v3887 = vshrl.u32 %v3886, 4
        %v3888 = vmul.u32 %v3887, 18
        %v3889 = vsub.s32 %v3865, %v3888
        %v3890 = vsub.s32 0, %v3889
        %v3891 = vsel %vm3863, %v3890, %v3889
        %vm3892 = vcmp.lt.s32.totalorder %v2960, 0
        %v3893 = vsub.s32 0, %v2960
        %v3894 = vsel %vm3892, %v3893, %v2960
        %v3895 = vand.u32 %v3894, 65535
        %v3896 = vshrl.u32 %v3894, 16
        %v3898 = vmul.u32 %v3895, 14564
        %v3899 = vmul.u32 %v3895, 58254
        %v3900 = vmul.u32 %v3896, 14564
        %v3901 = vmul.u32 %v3896, 58254
        %v3902 = vshll.u32 %v3899, 16
        %v3903 = vshrl.u32 %v3899, 16
        %v3904 = vshll.u32 %v3900, 16
        %v3905 = vshrl.u32 %v3900, 16
        %vm3906 = vc.u32 %v3898, %v3902
        %v3907 = vsel %vm3906, 1, 0
        %v3908 = vadd.s32 %v3898, %v3902
        %v3909 = vadd.s32 %v3901, %v3907
        %vm3910 = vc.u32 %v3908, %v3904
        %v3911 = vsel %vm3910, 1, 0
        %v3912 = vadd.s32 %v3908, %v3904
        %v3913 = vadd.s32 %v3909, %v3911
        %v3914 = vadd.s32 %v3913, %v3903
        %v3915 = vadd.s32 %v3914, %v3905
        %v3916 = vshrl.u32 %v3915, 4
        %v3917 = vmul.u32 %v3916, 18
        %v3918 = vsub.s32 %v3894, %v3917
        %v3919 = vsub.s32 0, %v3918
        %v3920 = vsel %vm3892, %v3919, %v3918
        %vm3921 = vcmp.lt.s32.totalorder %v2961, 0
        %v3922 = vsub.s32 0, %v2961
        %v3923 = vsel %vm3921, %v3922, %v2961
        %v3924 = vand.u32 %v3923, 65535
        %v3925 = vshrl.u32 %v3923, 16
        %v3927 = vmul.u32 %v3924, 14564
        %v3928 = vmul.u32 %v3924, 58254
        %v3929 = vmul.u32 %v3925, 14564
        %v3930 = vmul.u32 %v3925, 58254
        %v3931 = vshll.u32 %v3928, 16
        %v3932 = vshrl.u32 %v3928, 16
        %v3933 = vshll.u32 %v3929, 16
        %v3934 = vshrl.u32 %v3929, 16
        %vm3935 = vc.u32 %v3927, %v3931
        %v3936 = vsel %vm3935, 1, 0
        %v3937 = vadd.s32 %v3927, %v3931
        %v3938 = vadd.s32 %v3930, %v3936
        %vm3939 = vc.u32 %v3937, %v3933
        %v3940 = vsel %vm3939, 1, 0
        %v3941 = vadd.s32 %v3937, %v3933
        %v3942 = vadd.s32 %v3938, %v3940
        %v3943 = vadd.s32 %v3942, %v3932
        %v3944 = vadd.s32 %v3943, %v3934
        %v3945 = vshrl.u32 %v3944, 4
        %v3946 = vmul.u32 %v3945, 18
        %v3947 = vsub.s32 %v3923, %v3946
        %v3948 = vsub.s32 0, %v3947
        %v3949 = vsel %vm3921, %v3948, %v3947
        %vm3950 = vcmp.lt.s32.totalorder %v2962, 0
        %v3951 = vsub.s32 0, %v2962
        %v3952 = vsel %vm3950, %v3951, %v2962
        %v3953 = vand.u32 %v3952, 65535
        %v3954 = vshrl.u32 %v3952, 16
        %v3956 = vmul.u32 %v3953, 14564
        %v3957 = vmul.u32 %v3953, 58254
        %v3958 = vmul.u32 %v3954, 14564
        %v3959 = vmul.u32 %v3954, 58254
        %v3960 = vshll.u32 %v3957, 16
        %v3961 = vshrl.u32 %v3957, 16
        %v3962 = vshll.u32 %v3958, 16
        %v3963 = vshrl.u32 %v3958, 16
        %vm3964 = vc.u32 %v3956, %v3960
        %v3965 = vsel %vm3964, 1, 0
        %v3966 = vadd.s32 %v3956, %v3960
        %v3967 = vadd.s32 %v3959, %v3965
        %vm3968 = vc.u32 %v3966, %v3962
        %v3969 = vsel %vm3968, 1, 0
        %v3970 = vadd.s32 %v3966, %v3962
        %v3971 = vadd.s32 %v3967, %v3969
        %v3972 = vadd.s32 %v3971, %v3961
        %v3973 = vadd.s32 %v3972, %v3963
        %v3974 = vshrl.u32 %v3973, 4
        %v3975 = vmul.u32 %v3974, 18
        %v3976 = vsub.s32 %v3952, %v3975
        %v3977 = vsub.s32 0, %v3976
        %v3978 = vsel %vm3950, %v3977, %v3976
        %vm3979 = vcmp.lt.s32.totalorder %v2963, 0
        %v3980 = vsub.s32 0, %v2963
        %v3981 = vsel %vm3979, %v3980, %v2963
        %v3982 = vand.u32 %v3981, 65535
        %v3983 = vshrl.u32 %v3981, 16
        %v3985 = vmul.u32 %v3982, 14564
        %v3986 = vmul.u32 %v3982, 58254
        %v3987 = vmul.u32 %v3983, 14564
        %v3988 = vmul.u32 %v3983, 58254
        %v3989 = vshll.u32 %v3986, 16
        %v3990 = vshrl.u32 %v3986, 16
        %v3991 = vshll.u32 %v3987, 16
        %v3992 = vshrl.u32 %v3987, 16
        %vm3993 = vc.u32 %v3985, %v3989
        %v3994 = vsel %vm3993, 1, 0
        %v3995 = vadd.s32 %v3985, %v3989
        %v3996 = vadd.s32 %v3988, %v3994
        %vm3997 = vc.u32 %v3995, %v3991
        %v3998 = vsel %vm3997, 1, 0
        %v3999 = vadd.s32 %v3995, %v3991
        %v4000 = vadd.s32 %v3996, %v3998
        %v4001 = vadd.s32 %v4000, %v3990
        %v4002 = vadd.s32 %v4001, %v3992
        %v4003 = vshrl.u32 %v4002, 4
        %v4004 = vmul.u32 %v4003, 18
        %v4005 = vsub.s32 %v3981, %v4004
        %v4006 = vsub.s32 0, %v4005
        %v4007 = vsel %vm3979, %v4006, %v4005
        %vm4008 = vcmp.ne.s32.totalorder %v2992, 0
        %vm4009 = vcmp.ne.s32.totalorder %v3021, 0
        %vm4010 = vcmp.ne.s32.totalorder %v3050, 0
        %vm4011 = vcmp.ne.s32.totalorder %v3079, 0
        %vm4012 = vcmp.ne.s32.totalorder %v3108, 0
        %vm4013 = vcmp.ne.s32.totalorder %v3137, 0
        %vm4014 = vcmp.ne.s32.totalorder %v3166, 0
        %vm4015 = vcmp.ne.s32.totalorder %v3195, 0
        %vm4016 = vcmp.ne.s32.totalorder %v3224, 0
        %vm4017 = vcmp.ne.s32.totalorder %v3253, 0
        %vm4018 = vcmp.ne.s32.totalorder %v3282, 0
        %vm4019 = vcmp.ne.s32.totalorder %v3311, 0
        %vm4020 = vcmp.ne.s32.totalorder %v3340, 0
        %vm4021 = vcmp.ne.s32.totalorder %v3369, 0
        %vm4022 = vcmp.ne.s32.totalorder %v3398, 0
        %vm4023 = vcmp.ne.s32.totalorder %v3427, 0
        %vm4024 = vcmp.ne.s32.totalorder %v3456, 0
        %vm4025 = vcmp.ne.s32.totalorder %v3485, 0
        %vm4026 = vcmp.ne.s32.totalorder %v3514, 0
        %vm4027 = vcmp.ne.s32.totalorder %v3543, 0
        %vm4028 = vcmp.ne.s32.totalorder %v3572, 0
        %vm4029 = vcmp.ne.s32.totalorder %v3601, 0
        %vm4030 = vcmp.ne.s32.totalorder %v3630, 0
        %vm4031 = vcmp.ne.s32.totalorder %v3659, 0
        %vm4032 = vcmp.ne.s32.totalorder %v3688, 0
        %vm4033 = vcmp.ne.s32.totalorder %v3717, 0
        %vm4034 = vcmp.ne.s32.totalorder %v3746, 0
        %vm4035 = vcmp.ne.s32.totalorder %v3775, 0
        %vm4036 = vcmp.ne.s32.totalorder %v3804, 0
        %vm4037 = vcmp.ne.s32.totalorder %v3833, 0
        %vm4038 = vcmp.ne.s32.totalorder %v3862, 0
        %vm4039 = vcmp.ne.s32.totalorder %v3891, 0
        %vm4040 = vcmp.ne.s32.totalorder %v3920, 0
        %vm4041 = vcmp.ne.s32.totalorder %v3949, 0
        %vm4042 = vcmp.ne.s32.totalorder %v3978, 0
        %vm4043 = vcmp.ne.s32.totalorder %v4007, 0
        %vm4044 = vcmp.lt.s32.totalorder %v2992, 0
        %vm4045 = vcmp.lt.s32.totalorder %v3021, 0
        %vm4046 = vcmp.lt.s32.totalorder %v3050, 0
        %vm4047 = vcmp.lt.s32.totalorder %v3079, 0
        %vm4048 = vcmp.lt.s32.totalorder %v3108, 0
        %vm4049 = vcmp.lt.s32.totalorder %v3137, 0
        %vm4050 = vcmp.lt.s32.totalorder %v3166, 0
        %vm4051 = vcmp.lt.s32.totalorder %v3195, 0
        %vm4052 = vcmp.lt.s32.totalorder %v3224, 0
        %vm4053 = vcmp.lt.s32.totalorder %v3253, 0
        %vm4054 = vcmp.lt.s32.totalorder %v3282, 0
        %vm4055 = vcmp.lt.s32.totalorder %v3311, 0
        %vm4056 = vcmp.lt.s32.totalorder %v3340, 0
        %vm4057 = vcmp.lt.s32.totalorder %v3369, 0
        %vm4058 = vcmp.lt.s32.totalorder %v3398, 0
        %vm4059 = vcmp.lt.s32.totalorder %v3427, 0
        %vm4060 = vcmp.lt.s32.totalorder %v3456, 0
        %vm4061 = vcmp.lt.s32.totalorder %v3485, 0
        %vm4062 = vcmp.lt.s32.totalorder %v3514, 0
        %vm4063 = vcmp.lt.s32.totalorder %v3543, 0
        %vm4064 = vcmp.lt.s32.totalorder %v3572, 0
        %vm4065 = vcmp.lt.s32.totalorder %v3601, 0
        %vm4066 = vcmp.lt.s32.totalorder %v3630, 0
        %vm4067 = vcmp.lt.s32.totalorder %v3659, 0
        %vm4068 = vcmp.lt.s32.totalorder %v3688, 0
        %vm4069 = vcmp.lt.s32.totalorder %v3717, 0
        %vm4070 = vcmp.lt.s32.totalorder %v3746, 0
        %vm4071 = vcmp.lt.s32.totalorder %v3775, 0
        %vm4072 = vcmp.lt.s32.totalorder %v3804, 0
        %vm4073 = vcmp.lt.s32.totalorder %v3833, 0
        %vm4074 = vcmp.lt.s32.totalorder %v3862, 0
        %vm4075 = vcmp.lt.s32.totalorder %v3891, 0
        %vm4076 = vcmp.lt.s32.totalorder %v3920, 0
        %vm4077 = vcmp.lt.s32.totalorder %v3949, 0
        %vm4078 = vcmp.lt.s32.totalorder %v3978, 0
        %vm4079 = vcmp.lt.s32.totalorder %v4007, 0
        %vm4080 = vmand %vm4044, %vm4008
        %vm4081 = vmand %vm4045, %vm4009
        %vm4082 = vmand %vm4046, %vm4010
        %vm4083 = vmand %vm4047, %vm4011
        %vm4084 = vmand %vm4048, %vm4012
        %vm4085 = vmand %vm4049, %vm4013
        %vm4086 = vmand %vm4050, %vm4014
        %vm4087 = vmand %vm4051, %vm4015
        %vm4088 = vmand %vm4052, %vm4016
        %vm4089 = vmand %vm4053, %vm4017
        %vm4090 = vmand %vm4054, %vm4018
        %vm4091 = vmand %vm4055, %vm4019
        %vm4092 = vmand %vm4056, %vm4020
        %vm4093 = vmand %vm4057, %vm4021
        %vm4094 = vmand %vm4058, %vm4022
        %vm4095 = vmand %vm4059, %vm4023
        %vm4096 = vmand %vm4060, %vm4024
        %vm4097 = vmand %vm4061, %vm4025
        %vm4098 = vmand %vm4062, %vm4026
        %vm4099 = vmand %vm4063, %vm4027
        %vm4100 = vmand %vm4064, %vm4028
        %vm4101 = vmand %vm4065, %vm4029
        %vm4102 = vmand %vm4066, %vm4030
        %vm4103 = vmand %vm4067, %vm4031
        %vm4104 = vmand %vm4068, %vm4032
        %vm4105 = vmand %vm4069, %vm4033
        %vm4106 = vmand %vm4070, %vm4034
        %vm4107 = vmand %vm4071, %vm4035
        %vm4108 = vmand %vm4072, %vm4036
        %vm4109 = vmand %vm4073, %vm4037
        %vm4110 = vmand %vm4074, %vm4038
        %vm4111 = vmand %vm4075, %vm4039
        %vm4112 = vmand %vm4076, %vm4040
        %vm4113 = vmand %vm4077, %vm4041
        %vm4114 = vmand %vm4078, %vm4042
        %vm4115 = vmand %vm4079, %vm4043
        %v4116 = vadd.s32 %v2992, 18
        %v4117 = vadd.s32 %v3021, 18
        %v4118 = vadd.s32 %v3050, 18
        %v4119 = vadd.s32 %v3079, 18
        %v4120 = vadd.s32 %v3108, 18
        %v4121 = vadd.s32 %v3137, 18
        %v4122 = vadd.s32 %v3166, 18
        %v4123 = vadd.s32 %v3195, 18
        %v4124 = vadd.s32 %v3224, 18
        %v4125 = vadd.s32 %v3253, 18
        %v4126 = vadd.s32 %v3282, 18
        %v4127 = vadd.s32 %v3311, 18
        %v4128 = vadd.s32 %v3340, 18
        %v4129 = vadd.s32 %v3369, 18
        %v4130 = vadd.s32 %v3398, 18
        %v4131 = vadd.s32 %v3427, 18
        %v4132 = vadd.s32 %v3456, 18
        %v4133 = vadd.s32 %v3485, 18
        %v4134 = vadd.s32 %v3514, 18
        %v4135 = vadd.s32 %v3543, 18
        %v4136 = vadd.s32 %v3572, 18
        %v4137 = vadd.s32 %v3601, 18
        %v4138 = vadd.s32 %v3630, 18
        %v4139 = vadd.s32 %v3659, 18
        %v4140 = vadd.s32 %v3688, 18
        %v4141 = vadd.s32 %v3717, 18
        %v4142 = vadd.s32 %v3746, 18
        %v4143 = vadd.s32 %v3775, 18
        %v4144 = vadd.s32 %v3804, 18
        %v4145 = vadd.s32 %v3833, 18
        %v4146 = vadd.s32 %v3862, 18
        %v4147 = vadd.s32 %v3891, 18
        %v4148 = vadd.s32 %v3920, 18
        %v4149 = vadd.s32 %v3949, 18
        %v4150 = vadd.s32 %v3978, 18
        %v4151 = vadd.s32 %v4007, 18
        %v4152 = vsel %vm4080, %v4116, %v2992
        %v4153 = vsel %vm4081, %v4117, %v3021
        %v4154 = vsel %vm4082, %v4118, %v3050
        %v4155 = vsel %vm4083, %v4119, %v3079
        %v4156 = vsel %vm4084, %v4120, %v3108
        %v4157 = vsel %vm4085, %v4121, %v3137
        %v4158 = vsel %vm4086, %v4122, %v3166
        %v4159 = vsel %vm4087, %v4123, %v3195
        %v4160 = vsel %vm4088, %v4124, %v3224
        %v4161 = vsel %vm4089, %v4125, %v3253
        %v4162 = vsel %vm4090, %v4126, %v3282
        %v4163 = vsel %vm4091, %v4127, %v3311
        %v4164 = vsel %vm4092, %v4128, %v3340
        %v4165 = vsel %vm4093, %v4129, %v3369
        %v4166 = vsel %vm4094, %v4130, %v3398
        %v4167 = vsel %vm4095, %v4131, %v3427
        %v4168 = vsel %vm4096, %v4132, %v3456
        %v4169 = vsel %vm4097, %v4133, %v3485
        %v4170 = vsel %vm4098, %v4134, %v3514
        %v4171 = vsel %vm4099, %v4135, %v3543
        %v4172 = vsel %vm4100, %v4136, %v3572
        %v4173 = vsel %vm4101, %v4137, %v3601
        %v4174 = vsel %vm4102, %v4138, %v3630
        %v4175 = vsel %vm4103, %v4139, %v3659
        %v4176 = vsel %vm4104, %v4140, %v3688
        %v4177 = vsel %vm4105, %v4141, %v3717
        %v4178 = vsel %vm4106, %v4142, %v3746
        %v4179 = vsel %vm4107, %v4143, %v3775
        %v4180 = vsel %vm4108, %v4144, %v3804
        %v4181 = vsel %vm4109, %v4145, %v3833
        %v4182 = vsel %vm4110, %v4146, %v3862
        %v4183 = vsel %vm4111, %v4147, %v3891
        %v4184 = vsel %vm4112, %v4148, %v3920
        %v4185 = vsel %vm4113, %v4149, %v3949
        %v4186 = vsel %vm4114, %v4150, %v3978
        %v4187 = vsel %vm4115, %v4151, %v4007
        %vm4188 = vcmp.lt.s32.totalorder %v4152, 16
        %vm4189 = vcmp.lt.s32.totalorder %v4153, 16
        %vm4190 = vcmp.lt.s32.totalorder %v4154, 16
        %vm4191 = vcmp.lt.s32.totalorder %v4155, 16
        %vm4192 = vcmp.lt.s32.totalorder %v4156, 16
        %vm4193 = vcmp.lt.s32.totalorder %v4157, 16
        %vm4194 = vcmp.lt.s32.totalorder %v4158, 16
        %vm4195 = vcmp.lt.s32.totalorder %v4159, 16
        %vm4196 = vcmp.lt.s32.totalorder %v4160, 16
        %vm4197 = vcmp.lt.s32.totalorder %v4161, 16
        %vm4198 = vcmp.lt.s32.totalorder %v4162, 16
        %vm4199 = vcmp.lt.s32.totalorder %v4163, 16
        %vm4200 = vcmp.lt.s32.totalorder %v4164, 16
        %vm4201 = vcmp.lt.s32.totalorder %v4165, 16
        %vm4202 = vcmp.lt.s32.totalorder %v4166, 16
        %vm4203 = vcmp.lt.s32.totalorder %v4167, 16
        %vm4204 = vcmp.lt.s32.totalorder %v4168, 16
        %vm4205 = vcmp.lt.s32.totalorder %v4169, 16
        %vm4206 = vcmp.lt.s32.totalorder %v4170, 16
        %vm4207 = vcmp.lt.s32.totalorder %v4171, 16
        %vm4208 = vcmp.lt.s32.totalorder %v4172, 16
        %vm4209 = vcmp.lt.s32.totalorder %v4173, 16
        %vm4210 = vcmp.lt.s32.totalorder %v4174, 16
        %vm4211 = vcmp.lt.s32.totalorder %v4175, 16
        %vm4212 = vcmp.lt.s32.totalorder %v4176, 16
        %vm4213 = vcmp.lt.s32.totalorder %v4177, 16
        %vm4214 = vcmp.lt.s32.totalorder %v4178, 16
        %vm4215 = vcmp.lt.s32.totalorder %v4179, 16
        %vm4216 = vcmp.lt.s32.totalorder %v4180, 16
        %vm4217 = vcmp.lt.s32.totalorder %v4181, 16
        %vm4218 = vcmp.lt.s32.totalorder %v4182, 16
        %vm4219 = vcmp.lt.s32.totalorder %v4183, 16
        %vm4220 = vcmp.lt.s32.totalorder %v4184, 16
        %vm4221 = vcmp.lt.s32.totalorder %v4185, 16
        %vm4222 = vcmp.lt.s32.totalorder %v4186, 16
        %vm4223 = vcmp.lt.s32.totalorder %v4187, 16
        %v4224 = vsel %vm4188, 1, 0
        %v4225 = vsel %vm4189, 1, 0
        %v4226 = vsel %vm4190, 1, 0
        %v4227 = vsel %vm4191, 1, 0
        %v4228 = vsel %vm4192, 1, 0
        %v4229 = vsel %vm4193, 1, 0
        %v4230 = vsel %vm4194, 1, 0
        %v4231 = vsel %vm4195, 1, 0
        %v4232 = vsel %vm4196, 1, 0
        %v4233 = vsel %vm4197, 1, 0
        %v4234 = vsel %vm4198, 1, 0
        %v4235 = vsel %vm4199, 1, 0
        %v4236 = vsel %vm4200, 1, 0
        %v4237 = vsel %vm4201, 1, 0
        %v4238 = vsel %vm4202, 1, 0
        %v4239 = vsel %vm4203, 1, 0
        %v4240 = vsel %vm4204, 1, 0
        %v4241 = vsel %vm4205, 1, 0
        %v4242 = vsel %vm4206, 1, 0
        %v4243 = vsel %vm4207, 1, 0
        %v4244 = vsel %vm4208, 1, 0
        %v4245 = vsel %vm4209, 1, 0
        %v4246 = vsel %vm4210, 1, 0
        %v4247 = vsel %vm4211, 1, 0
        %v4248 = vsel %vm4212, 1, 0
        %v4249 = vsel %vm4213, 1, 0
        %v4250 = vsel %vm4214, 1, 0
        %v4251 = vsel %vm4215, 1, 0
        %v4252 = vsel %vm4216, 1, 0
        %v4253 = vsel %vm4217, 1, 0
        %v4254 = vsel %vm4218, 1, 0
        %v4255 = vsel %vm4219, 1, 0
        %v4256 = vsel %vm4220, 1, 0
        %v4257 = vsel %vm4221, 1, 0
        %v4258 = vsel %vm4222, 1, 0
        %v4259 = vsel %vm4223, 1, 0
        %v4260 = vcvt.s32.f32 %v4224
        %v4261 = vcvt.s32.f32 %v4225
        %v4262 = vcvt.s32.f32 %v4226
        %v4263 = vcvt.s32.f32 %v4227
        %v4264 = vcvt.s32.f32 %v4228
        %v4265 = vcvt.s32.f32 %v4229
        %v4266 = vcvt.s32.f32 %v4230
        %v4267 = vcvt.s32.f32 %v4231
        %v4268 = vcvt.s32.f32 %v4232
        %v4269 = vcvt.s32.f32 %v4233
        %v4270 = vcvt.s32.f32 %v4234
        %v4271 = vcvt.s32.f32 %v4235
        %v4272 = vcvt.s32.f32 %v4236
        %v4273 = vcvt.s32.f32 %v4237
        %v4274 = vcvt.s32.f32 %v4238
        %v4275 = vcvt.s32.f32 %v4239
        %v4276 = vcvt.s32.f32 %v4240
        %v4277 = vcvt.s32.f32 %v4241
        %v4278 = vcvt.s32.f32 %v4242
        %v4279 = vcvt.s32.f32 %v4243
        %v4280 = vcvt.s32.f32 %v4244
        %v4281 = vcvt.s32.f32 %v4245
        %v4282 = vcvt.s32.f32 %v4246
        %v4283 = vcvt.s32.f32 %v4247
        %v4284 = vcvt.s32.f32 %v4248
        %v4285 = vcvt.s32.f32 %v4249
        %v4286 = vcvt.s32.f32 %v4250
        %v4287 = vcvt.s32.f32 %v4251
        %v4288 = vcvt.s32.f32 %v4252
        %v4289 = vcvt.s32.f32 %v4253
        %v4290 = vcvt.s32.f32 %v4254
        %v4291 = vcvt.s32.f32 %v4255
        %v4292 = vcvt.s32.f32 %v4256
        %v4293 = vcvt.s32.f32 %v4257
        %v4294 = vcvt.s32.f32 %v4258
        %v4295 = vcvt.s32.f32 %v4259
        %v4296 = vmul.f32 %v2891, %v4260
        %v4297 = vmul.f32 %v2892, %v4261
        %v4298 = vmul.f32 %v2893, %v4262
        %v4299 = vmul.f32 %v2894, %v4263
        %v4300 = vmul.f32 %v2895, %v4264
        %v4301 = vmul.f32 %v2896, %v4265
        %v4302 = vmul.f32 %v2897, %v4266
        %v4303 = vmul.f32 %v2898, %v4267
        %v4304 = vmul.f32 %v2899, %v4268
        %v4305 = vmul.f32 %v2900, %v4269
        %v4306 = vmul.f32 %v2901, %v4270
        %v4307 = vmul.f32 %v2902, %v4271
        %v4308 = vmul.f32 %v2903, %v4272
        %v4309 = vmul.f32 %v2904, %v4273
        %v4310 = vmul.f32 %v2905, %v4274
        %v4311 = vmul.f32 %v2906, %v4275
        %v4312 = vmul.f32 %v2907, %v4276
        %v4313 = vmul.f32 %v2908, %v4277
        %v4314 = vmul.f32 %v2909, %v4278
        %v4315 = vmul.f32 %v2910, %v4279
        %v4316 = vmul.f32 %v2911, %v4280
        %v4317 = vmul.f32 %v2912, %v4281
        %v4318 = vmul.f32 %v2913, %v4282
        %v4319 = vmul.f32 %v2914, %v4283
        %v4320 = vmul.f32 %v2915, %v4284
        %v4321 = vmul.f32 %v2916, %v4285
        %v4322 = vmul.f32 %v2917, %v4286
        %v4323 = vmul.f32 %v2918, %v4287
        %v4324 = vmul.f32 %v2919, %v4288
        %v4325 = vmul.f32 %v2920, %v4289
        %v4326 = vmul.f32 %v2921, %v4290
        %v4327 = vmul.f32 %v2922, %v4291
        %v4328 = vmul.f32 %v2923, %v4292
        %v4329 = vmul.f32 %v2924, %v4293
        %v4330 = vmul.f32 %v2925, %v4294
        %v4331 = vmul.f32 %v2926, %v4295
        %v4332 = vadd.f32 %v4296, %v4297
        %v4333 = vadd.f32 %v4332, %v4298
        %v4334 = vadd.f32 %v4333, %v4299
        %v4335 = vadd.f32 %v4334, %v4300
        %v4336 = vadd.f32 %v4335, %v4301
        %v4337 = vadd.f32 %v4336, %v4302
        %v4338 = vadd.f32 %v4337, %v4303
        %v4339 = vadd.f32 %v4338, %v4304
        %v4340 = vadd.f32 %v4339, %v4305
        %v4341 = vadd.f32 %v4340, %v4306
        %v4342 = vadd.f32 %v4341, %v4307
        %v4343 = vadd.f32 %v4342, %v4308
        %v4344 = vadd.f32 %v4343, %v4309
        %v4345 = vadd.f32 %v4344, %v4310
        %v4346 = vadd.f32 %v4345, %v4311
        %v4347 = vadd.f32 %v4346, %v4312
        %v4348 = vadd.f32 %v4347, %v4313
        %v4349 = vadd.f32 %v4348, %v4314
        %v4350 = vadd.f32 %v4349, %v4315
        %v4351 = vadd.f32 %v4350, %v4316
        %v4352 = vadd.f32 %v4351, %v4317
        %v4353 = vadd.f32 %v4352, %v4318
        %v4354 = vadd.f32 %v4353, %v4319
        %v4355 = vadd.f32 %v4354, %v4320
        %v4356 = vadd.f32 %v4355, %v4321
        %v4357 = vadd.f32 %v4356, %v4322
        %v4358 = vadd.f32 %v4357, %v4323
        %v4359 = vadd.f32 %v4358, %v4324
        %v4360 = vadd.f32 %v4359, %v4325
        %v4361 = vadd.f32 %v4360, %v4326
        %v4362 = vadd.f32 %v4361, %v4327
        %v4363 = vadd.f32 %v4362, %v4328
        %v4364 = vadd.f32 %v4363, %v4329
        %v4365 = vadd.f32 %v4364, %v4330
        %v4366 = vadd.f32 %v4365, %v4331
        %v4367 = vrot.slane %v4366, 4
        %v4368 = vadd.f32 %v4366, %v4367
        %v4369 = vrot.slane %v4368, 2
        %v4370 = vadd.f32 %v4368, %v4369
        %v4371 = vrot.slane %v4370, 1
        %v4372 = vadd.f32 %v4370, %v4371
        %4373 = vst [vmem:[%s192] sm:$0x1] %v4372
        %v4374 = vmul.f32 %v4296, %v2891
        %v4375 = vmul.f32 %v4297, %v2892
        %v4376 = vmul.f32 %v4298, %v2893
        %v4377 = vmul.f32 %v4299, %v2894
        %v4378 = vmul.f32 %v4300, %v2895
        %v4379 = vmul.f32 %v4301, %v2896
        %v4380 = vmul.f32 %v4302, %v2897
        %v4381 = vmul.f32 %v4303, %v2898
        %v4382 = vmul.f32 %v4304, %v2899
        %v4383 = vmul.f32 %v4305, %v2900
        %v4384 = vmul.f32 %v4306, %v2901
        %v4385 = vmul.f32 %v4307, %v2902
        %v4386 = vmul.f32 %v4308, %v2903
        %v4387 = vmul.f32 %v4309, %v2904
        %v4388 = vmul.f32 %v4310, %v2905
        %v4389 = vmul.f32 %v4311, %v2906
        %v4390 = vmul.f32 %v4312, %v2907
        %v4391 = vmul.f32 %v4313, %v2908
        %v4392 = vmul.f32 %v4314, %v2909
        %v4393 = vmul.f32 %v4315, %v2910
        %v4394 = vmul.f32 %v4316, %v2911
        %v4395 = vmul.f32 %v4317, %v2912
        %v4396 = vmul.f32 %v4318, %v2913
        %v4397 = vmul.f32 %v4319, %v2914
        %v4398 = vmul.f32 %v4320, %v2915
        %v4399 = vmul.f32 %v4321, %v2916
        %v4400 = vmul.f32 %v4322, %v2917
        %v4401 = vmul.f32 %v4323, %v2918
        %v4402 = vmul.f32 %v4324, %v2919
        %v4403 = vmul.f32 %v4325, %v2920
        %v4404 = vmul.f32 %v4326, %v2921
        %v4405 = vmul.f32 %v4327, %v2922
        %v4406 = vmul.f32 %v4328, %v2923
        %v4407 = vmul.f32 %v4329, %v2924
        %v4408 = vmul.f32 %v4330, %v2925
        %v4409 = vmul.f32 %v4331, %v2926
        %v4410 = vadd.f32 %v4374, %v4375
        %v4411 = vadd.f32 %v4410, %v4376
        %v4412 = vadd.f32 %v4411, %v4377
        %v4413 = vadd.f32 %v4412, %v4378
        %v4414 = vadd.f32 %v4413, %v4379
        %v4415 = vadd.f32 %v4414, %v4380
        %v4416 = vadd.f32 %v4415, %v4381
        %v4417 = vadd.f32 %v4416, %v4382
        %v4418 = vadd.f32 %v4417, %v4383
        %v4419 = vadd.f32 %v4418, %v4384
        %v4420 = vadd.f32 %v4419, %v4385
        %v4421 = vadd.f32 %v4420, %v4386
        %v4422 = vadd.f32 %v4421, %v4387
        %v4423 = vadd.f32 %v4422, %v4388
        %v4424 = vadd.f32 %v4423, %v4389
        %v4425 = vadd.f32 %v4424, %v4390
        %v4426 = vadd.f32 %v4425, %v4391
        %v4427 = vadd.f32 %v4426, %v4392
        %v4428 = vadd.f32 %v4427, %v4393
        %v4429 = vadd.f32 %v4428, %v4394
        %v4430 = vadd.f32 %v4429, %v4395
        %v4431 = vadd.f32 %v4430, %v4396
        %v4432 = vadd.f32 %v4431, %v4397
        %v4433 = vadd.f32 %v4432, %v4398
        %v4434 = vadd.f32 %v4433, %v4399
        %v4435 = vadd.f32 %v4434, %v4400
        %v4436 = vadd.f32 %v4435, %v4401
        %v4437 = vadd.f32 %v4436, %v4402
        %v4438 = vadd.f32 %v4437, %v4403
        %v4439 = vadd.f32 %v4438, %v4404
        %v4440 = vadd.f32 %v4439, %v4405
        %v4441 = vadd.f32 %v4440, %v4406
        %v4442 = vadd.f32 %v4441, %v4407
        %v4443 = vadd.f32 %v4442, %v4408
        %v4444 = vadd.f32 %v4443, %v4409
        %v4445 = vrot.slane %v4444, 4
        %v4446 = vadd.f32 %v4444, %v4445
        %v4447 = vrot.slane %v4446, 2
        %v4448 = vadd.f32 %v4446, %v4447
        %v4449 = vrot.slane %v4448, 1
        %v4450 = vadd.f32 %v4448, %v4449
        %4451 = vst [vmem:[%s198] sm:$0x1] %v4450
        %s4452 = sand.u32 %s92, 1
        %s4453 = scalar_lea.sflag [#allocation3], %s4452
        %s4454 = sand.u32 %s92, 1
        %s4455 = scalar_lea.vmem [#allocation2], %s4454
        %s4456 = sand.u32 %s120, 1
        %s4457 = scalar_lea.sflag [#allocation5], %s4456
        %s4458 = sand.u32 %s120, 1
        %s4459 = scalar_lea.vmem [#allocation4], %s4458
        // Predicated region
        $region29: #{tpu_custom_call.1} parent=27 // pred_check
          %p4460 = pneg %p102
        $region30: #{tpu_custom_call.1} parent=27 // pred_check_branch
          %4462 = sbr.rel (%p4460) target = $region32
        $region31: #{tpu_custom_call.1} parent=27 // pred_region
          %4464 = vsyncadd %s4453, 0
          %s4465 = sadd.s32 %s26, %s25
          %s4466 = scalar_lea.hbm %s2, %s4465
          %s4468 = sshll.u32 %s4455, 4
          %s4469 = int_to_ptr.vmem [resolvable:$true] %s4468
          %s4470 = sshll.u32 %s4466, 4
          %s4471 = int_to_ptr.hbm [resolvable:$true] %s4470
          %4473 = dma.vmem_to_hbm [thread:$0]  %s4469, 16, %s4471, %s4453
        $region32: #{tpu_custom_call.1} parent=27 // pred_fallthru
          _
        // Predicated region
        $region33: #{tpu_custom_call.1} parent=27 // pred_check
          %p4474 = pneg %p130
        $region34: #{tpu_custom_call.1} parent=27 // pred_check_branch
          %4476 = sbr.rel (%p4474) target = $region36
        $region35: #{tpu_custom_call.1} parent=27 // pred_region
          %4478 = vsyncadd %s4457, 0
          %s4479 = sadd.s32 %s26, %s25
          %s4480 = scalar_lea.hbm %s3, %s4479
          %s4482 = sshll.u32 %s4459, 4
          %s4483 = int_to_ptr.vmem [resolvable:$true] %s4482
          %s4484 = sshll.u32 %s4480, 4
          %s4485 = int_to_ptr.hbm [resolvable:$true] %s4484
          %4487 = dma.vmem_to_hbm [thread:$0]  %s4483, 16, %s4485, %s4457
        $region36: #{tpu_custom_call.1} parent=27 // pred_fallthru
          _
      $region28: #{tpu_custom_call.1} parent=5 // pred_fallthru
        _
      %p4488 = scmp.le.s32.totalorder 2, %s16
      // Predicated region
      $region37: #{tpu_custom_call.1} parent=5 // pred_check
        %p4489 = pneg %p4488
      $region38: #{tpu_custom_call.1} parent=5 // pred_check_branch
        %4491 = sbr.rel (%p4489) target = $region40
      $region39: #{tpu_custom_call.1} parent=5 // pred_region
        %s4492 = ssub.s32 %s16, 2
        // Predicated region
        $region41: #{tpu_custom_call.1} parent=39 // pred_check
          %p4493 = pneg %p108
        $region42: #{tpu_custom_call.1} parent=39 // pred_check_branch
          %4495 = sbr.rel (%p4493) target = $region44
        $region43: #{tpu_custom_call.1} parent=39 // pred_region
          %s4496 = sand.u32 %s93, 1
          %s4497 = scalar_lea.sflag [#allocation3], %s4496
          %s4498 = sand.u32 %s93, 1
          %s4499 = scalar_lea.vmem [#allocation2], %s4498
          %4501 = dma.done %s4497, 16
        $region44: #{tpu_custom_call.1} parent=39 // pred_fallthru
          _
        // Predicated region
        $region45: #{tpu_custom_call.1} parent=39 // pred_check
          %p4502 = pneg %p136
        $region46: #{tpu_custom_call.1} parent=39 // pred_check_branch
          %4504 = sbr.rel (%p4502) target = $region48
        $region47: #{tpu_custom_call.1} parent=39 // pred_region
          %s4505 = sand.u32 %s121, 1
          %s4506 = scalar_lea.sflag [#allocation5], %s4505
          %s4507 = sand.u32 %s121, 1
          %s4508 = scalar_lea.vmem [#allocation4], %s4507
          %4510 = dma.done %s4506, 16
        $region48: #{tpu_custom_call.1} parent=39 // pred_fallthru
          _
      $region40: #{tpu_custom_call.1} parent=5 // pred_fallthru
        _
    $region6: #{tpu_custom_call.1} parent=1 // loop_footer
      %s20 = sadd.s32 1, %s16
    $region7: #{tpu_custom_call.1} parent=1 // loop_footer_branch
      %15 = sbr.rel target = $region3
    $region8: #{tpu_custom_call.1} parent=1 // loop_exit
      _
    %4511 = vsyncpa [#allocation3], 1
    %s4512 = scalar_lea.sflag [#allocation3], 1
    %4513 = vsyncpa %s4512, 1
    %4514 = vsyncpa [#allocation5], 1
    %s4515 = scalar_lea.sflag [#allocation5], 1
    %4516 = vsyncpa %s4515, 1

</llo_original>
